<compile_context>
chip_gen: v6e
topology: v6e:2x2x1
jax: 0.10.0
libtpu: 0.0.40
codegen_flags: <defaults>
</compile_context>

<pallas_src>
import functools

import jax
import jax.numpy as jnp
from jax.experimental import pallas as pl
from jax.experimental.pallas import tpu as pltpu


def _spatial_attn_kernel(x_ref, bands_ref, o_ref, pad_ref, sum_ref, max_ref,
                         *, C, D, HW, K, P):
    """One (batch, channel-chunk) grid step.

    x_ref    : (CB, D, HW)       channel chunk of one batch element
    bands_ref: (2*K, HW, HW)     bf16 banded conv matrices (H/W taps + zero pad)
    o_ref    : (1, D, HW)        sigmoid gate for this batch element
    pad_ref  : (2, D + 2P, HW)   f32 scratch, zero halo along D only
    sum_ref  : (D, HW) f32       running channel-sum accumulator
    max_ref  : (D, HW) f32       running channel-max accumulator
    """
    c = pl.program_id(1)
    last_c = pl.num_programs(1) - 1

    xf = x_ref[...].astype(jnp.float32)          # (CB, D, HW)
    part_sum = jnp.sum(xf, axis=0)               # (D, HW)
    part_max = jnp.max(xf, axis=0)               # (D, HW)

    @pl.when(c == 0)
    def _init():
        # Zero only the D halo; the interior is fully overwritten below.  Done
        # once per batch element rather than once per kernel because scratch is
        # per-TensorCore under a "parallel" batch axis (megacore safety).
        halo = jnp.zeros((2, P, HW), pad_ref.dtype)
        pad_ref[:, 0:P, :] = halo
        pad_ref[:, P + D:P + D + P, :] = halo
        sum_ref[...] = part_sum
        max_ref[...] = part_max

    @pl.when(c > 0)
    def _accumulate():
        sum_ref[...] = sum_ref[...] + part_sum
        max_ref[...] = jnp.maximum(max_ref[...], part_max)

    @pl.when(c == last_c)
    def _finalize():
        pad_ref[0, P:P + D, :] = sum_ref[...] * jnp.float32(1.0 / C)   # mean
        pad_ref[1, P:P + D, :] = max_ref[...]                          # max

        # Conv3d as 2*K banded matmuls: the K*K H/W taps and the H/W zero
        # padding live inside each (HW, HW) band; the K D-taps are leading-dim
        # window slices of the D-padded scratch.  bf16 operands, f32 accum.
        acc = None
        for ci in range(2):
            for a in range(K):
                slab = pad_ref[ci, a:a + D, :].astype(jnp.bfloat16)    # (D, HW)
                contrib = jnp.dot(slab, bands_ref[ci * K + a],
                                  preferred_element_type=jnp.float32)
                acc = contrib if acc is None else acc + contrib

        o_ref[0] = jax.nn.sigmoid(acc).astype(o_ref.dtype)


def _padded_bytes(shape, dtype):
    """VMEM footprint of one buffer with (sublane, lane) tile padding."""
    it = jnp.dtype(dtype).itemsize
    if len(shape) < 2:
        n = 1
        for d in shape:
            n *= int(d)
        return max(n, 1) * it
    lead = 1
    for d in shape[:-2]:
        lead *= int(d)
    sub_tile = max(8, 32 // it)
    sub = pl.cdiv(int(shape[-2]), sub_tile) * sub_tile
    lane = pl.cdiv(int(shape[-1]), 128) * 128
    return lead * sub * lane * it


def _vmem_capacity_bytes():
    try:
        return int(pltpu.get_tpu_info().vmem_capacity_bytes)
    except Exception:
        return 64 * 1024 * 1024      # conservative default (v7x per-core VMEM)


def _pick_channel_block(C, D, HW, dtype, budget_bytes=4 * 1024 * 1024):
    """Largest divisor of C whose (CB, D, HW) block fits a per-buffer budget."""
    per_channel = _padded_bytes((1, D, HW), dtype)
    cb = int(min(C, max(1, budget_bytes // max(per_channel, 1))))
    while C % cb != 0:
        cb -= 1
    return cb


@functools.partial(jax.jit, static_argnames=("kernel_size",))
def spatial_attention_3d(x, weight, *, kernel_size=7):
    """x: (B, C, D, H, W); weight: PyTorch Conv3d weight (1, 2, K, K, K).
    Returns the sigmoid gate of shape (B, 1, D, H, W)."""
    assert kernel_size in (3, 7), "Kernel size must be 3 or 7"
    K = kernel_size
    P = 3 if K == 7 else 1
    B, C, D, H, W = x.shape
    HW = H * W

    # Banded matrices hold the H/W taps + H/W zero padding as one contraction:
    #   bands[c*K + a][yi*W + xi, yo*W + xo] = w[c, a, yi - yo + P, xi - xo + P]
    # when both deltas land inside the kernel window, else 0.
    # NOTE: this path wants (2K)*(HW)^2 band storage; for very large H*W
    # (>~512) switch the W taps to pltpu.roll lane shifts + VPU FMA instead.
    w = weight.reshape(2, K, K, K).astype(jnp.float32)
    hy = jnp.arange(H)
    wx = jnp.arange(W)
    dy = hy[:, None] - hy[None, :] + P                         # (H_in, H_out)
    dx = wx[:, None] - wx[None, :] + P                         # (W_in, W_out)
    valid = (((dy >= 0) & (dy < K))[:, None, :, None]
             & ((dx >= 0) & (dx < K))[None, :, None, :])       # (H, W, H, W)
    dyc = jnp.clip(dy, 0, K - 1)
    dxc = jnp.clip(dx, 0, K - 1)
    band = w[:, :, dyc[:, None, :, None], dxc[None, :, None, :]]   # (2,K,H,W,H,W)
    band = jnp.where(valid[None, None], band, 0.0)
    bands = band.reshape(2 * K, HW, HW).astype(jnp.bfloat16)

    # Lane-dense layout: H*W flattened onto the lane axis (free reshape).
    x3 = x.reshape(B * C, D, HW)

    CB = _pick_channel_block(C, D, HW, x.dtype)
    c_steps = C // CB
    Dp = D + 2 * P

    kern = functools.partial(_spatial_attn_kernel, C=C, D=D, HW=HW, K=K, P=P)

    # VMEM budget from lane/sublane-padded sizes, capped by physical VMEM.
    vmem_needed = (
        2 * _padded_bytes((CB, D, HW), x.dtype)              # x block, double-buffered
        + 1 * _padded_bytes((2 * K, HW, HW), jnp.bfloat16)   # bands, single-buffered
        + 2 * _padded_bytes((1, D, HW), x.dtype)             # out block, double-buffered
        + _padded_bytes((2, Dp, HW), jnp.float32)            # pad scratch
        + 2 * _padded_bytes((D, HW), jnp.float32)            # sum/max scratch
    )
    cap = _vmem_capacity_bytes()
    vmem_limit = int(min(cap * 7 // 8,
                         max(vmem_needed + vmem_needed // 4 + (2 << 20), 16 << 20)))

    itemsize = jnp.dtype(x.dtype).itemsize
    cost = pl.CostEstimate(
        flops=B * (2 * K) * 2 * D * HW * HW + 2 * B * C * D * HW,
        transcendentals=B * D * HW,
        bytes_accessed=(B * C * D * HW * itemsize
                        + 2 * K * HW * HW * 2
                        + B * D * HW * itemsize),
    )

    # TODO(synk): when B == 1 on a 2-TensorCore part (v7x), add a second
    # "parallel" grid axis over D tiles (with a P-row halo refetch) so both
    # cores get work; with B >= 2 the batch axis already feeds both cores.
    out = pl.pallas_call(
        kern,
        out_shape=jax.ShapeDtypeStruct((B, D, HW), x.dtype),
        grid_spec=pltpu.PrefetchScalarGridSpec(
            num_scalar_prefetch=0,
            grid=(B, c_steps),
            in_specs=[
                pl.BlockSpec((CB, D, HW),
                             lambda b, cb: (b * c_steps + cb, 0, 0)),
                pl.BlockSpec((2 * K, HW, HW),
                             lambda b, cb: (0, 0, 0),
                             pipeline_mode=pl.Buffered(1)),   # constant input
            ],
            out_specs=pl.BlockSpec((1, D, HW), lambda b, cb: (b, 0, 0)),
            scratch_shapes=[
                pltpu.VMEM((2, Dp, HW), jnp.float32),   # D-padded pooled maps
                pltpu.VMEM((D, HW), jnp.float32),       # running channel sum
                pltpu.VMEM((D, HW), jnp.float32),       # running channel max
            ],
        ),
        compiler_params=pltpu.CompilerParams(
            dimension_semantics=("parallel", "arbitrary"),
            vmem_limit_bytes=vmem_limit,
        ),
        cost_estimate=cost,
    )(x3, bands)

    return out.reshape(B, 1, D, H, W)


if __name__ == "__main__":
    key = jax.random.PRNGKey(0)
    kx, kw = jax.random.split(key)

    # Small shapes consistent with the module: (B, C, D, H, W), kernel_size=7.
    B, C, D, H, W = 2, 4, 8, 16, 16
    K = 7
    x = jax.random.normal(kx, (B, C, D, H, W), dtype=jnp.float32)
    fan_in = 2 * K * K * K
    lim = 1.0 / (fan_in ** 0.5)
    weight = jax.random.uniform(kw, (1, 2, K, K, K), jnp.float32, -lim, lim)

    y = spatial_attention_3d(x, weight, kernel_size=K)
    jax.block_until_ready(y)

    # Pure-JAX reference: same math path as the PyTorch module (f32 end to end).
    avg = jnp.mean(x, axis=1, keepdims=True)
    mx = jnp.max(x, axis=1, keepdims=True)
    cat = jnp.concatenate([avg, mx], axis=1)
    ref = jax.lax.conv_general_dilated(
        cat, weight, window_strides=(1, 1, 1), padding=[(3, 3)] * 3,
        dimension_numbers=("NCDHW", "OIDHW", "NCDHW"),
        precision=jax.lax.Precision.HIGHEST)
    ref = jax.nn.sigmoid(ref)

    assert y.shape == (B, 1, D, H, W)
    # bf16 MXU operands with f32 accumulation: allow a slightly looser gate
    # tolerance than pure f32 (observed error is ~1e-3 or below on the sigmoid).
    max_err = float(jnp.max(jnp.abs(y - ref)))
    assert max_err < 3e-3, f"max abs error {max_err}"

    print("KERNEL_OK")
</pallas_src>

<mosaic_0001>
module attributes {stable_mosaic.version = 11 : i64} {
  func.func @_spatial_attn_kernel(%arg0: i32, %arg1: i32, %arg2: memref<4x8x256xf32, #tpu.memory_space<vmem>>, %arg3: memref<14x256x256xbf16, #tpu.memory_space<vmem>>, %arg4: memref<1x8x256xf32, #tpu.memory_space<vmem>>, %arg5: memref<2x14x256xf32, #tpu.memory_space<vmem>>, %arg6: memref<8x256xf32, #tpu.memory_space<vmem>>, %arg7: memref<8x256xf32, #tpu.memory_space<vmem>>) attributes {dimension_semantics = [#tpu.dimension_semantics<parallel>, #tpu.dimension_semantics<arbitrary>], iteration_bounds = array<i64: 2, 1>, scalar_prefetch = 0 : i64, scratch_operands = 3 : i64, tpu.core_type = #tpu.core_type<tc>, window_params = [{transform_indices = @transform_0, window_bounds = array<i64: 4, 8, 256>}, {pipeline_mode = #tpu.pipeline_mode<synchronous>, transform_indices = @transform_1, window_bounds = array<i64: 14, 256, 256>}, {transform_indices = @transform_2, window_bounds = array<i64: 1, 8, 256>}]} {
    %c0 = arith.constant 0 : index
    %c0_0 = arith.constant 0 : index
    %c0_1 = arith.constant 0 : index
    %0 = vector.load %arg2[%c0, %c0_0, %c0_1] : memref<4x8x256xf32, #tpu.memory_space<vmem>>, vector<4x8x256xf32>
    %cst = arith.constant dense<0.000000e+00> : vector<8x256xf32>
    %1 = vector.multi_reduction <add>, %0, %cst [0] : vector<4x8x256xf32> to vector<8x256xf32>
    %cst_2 = arith.constant dense<0xFF800000> : vector<8x256xf32>
    %2 = vector.multi_reduction <maximumf>, %0, %cst_2 [0] : vector<4x8x256xf32> to vector<8x256xf32>
    %c0_i32 = arith.constant 0 : i32
    %3 = arith.cmpi eq, %arg1, %c0_i32 : i32
    %4 = arith.extui %3 : i1 to i32
    %c0_i32_3 = arith.constant 0 : i32
    %5 = arith.cmpi ne, %4, %c0_i32_3 : i32
    scf.if %5 {
      %cst_8 = arith.constant 0.000000e+00 : f32
      %12 = vector.broadcast %cst_8 : f32 to vector<2x3x256xf32>
      %c0_9 = arith.constant 0 : index
      %c0_10 = arith.constant 0 : index
      %c0_11 = arith.constant 0 : index
      %13 = vector.load %arg5[%c0_9, %c0_10, %c0_11] : memref<2x14x256xf32, #tpu.memory_space<vmem>>, vector<2x3x256xf32>
      tpu.vector_store %arg5[%c0_9, %c0_10, %c0_11], %12 {strides = array<i32>} : memref<2x14x256xf32, #tpu.memory_space<vmem>>, vector<2x3x256xf32>,
      %c0_12 = arith.constant 0 : index
      %c11 = arith.constant 11 : index
      %c0_13 = arith.constant 0 : index
      %14 = vector.load %arg5[%c0_12, %c11, %c0_13] : memref<2x14x256xf32, #tpu.memory_space<vmem>>, vector<2x3x256xf32>
      tpu.vector_store %arg5[%c0_12, %c11, %c0_13], %12 {strides = array<i32>} : memref<2x14x256xf32, #tpu.memory_space<vmem>>, vector<2x3x256xf32>,
      %c0_14 = arith.constant 0 : index
      %c0_15 = arith.constant 0 : index
      %15 = vector.load %arg6[%c0_14, %c0_15] : memref<8x256xf32, #tpu.memory_space<vmem>>, vector<8x256xf32>
      tpu.vector_store %arg6[%c0_14, %c0_15], %1 {strides = array<i32>} : memref<8x256xf32, #tpu.memory_space<vmem>>, vector<8x256xf32>,
      %c0_16 = arith.constant 0 : index
      %c0_17 = arith.constant 0 : index
      %16 = vector.load %arg7[%c0_16, %c0_17] : memref<8x256xf32, #tpu.memory_space<vmem>>, vector<8x256xf32>
      tpu.vector_store %arg7[%c0_16, %c0_17], %2 {strides = array<i32>} : memref<8x256xf32, #tpu.memory_space<vmem>>, vector<8x256xf32>,
    } else {
    }
    %c0_i32_4 = arith.constant 0 : i32
    %6 = arith.cmpi sgt, %arg1, %c0_i32_4 : i32
    %7 = arith.extui %6 : i1 to i32
    %c0_i32_5 = arith.constant 0 : i32
    %8 = arith.cmpi ne, %7, %c0_i32_5 : i32
    scf.if %8 {
      %c0_8 = arith.constant 0 : index
      %c0_9 = arith.constant 0 : index
      %12 = vector.load %arg6[%c0_8, %c0_9] : memref<8x256xf32, #tpu.memory_space<vmem>>, vector<8x256xf32>
      %13 = arith.addf %12, %1 : vector<8x256xf32>
      %c0_10 = arith.constant 0 : index
      %c0_11 = arith.constant 0 : index
      %14 = vector.load %arg6[%c0_10, %c0_11] : memref<8x256xf32, #tpu.memory_space<vmem>>, vector<8x256xf32>
      tpu.vector_store %arg6[%c0_10, %c0_11], %13 {strides = array<i32>} : memref<8x256xf32, #tpu.memory_space<vmem>>, vector<8x256xf32>,
      %c0_12 = arith.constant 0 : index
      %c0_13 = arith.constant 0 : index
      %15 = vector.load %arg7[%c0_12, %c0_13] : memref<8x256xf32, #tpu.memory_space<vmem>>, vector<8x256xf32>
      %16 = arith.maximumf %15, %2 : vector<8x256xf32>
      %c0_14 = arith.constant 0 : index
      %c0_15 = arith.constant 0 : index
      %17 = vector.load %arg7[%c0_14, %c0_15] : memref<8x256xf32, #tpu.memory_space<vmem>>, vector<8x256xf32>
      tpu.vector_store %arg7[%c0_14, %c0_15], %16 {strides = array<i32>} : memref<8x256xf32, #tpu.memory_space<vmem>>, vector<8x256xf32>,
    } else {
    }
    %c0_i32_6 = arith.constant 0 : i32
    %9 = arith.cmpi eq, %arg1, %c0_i32_6 : i32
    %10 = arith.extui %9 : i1 to i32
    %c0_i32_7 = arith.constant 0 : i32
    %11 = arith.cmpi ne, %10, %c0_i32_7 : i32
    scf.if %11 {
      %c0_8 = arith.constant 0 : index
      %c0_9 = arith.constant 0 : index
      %12 = vector.load %arg6[%c0_8, %c0_9] : memref<8x256xf32, #tpu.memory_space<vmem>>, vector<8x256xf32>
      %cst_10 = arith.constant 2.500000e-01 : f32
      %13 = vector.broadcast %cst_10 : f32 to vector<8x256xf32>
      %14 = arith.mulf %12, %13 : vector<8x256xf32>
      %c0_11 = arith.constant 0 : index
      %c3 = arith.constant 3 : index
      %c0_12 = arith.constant 0 : index
      %15 = vector.load %arg5[%c0_11, %c3, %c0_12] : memref<2x14x256xf32, #tpu.memory_space<vmem>>, vector<1x8x256xf32>
      %16 = vector.shape_cast %15 : vector<1x8x256xf32> to vector<8x256xf32>
      %17 = vector.shape_cast %14 : vector<8x256xf32> to vector<1x8x256xf32>
      tpu.vector_store %arg5[%c0_11, %c3, %c0_12], %17 {strides = array<i32>} : memref<2x14x256xf32, #tpu.memory_space<vmem>>, vector<1x8x256xf32>,
      %c0_13 = arith.constant 0 : index
      %c0_14 = arith.constant 0 : index
      %18 = vector.load %arg7[%c0_13, %c0_14] : memref<8x256xf32, #tpu.memory_space<vmem>>, vector<8x256xf32>
      %c1 = arith.constant 1 : index
      %c3_15 = arith.constant 3 : index
      %c0_16 = arith.constant 0 : index
      %19 = vector.load %arg5[%c1, %c3_15, %c0_16] : memref<2x14x256xf32, #tpu.memory_space<vmem>>, vector<1x8x256xf32>
      %20 = vector.shape_cast %19 : vector<1x8x256xf32> to vector<8x256xf32>
      %21 = vector.shape_cast %18 : vector<8x256xf32> to vector<1x8x256xf32>
      tpu.vector_store %arg5[%c1, %c3_15, %c0_16], %21 {strides = array<i32>} : memref<2x14x256xf32, #tpu.memory_space<vmem>>, vector<1x8x256xf32>,
      %c0_17 = arith.constant 0 : index
      %c0_18 = arith.constant 0 : index
      %c0_19 = arith.constant 0 : index
      %22 = vector.load %arg5[%c0_17, %c0_18, %c0_19] : memref<2x14x256xf32, #tpu.memory_space<vmem>>, vector<1x8x256xf32>
      %23 = vector.shape_cast %22 : vector<1x8x256xf32> to vector<8x256xf32>
      %24 = arith.truncf %23 : vector<8x256xf32> to vector<8x256xbf16>
      %c0_20 = arith.constant 0 : index
      %c0_21 = arith.constant 0 : index
      %c0_22 = arith.constant 0 : index
      %25 = vector.load %arg3[%c0_20, %c0_21, %c0_22] : memref<14x256x256xbf16, #tpu.memory_space<vmem>>, vector<1x256x256xbf16>
      %26 = vector.shape_cast %25 : vector<1x256x256xbf16> to vector<256x256xbf16>
      %cst_23 = arith.constant dense<0.000000e+00> : vector<8x256xf32>
      %27 = tpu.matmul %24, %26, %cst_23 {dimension_numbers = #tpu.dot_dimension_numbers<[1], [0], [0], [1], [0, 0, 1, 1], [], []>} : vector<8x256xbf16>, vector<256x256xbf16>, vector<8x256xf32> -> vector<8x256xf32>
      %c0_24 = arith.constant 0 : index
      %c1_25 = arith.constant 1 : index
      %c0_26 = arith.constant 0 : index
      %28 = vector.load %arg5[%c0_24, %c1_25, %c0_26] : memref<2x14x256xf32, #tpu.memory_space<vmem>>, vector<1x8x256xf32>
      %29 = vector.shape_cast %28 : vector<1x8x256xf32> to vector<8x256xf32>
      %30 = arith.truncf %29 : vector<8x256xf32> to vector<8x256xbf16>
      %c1_27 = arith.constant 1 : index
      %c0_28 = arith.constant 0 : index
      %c0_29 = arith.constant 0 : index
      %31 = vector.load %arg3[%c1_27, %c0_28, %c0_29] : memref<14x256x256xbf16, #tpu.memory_space<vmem>>, vector<1x256x256xbf16>
      %32 = vector.shape_cast %31 : vector<1x256x256xbf16> to vector<256x256xbf16>
      %cst_30 = arith.constant dense<0.000000e+00> : vector<8x256xf32>
      %33 = tpu.matmul %30, %32, %cst_30 {dimension_numbers = #tpu.dot_dimension_numbers<[1], [0], [0], [1], [0, 0, 1, 1], [], []>} : vector<8x256xbf16>, vector<256x256xbf16>, vector<8x256xf32> -> vector<8x256xf32>
      %34 = arith.addf %27, %33 : vector<8x256xf32>
      %c0_31 = arith.constant 0 : index
      %c2 = arith.constant 2 : index
      %c0_32 = arith.constant 0 : index
      %35 = vector.load %arg5[%c0_31, %c2, %c0_32] : memref<2x14x256xf32, #tpu.memory_space<vmem>>, vector<1x8x256xf32>
      %36 = vector.shape_cast %35 : vector<1x8x256xf32> to vector<8x256xf32>
      %37 = arith.truncf %36 : vector<8x256xf32> to vector<8x256xbf16>
      %c2_33 = arith.constant 2 : index
      %c0_34 = arith.constant 0 : index
      %c0_35 = arith.constant 0 : index
      %38 = vector.load %arg3[%c2_33, %c0_34, %c0_35] : memref<14x256x256xbf16, #tpu.memory_space<vmem>>, vector<1x256x256xbf16>
      %39 = vector.shape_cast %38 : vector<1x256x256xbf16> to vector<256x256xbf16>
      %cst_36 = arith.constant dense<0.000000e+00> : vector<8x256xf32>
      %40 = tpu.matmul %37, %39, %cst_36 {dimension_numbers = #tpu.dot_dimension_numbers<[1], [0], [0], [1], [0, 0, 1, 1], [], []>} : vector<8x256xbf16>, vector<256x256xbf16>, vector<8x256xf32> -> vector<8x256xf32>
      %41 = arith.addf %34, %40 : vector<8x256xf32>
      %c0_37 = arith.constant 0 : index
      %c3_38 = arith.constant 3 : index
      %c0_39 = arith.constant 0 : index
      %42 = vector.load %arg5[%c0_37, %c3_38, %c0_39] : memref<2x14x256xf32, #tpu.memory_space<vmem>>, vector<1x8x256xf32>
      %43 = vector.shape_cast %42 : vector<1x8x256xf32> to vector<8x256xf32>
      %44 = arith.truncf %43 : vector<8x256xf32> to vector<8x256xbf16>
      %c3_40 = arith.constant 3 : index
      %c0_41 = arith.constant 0 : index
      %c0_42 = arith.constant 0 : index
      %45 = vector.load %arg3[%c3_40, %c0_41, %c0_42] : memref<14x256x256xbf16, #tpu.memory_space<vmem>>, vector<1x256x256xbf16>
      %46 = vector.shape_cast %45 : vector<1x256x256xbf16> to vector<256x256xbf16>
      %cst_43 = arith.constant dense<0.000000e+00> : vector<8x256xf32>
      %47 = tpu.matmul %44, %46, %cst_43 {dimension_numbers = #tpu.dot_dimension_numbers<[1], [0], [0], [1], [0, 0, 1, 1], [], []>} : vector<8x256xbf16>, vector<256x256xbf16>, vector<8x256xf32> -> vector<8x256xf32>
      %48 = arith.addf %41, %47 : vector<8x256xf32>
      %c0_44 = arith.constant 0 : index
      %c4 = arith.constant 4 : index
      %c0_45 = arith.constant 0 : index
      %49 = vector.load %arg5[%c0_44, %c4, %c0_45] : memref<2x14x256xf32, #tpu.memory_space<vmem>>, vector<1x8x256xf32>
      %50 = vector.shape_cast %49 : vector<1x8x256xf32> to vector<8x256xf32>
      %51 = arith.truncf %50 : vector<8x256xf32> to vector<8x256xbf16>
      %c4_46 = arith.constant 4 : index
      %c0_47 = arith.constant 0 : index
      %c0_48 = arith.constant 0 : index
      %52 = vector.load %arg3[%c4_46, %c0_47, %c0_48] : memref<14x256x256xbf16, #tpu.memory_space<vmem>>, vector<1x256x256xbf16>
      %53 = vector.shape_cast %52 : vector<1x256x256xbf16> to vector<256x256xbf16>
      %cst_49 = arith.constant dense<0.000000e+00> : vector<8x256xf32>
      %54 = tpu.matmul %51, %53, %cst_49 {dimension_numbers = #tpu.dot_dimension_numbers<[1], [0], [0], [1], [0, 0, 1, 1], [], []>} : vector<8x256xbf16>, vector<256x256xbf16>, vector<8x256xf32> -> vector<8x256xf32>
      %55 = arith.addf %48, %54 : vector<8x256xf32>
      %c0_50 = arith.constant 0 : index
      %c5 = arith.constant 5 : index
      %c0_51 = arith.constant 0 : index
      %56 = vector.load %arg5[%c0_50, %c5, %c0_51] : memref<2x14x256xf32, #tpu.memory_space<vmem>>, vector<1x8x256xf32>
      %57 = vector.shape_cast %56 : vector<1x8x256xf32> to vector<8x256xf32>
      %58 = arith.truncf %57 : vector<8x256xf32> to vector<8x256xbf16>
      %c5_52 = arith.constant 5 : index
      %c0_53 = arith.constant 0 : index
      %c0_54 = arith.constant 0 : index
      %59 = vector.load %arg3[%c5_52, %c0_53, %c0_54] : memref<14x256x256xbf16, #tpu.memory_space<vmem>>, vector<1x256x256xbf16>
      %60 = vector.shape_cast %59 : vector<1x256x256xbf16> to vector<256x256xbf16>
      %cst_55 = arith.constant dense<0.000000e+00> : vector<8x256xf32>
      %61 = tpu.matmul %58, %60, %cst_55 {dimension_numbers = #tpu.dot_dimension_numbers<[1], [0], [0], [1], [0, 0, 1, 1], [], []>} : vector<8x256xbf16>, vector<256x256xbf16>, vector<8x256xf32> -> vector<8x256xf32>
      %62 = arith.addf %55, %61 : vector<8x256xf32>
      %c0_56 = arith.constant 0 : index
      %c6 = arith.constant 6 : index
      %c0_57 = arith.constant 0 : index
      %63 = vector.load %arg5[%c0_56, %c6, %c0_57] : memref<2x14x256xf32, #tpu.memory_space<vmem>>, vector<1x8x256xf32>
      %64 = vector.shape_cast %63 : vector<1x8x256xf32> to vector<8x256xf32>
      %65 = arith.truncf %64 : vector<8x256xf32> to vector<8x256xbf16>
      %c6_58 = arith.constant 6 : index
      %c0_59 = arith.constant 0 : index
      %c0_60 = arith.constant 0 : index
      %66 = vector.load %arg3[%c6_58, %c0_59, %c0_60] : memref<14x256x256xbf16, #tpu.memory_space<vmem>>, vector<1x256x256xbf16>
      %67 = vector.shape_cast %66 : vector<1x256x256xbf16> to vector<256x256xbf16>
      %cst_61 = arith.constant dense<0.000000e+00> : vector<8x256xf32>
      %68 = tpu.matmul %65, %67, %cst_61 {dimension_numbers = #tpu.dot_dimension_numbers<[1], [0], [0], [1], [0, 0, 1, 1], [], []>} : vector<8x256xbf16>, vector<256x256xbf16>, vector<8x256xf32> -> vector<8x256xf32>
      %69 = arith.addf %62, %68 : vector<8x256xf32>
      %c1_62 = arith.constant 1 : index
      %c0_63 = arith.constant 0 : index
      %c0_64 = arith.constant 0 : index
      %70 = vector.load %arg5[%c1_62, %c0_63, %c0_64] : memref<2x14x256xf32, #tpu.memory_space<vmem>>, vector<1x8x256xf32>
      %71 = vector.shape_cast %70 : vector<1x8x256xf32> to vector<8x256xf32>
      %72 = arith.truncf %71 : vector<8x256xf32> to vector<8x256xbf16>
      %c7 = arith.constant 7 : index
      %c0_65 = arith.constant 0 : index
      %c0_66 = arith.constant 0 : index
      %73 = vector.load %arg3[%c7, %c0_65, %c0_66] : memref<14x256x256xbf16, #tpu.memory_space<vmem>>, vector<1x256x256xbf16>
      %74 = vector.shape_cast %73 : vector<1x256x256xbf16> to vector<256x256xbf16>
      %cst_67 = arith.constant dense<0.000000e+00> : vector<8x256xf32>
      %75 = tpu.matmul %72, %74, %cst_67 {dimension_numbers = #tpu.dot_dimension_numbers<[1], [0], [0], [1], [0, 0, 1, 1], [], []>} : vector<8x256xbf16>, vector<256x256xbf16>, vector<8x256xf32> -> vector<8x256xf32>
      %76 = arith.addf %69, %75 : vector<8x256xf32>
      %c1_68 = arith.constant 1 : index
      %c1_69 = arith.constant 1 : index
      %c0_70 = arith.constant 0 : index
      %77 = vector.load %arg5[%c1_68, %c1_69, %c0_70] : memref<2x14x256xf32, #tpu.memory_space<vmem>>, vector<1x8x256xf32>
      %78 = vector.shape_cast %77 : vector<1x8x256xf32> to vector<8x256xf32>
      %79 = arith.truncf %78 : vector<8x256xf32> to vector<8x256xbf16>
      %c8 = arith.constant 8 : index
      %c0_71 = arith.constant 0 : index
      %c0_72 = arith.constant 0 : index
      %80 = vector.load %arg3[%c8, %c0_71, %c0_72] : memref<14x256x256xbf16, #tpu.memory_space<vmem>>, vector<1x256x256xbf16>
      %81 = vector.shape_cast %80 : vector<1x256x256xbf16> to vector<256x256xbf16>
      %cst_73 = arith.constant dense<0.000000e+00> : vector<8x256xf32>
      %82 = tpu.matmul %79, %81, %cst_73 {dimension_numbers = #tpu.dot_dimension_numbers<[1], [0], [0], [1], [0, 0, 1, 1], [], []>} : vector<8x256xbf16>, vector<256x256xbf16>, vector<8x256xf32> -> vector<8x256xf32>
      %83 = arith.addf %76, %82 : vector<8x256xf32>
      %c1_74 = arith.constant 1 : index
      %c2_75 = arith.constant 2 : index
      %c0_76 = arith.constant 0 : index
      %84 = vector.load %arg5[%c1_74, %c2_75, %c0_76] : memref<2x14x256xf32, #tpu.memory_space<vmem>>, vector<1x8x256xf32>
      %85 = vector.shape_cast %84 : vector<1x8x256xf32> to vector<8x256xf32>
      %86 = arith.truncf %85 : vector<8x256xf32> to vector<8x256xbf16>
      %c9 = arith.constant 9 : index
      %c0_77 = arith.constant 0 : index
      %c0_78 = arith.constant 0 : index
      %87 = vector.load %arg3[%c9, %c0_77, %c0_78] : memref<14x256x256xbf16, #tpu.memory_space<vmem>>, vector<1x256x256xbf16>
      %88 = vector.shape_cast %87 : vector<1x256x256xbf16> to vector<256x256xbf16>
      %cst_79 = arith.constant dense<0.000000e+00> : vector<8x256xf32>
      %89 = tpu.matmul %86, %88, %cst_79 {dimension_numbers = #tpu.dot_dimension_numbers<[1], [0], [0], [1], [0, 0, 1, 1], [], []>} : vector<8x256xbf16>, vector<256x256xbf16>, vector<8x256xf32> -> vector<8x256xf32>
      %90 = arith.addf %83, %89 : vector<8x256xf32>
      %c1_80 = arith.constant 1 : index
      %c3_81 = arith.constant 3 : index
      %c0_82 = arith.constant 0 : index
      %91 = vector.load %arg5[%c1_80, %c3_81, %c0_82] : memref<2x14x256xf32, #tpu.memory_space<vmem>>, vector<1x8x256xf32>
      %92 = vector.shape_cast %91 : vector<1x8x256xf32> to vector<8x256xf32>
      %93 = arith.truncf %92 : vector<8x256xf32> to vector<8x256xbf16>
      %c10 = arith.constant 10 : index
      %c0_83 = arith.constant 0 : index
      %c0_84 = arith.constant 0 : index
      %94 = vector.load %arg3[%c10, %c0_83, %c0_84] : memref<14x256x256xbf16, #tpu.memory_space<vmem>>, vector<1x256x256xbf16>
      %95 = vector.shape_cast %94 : vector<1x256x256xbf16> to vector<256x256xbf16>
      %cst_85 = arith.constant dense<0.000000e+00> : vector<8x256xf32>
      %96 = tpu.matmul %93, %95, %cst_85 {dimension_numbers = #tpu.dot_dimension_numbers<[1], [0], [0], [1], [0, 0, 1, 1], [], []>} : vector<8x256xbf16>, vector<256x256xbf16>, vector<8x256xf32> -> vector<8x256xf32>
      %97 = arith.addf %90, %96 : vector<8x256xf32>
      %c1_86 = arith.constant 1 : index
      %c4_87 = arith.constant 4 : index
      %c0_88 = arith.constant 0 : index
      %98 = vector.load %arg5[%c1_86, %c4_87, %c0_88] : memref<2x14x256xf32, #tpu.memory_space<vmem>>, vector<1x8x256xf32>
      %99 = vector.shape_cast %98 : vector<1x8x256xf32> to vector<8x256xf32>
      %100 = arith.truncf %99 : vector<8x256xf32> to vector<8x256xbf16>
      %c11 = arith.constant 11 : index
      %c0_89 = arith.constant 0 : index
      %c0_90 = arith.constant 0 : index
      %101 = vector.load %arg3[%c11, %c0_89, %c0_90] : memref<14x256x256xbf16, #tpu.memory_space<vmem>>, vector<1x256x256xbf16>
      %102 = vector.shape_cast %101 : vector<1x256x256xbf16> to vector<256x256xbf16>
      %cst_91 = arith.constant dense<0.000000e+00> : vector<8x256xf32>
      %103 = tpu.matmul %100, %102, %cst_91 {dimension_numbers = #tpu.dot_dimension_numbers<[1], [0], [0], [1], [0, 0, 1, 1], [], []>} : vector<8x256xbf16>, vector<256x256xbf16>, vector<8x256xf32> -> vector<8x256xf32>
      %104 = arith.addf %97, %103 : vector<8x256xf32>
      %c1_92 = arith.constant 1 : index
      %c5_93 = arith.constant 5 : index
      %c0_94 = arith.constant 0 : index
      %105 = vector.load %arg5[%c1_92, %c5_93, %c0_94] : memref<2x14x256xf32, #tpu.memory_space<vmem>>, vector<1x8x256xf32>
      %106 = vector.shape_cast %105 : vector<1x8x256xf32> to vector<8x256xf32>
      %107 = arith.truncf %106 : vector<8x256xf32> to vector<8x256xbf16>
      %c12 = arith.constant 12 : index
      %c0_95 = arith.constant 0 : index
      %c0_96 = arith.constant 0 : index
      %108 = vector.load %arg3[%c12, %c0_95, %c0_96] : memref<14x256x256xbf16, #tpu.memory_space<vmem>>, vector<1x256x256xbf16>
      %109 = vector.shape_cast %108 : vector<1x256x256xbf16> to vector<256x256xbf16>
      %cst_97 = arith.constant dense<0.000000e+00> : vector<8x256xf32>
      %110 = tpu.matmul %107, %109, %cst_97 {dimension_numbers = #tpu.dot_dimension_numbers<[1], [0], [0], [1], [0, 0, 1, 1], [], []>} : vector<8x256xbf16>, vector<256x256xbf16>, vector<8x256xf32> -> vector<8x256xf32>
      %111 = arith.addf %104, %110 : vector<8x256xf32>
      %c1_98 = arith.constant 1 : index
      %c6_99 = arith.constant 6 : index
      %c0_100 = arith.constant 0 : index
      %112 = vector.load %arg5[%c1_98, %c6_99, %c0_100] : memref<2x14x256xf32, #tpu.memory_space<vmem>>, vector<1x8x256xf32>
      %113 = vector.shape_cast %112 : vector<1x8x256xf32> to vector<8x256xf32>
      %114 = arith.truncf %113 : vector<8x256xf32> to vector<8x256xbf16>
      %c13 = arith.constant 13 : index
      %c0_101 = arith.constant 0 : index
      %c0_102 = arith.constant 0 : index
      %115 = vector.load %arg3[%c13, %c0_101, %c0_102] : memref<14x256x256xbf16, #tpu.memory_space<vmem>>, vector<1x256x256xbf16>
      %116 = vector.shape_cast %115 : vector<1x256x256xbf16> to vector<256x256xbf16>
      %cst_103 = arith.constant dense<0.000000e+00> : vector<8x256xf32>
      %117 = tpu.matmul %114, %116, %cst_103 {dimension_numbers = #tpu.dot_dimension_numbers<[1], [0], [0], [1], [0, 0, 1, 1], [], []>} : vector<8x256xbf16>, vector<256x256xbf16>, vector<8x256xf32> -> vector<8x256xf32>
      %118 = arith.addf %111, %117 : vector<8x256xf32>
      %119 = arith.negf %118 : vector<8x256xf32>
      %120 = math.exp %119 : vector<8x256xf32>
      %cst_104 = arith.constant 1.000000e+00 : f32
      %121 = vector.broadcast %cst_104 : f32 to vector<8x256xf32>
      %122 = arith.addf %121, %120 : vector<8x256xf32>
      %123 = arith.divf %121, %122 : vector<8x256xf32>
      %c0_105 = arith.constant 0 : index
      %c0_106 = arith.constant 0 : index
      %c0_107 = arith.constant 0 : index
      %124 = vector.load %arg4[%c0_105, %c0_106, %c0_107] : memref<1x8x256xf32, #tpu.memory_space<vmem>>, vector<1x8x256xf32>
      %125 = vector.shape_cast %124 : vector<1x8x256xf32> to vector<8x256xf32>
      %126 = vector.shape_cast %123 : vector<8x256xf32> to vector<1x8x256xf32>
      tpu.vector_store %arg4[%c0_105, %c0_106, %c0_107], %126 {strides = array<i32>} : memref<1x8x256xf32, #tpu.memory_space<vmem>>, vector<1x8x256xf32>,
    } else {
    }
    return
  }
  func.func @transform_0(%arg0: i32, %arg1: i32) -> (i32, i32, i32) {
    %c1_i32 = arith.constant 1 : i32
    %0 = arith.muli %arg0, %c1_i32 : i32
    %1 = arith.addi %0, %arg1 : i32
    %c0_i32 = arith.constant 0 : i32
    %c0_i32_0 = arith.constant 0 : i32
    %c0_i32_1 = arith.constant 0 : i32
    return %1, %c0_i32, %c0_i32_0 : i32, i32, i32
  }
  func.func @transform_1(%arg0: i32, %arg1: i32) -> (i32, i32, i32) {
    %c0_i32 = arith.constant 0 : i32
    %c0_i32_0 = arith.constant 0 : i32
    %c0_i32_1 = arith.constant 0 : i32
    %c0_i32_2 = arith.constant 0 : i32
    return %c0_i32, %c0_i32_0, %c0_i32_1 : i32, i32, i32
  }
  func.func @transform_2(%arg0: i32, %arg1: i32) -> (i32, i32, i32) {
    %c0_i32 = arith.constant 0 : i32
    %c0_i32_0 = arith.constant 0 : i32
    %c0_i32_1 = arith.constant 0 : i32
    return %arg0, %c0_i32, %c0_i32_0 : i32, i32, i32
  }
}

</mosaic_0001>

<llo_original>
// kernel: spatial_attention_3d.1
$region0: #{spatial_attention_3d.1}
  #allocation0 [shape = 'u32[]', space=smem, size = 0x4, offset = 0x4, fixed_abs, tag = 'smem constant byte address 0x4 - core index']
  #allocation1 [shape = 'u32[144,128]{1,0:T(1,128)}', space=vmem, size = 0x12000, scoped, tag = 'internal scratch']
  #allocation2 [shape = 'f32[2,14,256]{2,1,0:T(8,128)}', space=vmem, size = 0x8000, scoped, tag = 'scratch operand']
  #allocation3 [shape = 'f32[8,256]{1,0:T(8,128)}', space=vmem, size = 0x2000, scoped, tag = 'scratch operand']
  #allocation4 [shape = 'f32[8,256]{1,0:T(8,128)}', space=vmem, size = 0x2000, scoped, tag = 'scratch operand']
  %s0 = inlined_call_operand.vmem [shape: f32[8,8,256], index: 0, kind: input, shape index: {}]
  %s1 = inlined_call_operand.vmem [shape: bf16[14,256,256], index: 1, kind: input, shape index: {}]
  %s2 = inlined_call_operand.vmem [shape: f32[2,8,256], index: 2, kind: output, shape index: {}]
  %s3 = sld [smem:[#allocation0]]
  $region53: #{spatial_attention_3d.1} parent=0
    _
  %s5 = ssub.s32 1, %s3
  %s6 = scalar_select 0, %s5, %s3
  loop: start=0, step=1, limit=4
  $region2: #{spatial_attention_3d.1} parent=0 // loop_pre_header
    _
  $region3: #{spatial_attention_3d.1} parent=0 // loop_header
    %s8 = sphi 0, %s12
    %p9 = scmp.ge.s32.totalorder %s8, 4
    %s15 = sphi 0, %s27
    %s16 = sphi 0, %s23
    %s17 = sphi 0, %s15
    %s18 = sphi 0, %s16
    %s19 = sphi 0, %s17
    %s20 = sphi 0, %s18
    %s32 = sphi 0, %s34
    %s35 = sphi 0, %s32
    %s36 = sphi 0, %s35
    %s52 = sphi 0, %s36
    %s56 = sphi 0, %s56
    %s58 = sphi 0, %s56
    %s59 = sphi 0, %s58
    %s73 = sphi 0, %s59
    %s79 = sphi 0, %s81
    %s82 = sphi 0, %s79
    %s83 = sphi 0, %s82
    %s99 = sphi 0, %s83
  $region4: #{spatial_attention_3d.1} parent=0 // loop_header_branch
    %11 = sbr.rel (%p9) target = $region8
  $region5: #{spatial_attention_3d.1} parent=0 // loop_body
    %s13 = ssub.s32 %s8, 1
    %s14 = ssub.s32 %s8, 2
    %s21 = sadd.s32 1, %s16
    %p22 = scmp.ge.s32.totalorder %s21, 1
    %s23 = scalar_select %p22, 0, %s21
    %s24 = sadd.s32 1, %s15
    %s25 = scalar_select %p22, %s24, %s15
    %p26 = scmp.ge.s32.totalorder %s25, 2
    %s27 = scalar_select %p26, 0, %s25
    %s28 = sadd.s32 %s15, %s16
    %s29 = sadd.s32 %s27, %s23
    %s30 = ssub.s32 %s28, %s29
    %p31 = scmp.eq.s32.totalorder %s30, 0
    %s33 = sadd.s32 %s32, 1
    %s34 = scalar_select %p31, %s32, %s33
    %p37 = pneg %p31
    %p38 = scmp.eq.s32.totalorder %s8, 1
    %p39 = por %p37, %p38
    %p40 = scmp.ne.s32.totalorder %s32, %s35
    %p41 = scmp.eq.s32.totalorder %s8, 0
    %p42 = por %p40, %p41
    %p43 = scmp.ne.s32.totalorder %s32, %s35
    %p44 = scmp.eq.s32.totalorder %s13, 1
    %p45 = por %p43, %p44
    %p46 = scmp.ne.s32.totalorder %s35, %s36
    %p47 = scmp.eq.s32.totalorder %s13, 0
    %p48 = por %p46, %p47
    %p49 = scmp.ne.s32.totalorder %s35, %s36
    %p50 = scmp.eq.s32.totalorder %s14, 1
    %p51 = por %p49, %p50
    %p53 = scmp.ne.s32.totalorder %s36, %s52
    %p54 = scmp.eq.s32.totalorder %s14, 0
    %p55 = por %p53, %p54
    %s57 = sadd.s32 %s56, 1
    %p60 = scmp.eq.s32.totalorder %s8, 1
    %p61 = scmp.ne.s32.totalorder %s56, %s58
    %p62 = scmp.eq.s32.totalorder %s8, 0
    %p63 = por %p61, %p62
    %p64 = scmp.ne.s32.totalorder %s56, %s58
    %p65 = scmp.eq.s32.totalorder %s13, 1
    %p66 = por %p64, %p65
    %p67 = scmp.ne.s32.totalorder %s58, %s59
    %p68 = scmp.eq.s32.totalorder %s13, 0
    %p69 = por %p67, %p68
    %p70 = scmp.ne.s32.totalorder %s58, %s59
    %p71 = scmp.eq.s32.totalorder %s14, 1
    %p72 = por %p70, %p71
    %p74 = scmp.ne.s32.totalorder %s59, %s73
    %p75 = scmp.eq.s32.totalorder %s14, 0
    %p76 = por %p74, %p75
    %s77 = ssub.s32 %s15, %s27
    %p78 = scmp.eq.s32.totalorder %s77, 0
    %s80 = sadd.s32 %s79, 1
    %s81 = scalar_select %p78, %s79, %s80
    %p84 = pneg %p78
    %p85 = scmp.eq.s32.totalorder %s8, 1
    %p86 = por %p84, %p85
    %p87 = scmp.ne.s32.totalorder %s79, %s82
    %p88 = scmp.eq.s32.totalorder %s8, 0
    %p89 = por %p87, %p88
    %p90 = scmp.ne.s32.totalorder %s79, %s82
    %p91 = scmp.eq.s32.totalorder %s13, 1
    %p92 = por %p90, %p91
    %p93 = scmp.ne.s32.totalorder %s82, %s83
    %p94 = scmp.eq.s32.totalorder %s13, 0
    %p95 = por %p93, %p94
    %p96 = scmp.ne.s32.totalorder %s82, %s83
    %p97 = scmp.eq.s32.totalorder %s14, 1
    %p98 = por %p96, %p97
    %p100 = scmp.ne.s32.totalorder %s83, %s99
    %p101 = scmp.eq.s32.totalorder %s14, 0
    %p102 = por %p100, %p101
    %p103 = scmp.le.s32.totalorder 1, %s8
    %p104 = scmp.lt.s32.totalorder %s8, 3
    %p105 = pnand %p103, %p104
    %p106 = pneg %p105
    // Predicated region
    $region9: #{spatial_attention_3d.1} parent=5 // pred_check
      _
    $region10: #{spatial_attention_3d.1} parent=5 // pred_check_branch
      %108 = sbr.rel (%p105) target = $region12
    $region11: #{spatial_attention_3d.1} parent=5 // pred_region
      %s109 = ssub.s32 %s8, 1
      // Predicated region
      $region13: #{spatial_attention_3d.1} parent=11 // pred_check
        %p110 = pneg %p69
      $region14: #{spatial_attention_3d.1} parent=11 // pred_check_branch
        %112 = sbr.rel (%p110) target = $region16
      $region15: #{spatial_attention_3d.1} parent=11 // pred_region
        _
      $region16: #{spatial_attention_3d.1} parent=11 // pred_fallthru
        _
    $region12: #{spatial_attention_3d.1} parent=5 // pred_fallthru
      _
    %p113 = scmp.lt.s32.totalorder %s8, 2
    // Predicated region
    $region17: #{spatial_attention_3d.1} parent=5 // pred_check
      %p114 = pneg %p113
    $region18: #{spatial_attention_3d.1} parent=5 // pred_check_branch
      %116 = sbr.rel (%p114) target = $region20
    $region19: #{spatial_attention_3d.1} parent=5 // pred_region
      // Predicated region
      $region21: #{spatial_attention_3d.1} parent=19 // pred_check
        %p117 = pneg %p42
      $region22: #{spatial_attention_3d.1} parent=19 // pred_check_branch
        %119 = sbr.rel (%p117) target = $region24
      $region23: #{spatial_attention_3d.1} parent=19 // pred_region
        %s120 = sadd.s32 %s15, %s16
        %s121 = smul.u32 4, %s120
        %p122 = scmp.lt.s32.totalorder %s121, 7
        %s123 = scalar_select %p122, %s121, 7
        %s124 = smul.addr %s123, 2
        %s125 = smul.addr %s124, 8
        %s126 = scalar_lea.vmem %s0, %s125
        %s127 = sadd.s32 %s15, %s16
        %s128 = smul.u32 4, %s127
      $region24: #{spatial_attention_3d.1} parent=19 // pred_fallthru
        _
    $region20: #{spatial_attention_3d.1} parent=5 // pred_fallthru
      _
    %p129 = scmp.le.s32.totalorder 1, %s8
    %p130 = scmp.lt.s32.totalorder %s8, 3
    %p131 = pnand %p129, %p130
    %p132 = pneg %p131
    // Predicated region
    $region25: #{spatial_attention_3d.1} parent=5 // pred_check
      _
    $region26: #{spatial_attention_3d.1} parent=5 // pred_check_branch
      %134 = sbr.rel (%p131) target = $region28
    $region27: #{spatial_attention_3d.1} parent=5 // pred_region
      %s135 = ssub.s32 %s8, 1
      %s136 = sadd.s32 %s17, %s18
      %s137 = smul.u32 4, %s136
      %p138 = scmp.lt.s32.totalorder %s137, 7
      %s139 = scalar_select %p138, %s137, 7
      %s140 = smul.addr %s139, 2
      %s141 = smul.addr %s140, 8
      %s142 = scalar_lea.vmem %s0, %s141
      %p143 = pneg %p48
      %p144 = pneg %p45
      %p145 = pneg %p69
      %p146 = pneg %p66
      %p147 = pneg %p95
      %p148 = pneg %p92
      %p149 = scmp.lt.s32.totalorder %s17, 1
      %s150 = scalar_select %p149, %s17, 1
      %s151 = smul.addr %s150, 2
      %s152 = smul.addr %s151, 8
      %s153 = scalar_lea.vmem %s2, %s152
      %s154 = sadd.s32 %s17, %s18
      %s155 = smul.u32 4, %s154
      %p156 = scmp.lt.s32.totalorder %s155, 7
      %s157 = scalar_select %p156, %s155, 7
      %s158 = smul.addr %s157, 2
      %s159 = smul.addr %s158, 8
      %s160 = scalar_lea.vmem %s0, %s159
      %s161 = sadd.s32 %s17, %s18
      %s162 = smul.u32 4, %s161
      %p163 = scmp.lt.s32.totalorder %s17, 1
      %s164 = scalar_select %p163, %s17, 1
      %s165 = smul.addr %s164, 2
      %s166 = smul.addr %s165, 8
      %s167 = scalar_lea.vmem %s2, %s166
      %v168 = vld [vmem:[%s160] sm:$0xff]
      %v169 = vld [vmem:[%s160 + $0x8] sm:$0xff]
      %v170 = vld [vmem:[%s160 + $0x10] sm:$0xff]
      %v171 = vld [vmem:[%s160 + $0x18] sm:$0xff]
      %v172 = vld [vmem:[%s160 + $0x20] sm:$0xff]
      %v173 = vld [vmem:[%s160 + $0x28] sm:$0xff]
      %v174 = vld [vmem:[%s160 + $0x30] sm:$0xff]
      %v175 = vld [vmem:[%s160 + $0x38] sm:$0xff]
      %v176 = vadd.f32 %v168, %v170
      %v177 = vadd.f32 %v176, %v172
      %v178 = vadd.f32 %v177, %v174
      %v179 = vadd.f32 %v169, %v171
      %v180 = vadd.f32 %v179, %v173
      %v181 = vadd.f32 %v180, %v175
      %v182 = vmax.f32 %v168, %v172
      %v183 = vmax.f32 %v170, %v174
      %v184 = vmax.f32 %v182, %v183
      %v185 = vmax.f32 %v169, %v173
      %v186 = vmax.f32 %v171, %v175
      %v187 = vmax.f32 %v185, %v186
      %p188 = scmp.eq.s32.totalorder %s18, 0
      // Predicated region
      $region29: #{spatial_attention_3d.1} parent=27 // pred_check
        %p189 = pneg %p188
      $region30: #{spatial_attention_3d.1} parent=27 // pred_check_branch
        %191 = sbr.rel (%p189) target = $region32
      $region31: #{spatial_attention_3d.1} parent=27 // pred_region
        %192 = vst [vmem:[#allocation2] sm:$0x7] 0.0
        %193 = vst [vmem:[#allocation2 + $0x8] sm:$0x7] 0.0
        %194 = vst [vmem:[#allocation2 + $0x20] sm:$0x7] 0.0
        %195 = vst [vmem:[#allocation2 + $0x28] sm:$0x7] 0.0
        %196 = vst [vmem:[#allocation2 + $0x10] sm:$0x38] 0.0
        %197 = vst [vmem:[#allocation2 + $0x18] sm:$0x38] 0.0
        %198 = vst [vmem:[#allocation2 + $0x30] sm:$0x38] 0.0
        %199 = vst [vmem:[#allocation2 + $0x38] sm:$0x38] 0.0
        %200 = vst [vmem:[#allocation3] sm:$0xff] %v178
        %201 = vst [vmem:[#allocation3 + $0x8] sm:$0xff] %v181
        %202 = vst [vmem:[#allocation4] sm:$0xff] %v184
        %203 = vst [vmem:[#allocation4 + $0x8] sm:$0xff] %v187
      $region32: #{spatial_attention_3d.1} parent=27 // pred_fallthru
        _
      %p204 = scmp.gt.s32.totalorder %s18, 0
      // Predicated region
      $region33: #{spatial_attention_3d.1} parent=27 // pred_check
        %p205 = pneg %p204
      $region34: #{spatial_attention_3d.1} parent=27 // pred_check_branch
        %207 = sbr.rel (%p205) target = $region36
      $region35: #{spatial_attention_3d.1} parent=27 // pred_region
        %v208 = vld [vmem:[#allocation3] sm:$0xff]
        %v209 = vld [vmem:[#allocation3 + $0x8] sm:$0xff]
        %v210 = vadd.f32 %v208, %v178
        %v211 = vadd.f32 %v209, %v181
        %212 = vst [vmem:[#allocation3] sm:$0xff] %v210
        %213 = vst [vmem:[#allocation3 + $0x8] sm:$0xff] %v211
        %v214 = vld [vmem:[#allocation4] sm:$0xff]
        %v215 = vld [vmem:[#allocation4 + $0x8] sm:$0xff]
        %v216 = vmax.f32 %v214, %v184
        %v217 = vmax.f32 %v215, %v187
        %218 = vst [vmem:[#allocation4] sm:$0xff] %v216
        %219 = vst [vmem:[#allocation4 + $0x8] sm:$0xff] %v217
      $region36: #{spatial_attention_3d.1} parent=27 // pred_fallthru
        _
      // Predicated region
      $region37: #{spatial_attention_3d.1} parent=27 // pred_check
        %p220 = pneg %p188
      $region38: #{spatial_attention_3d.1} parent=27 // pred_check_branch
        %222 = sbr.rel (%p220) target = $region40
      $region39: #{spatial_attention_3d.1} parent=27 // pred_region
        %v223 = vld [vmem:[#allocation3] sm:$0xff]
        %v224 = vld [vmem:[#allocation3 + $0x8] sm:$0xff]
        %v225 = vmul.f32 %v223, 0.25
        %v226 = vmul.f32 %v224, 0.25
        %v229 = vrot.slane %v225, 5
        %v230 = vrot.slane %v226, 5
        %233 = vst [vmem:[#allocation2] sm:$0xf8] %v229
        %234 = vst [vmem:[#allocation2 + $0x8] sm:$0xf8] %v230
        %235 = vst [vmem:[#allocation2 + $0x10] sm:$0x7] %v229
        %236 = vst [vmem:[#allocation2 + $0x18] sm:$0x7] %v230
        %v237 = vld [vmem:[#allocation4] sm:$0xff]
        %v238 = vld [vmem:[#allocation4 + $0x8] sm:$0xff]
        %v241 = vrot.slane %v237, 5
        %v242 = vrot.slane %v238, 5
        %s245 = scalar_lea.vmem [#allocation2], 32
        %246 = vst [vmem:[%s245] sm:$0xf8] %v241
        %247 = vst [vmem:[%s245 + $0x8] sm:$0xf8] %v242
        %248 = vst [vmem:[%s245 + $0x10] sm:$0x7] %v241
        %249 = vst [vmem:[%s245 + $0x18] sm:$0x7] %v242
        %v250 = vld [vmem:[#allocation2] sm:$0xff]
        %v251 = vld [vmem:[#allocation2 + $0x8] sm:$0xff]
        %v252 = vpack.c.bf16 %v250, %v250
        %v253 = vpack.c.bf16 %v251, %v251
        %v254 = vld [vmem:[%s1] sm:$0xff]
        %v255 = vld [vmem:[%s1 + $0x8] sm:$0xff]
        %v256 = vld [vmem:[%s1 + $0x10] sm:$0xff]
        %v257 = vld [vmem:[%s1 + $0x18] sm:$0xff]
        %v258 = vld [vmem:[%s1 + $0x20] sm:$0xff]
        %v259 = vld [vmem:[%s1 + $0x28] sm:$0xff]
        %v260 = vld [vmem:[%s1 + $0x30] sm:$0xff]
        %v261 = vld [vmem:[%s1 + $0x38] sm:$0xff]
        %v262 = vld [vmem:[%s1 + $0x40] sm:$0xff]
        %v263 = vld [vmem:[%s1 + $0x48] sm:$0xff]
        %v264 = vld [vmem:[%s1 + $0x50] sm:$0xff]
        %v265 = vld [vmem:[%s1 + $0x58] sm:$0xff]
        %v266 = vld [vmem:[%s1 + $0x60] sm:$0xff]
        %v267 = vld [vmem:[%s1 + $0x68] sm:$0xff]
        %v268 = vld [vmem:[%s1 + $0x70] sm:$0xff]
        %v269 = vld [vmem:[%s1 + $0x78] sm:$0xff]
        %v270 = vld [vmem:[%s1 + $0x80] sm:$0xff]
        %v271 = vld [vmem:[%s1 + $0x88] sm:$0xff]
        %v272 = vld [vmem:[%s1 + $0x90] sm:$0xff]
        %v273 = vld [vmem:[%s1 + $0x98] sm:$0xff]
        %v274 = vld [vmem:[%s1 + $0xa0] sm:$0xff]
        %v275 = vld [vmem:[%s1 + $0xa8] sm:$0xff]
        %v276 = vld [vmem:[%s1 + $0xb0] sm:$0xff]
        %v277 = vld [vmem:[%s1 + $0xb8] sm:$0xff]
        %v278 = vld [vmem:[%s1 + $0xc0] sm:$0xff]
        %v279 = vld [vmem:[%s1 + $0xc8] sm:$0xff]
        %v280 = vld [vmem:[%s1 + $0xd0] sm:$0xff]
        %v281 = vld [vmem:[%s1 + $0xd8] sm:$0xff]
        %v282 = vld [vmem:[%s1 + $0xe0] sm:$0xff]
        %v283 = vld [vmem:[%s1 + $0xe8] sm:$0xff]
        %v284 = vld [vmem:[%s1 + $0xf0] sm:$0xff]
        %v285 = vld [vmem:[%s1 + $0xf8] sm:$0xff]
        %v286 = vld [vmem:[#allocation2] sm:$0xfe]
        %v287 = vld [vmem:[#allocation2 + $0x8] sm:$0xfe]
        %v288 = vld [vmem:[#allocation2 + $0x10] sm:$0x1]
        %v289 = vld [vmem:[#allocation2 + $0x18] sm:$0x1]
        %v290 = vpack.c.bf16 %v288, %v286
        %v291 = vpack.c.bf16 %v289, %v287
        %s292 = scalar_lea.vmem %s1, 256
        %v293 = vld [vmem:[%s292] sm:$0xff]
        %v294 = vld [vmem:[%s292 + $0x8] sm:$0xff]
        %v295 = vld [vmem:[%s292 + $0x10] sm:$0xff]
        %v296 = vld [vmem:[%s292 + $0x18] sm:$0xff]
        %v297 = vld [vmem:[%s292 + $0x20] sm:$0xff]
        %v298 = vld [vmem:[%s292 + $0x28] sm:$0xff]
        %v299 = vld [vmem:[%s292 + $0x30] sm:$0xff]
        %v300 = vld [vmem:[%s292 + $0x38] sm:$0xff]
        %v301 = vld [vmem:[%s292 + $0x40] sm:$0xff]
        %v302 = vld [vmem:[%s292 + $0x48] sm:$0xff]
        %v303 = vld [vmem:[%s292 + $0x50] sm:$0xff]
        %v304 = vld [vmem:[%s292 + $0x58] sm:$0xff]
        %v305 = vld [vmem:[%s292 + $0x60] sm:$0xff]
        %v306 = vld [vmem:[%s292 + $0x68] sm:$0xff]
        %v307 = vld [vmem:[%s292 + $0x70] sm:$0xff]
        %v308 = vld [vmem:[%s292 + $0x78] sm:$0xff]
        %v309 = vld [vmem:[%s292 + $0x80] sm:$0xff]
        %v310 = vld [vmem:[%s292 + $0x88] sm:$0xff]
        %v311 = vld [vmem:[%s292 + $0x90] sm:$0xff]
        %v312 = vld [vmem:[%s292 + $0x98] sm:$0xff]
        %v313 = vld [vmem:[%s292 + $0xa0] sm:$0xff]
        %v314 = vld [vmem:[%s292 + $0xa8] sm:$0xff]
        %v315 = vld [vmem:[%s292 + $0xb0] sm:$0xff]
        %v316 = vld [vmem:[%s292 + $0xb8] sm:$0xff]
        %v317 = vld [vmem:[%s292 + $0xc0] sm:$0xff]
        %v318 = vld [vmem:[%s292 + $0xc8] sm:$0xff]
        %v319 = vld [vmem:[%s292 + $0xd0] sm:$0xff]
        %v320 = vld [vmem:[%s292 + $0xd8] sm:$0xff]
        %v321 = vld [vmem:[%s292 + $0xe0] sm:$0xff]
        %v322 = vld [vmem:[%s292 + $0xe8] sm:$0xff]
        %v323 = vld [vmem:[%s292 + $0xf0] sm:$0xff]
        %v324 = vld [vmem:[%s292 + $0xf8] sm:$0xff]
        %v326 = vshrl.u32 %v290, 16
        %v328 = vshll.u32 %v290, 16
        %v330 = vrot.slane %v328, 1
        %v331 = vor.u32 %v326, %v330
        %v333 = vshrl.u32 %v291, 16
        %v335 = vshll.u32 %v291, 16
        %v337 = vrot.slane %v335, 1
        %v338 = vor.u32 %v333, %v337
        %v373 = vunpack.c.l.b16 %v293
        %v374 = vunpack.c.h.b16 %v293
        %v375 = vunpack.c.l.b16 %v294
        %v376 = vunpack.c.h.b16 %v294
        %v377 = vunpack.c.l.b16 %v295
        %v378 = vunpack.c.h.b16 %v295
        %v379 = vunpack.c.l.b16 %v296
        %v380 = vunpack.c.h.b16 %v296
        %v381 = vunpack.c.l.b16 %v297
        %v382 = vunpack.c.h.b16 %v297
        %v383 = vunpack.c.l.b16 %v298
        %v384 = vunpack.c.h.b16 %v298
        %v385 = vunpack.c.l.b16 %v299
        %v386 = vunpack.c.h.b16 %v299
        %v387 = vunpack.c.l.b16 %v300
        %v388 = vunpack.c.h.b16 %v300
        %v389 = vunpack.c.l.b16 %v301
        %v390 = vunpack.c.h.b16 %v301
        %v391 = vunpack.c.l.b16 %v302
        %v392 = vunpack.c.h.b16 %v302
        %v393 = vunpack.c.l.b16 %v303
        %v394 = vunpack.c.h.b16 %v303
        %v395 = vunpack.c.l.b16 %v304
        %v396 = vunpack.c.h.b16 %v304
        %v397 = vunpack.c.l.b16 %v305
        %v398 = vunpack.c.h.b16 %v305
        %v399 = vunpack.c.l.b16 %v306
        %v400 = vunpack.c.h.b16 %v306
        %v401 = vunpack.c.l.b16 %v307
        %v402 = vunpack.c.h.b16 %v307
        %v403 = vunpack.c.l.b16 %v308
        %v404 = vunpack.c.h.b16 %v308
        %v405 = vunpack.c.l.b16 %v309
        %v406 = vunpack.c.h.b16 %v309
        %v407 = vunpack.c.l.b16 %v310
        %v408 = vunpack.c.h.b16 %v310
        %v409 = vunpack.c.l.b16 %v311
        %v410 = vunpack.c.h.b16 %v311
        %v411 = vunpack.c.l.b16 %v312
        %v412 = vunpack.c.h.b16 %v312
        %v413 = vunpack.c.l.b16 %v313
        %v414 = vunpack.c.h.b16 %v313
        %v415 = vunpack.c.l.b16 %v314
        %v416 = vunpack.c.h.b16 %v314
        %v417 = vunpack.c.l.b16 %v315
        %v418 = vunpack.c.h.b16 %v315
        %v419 = vunpack.c.l.b16 %v316
        %v420 = vunpack.c.h.b16 %v316
        %v421 = vunpack.c.l.b16 %v317
        %v422 = vunpack.c.h.b16 %v317
        %v423 = vunpack.c.l.b16 %v318
        %v424 = vunpack.c.h.b16 %v318
        %v425 = vunpack.c.l.b16 %v319
        %v426 = vunpack.c.h.b16 %v319
        %v427 = vunpack.c.l.b16 %v320
        %v428 = vunpack.c.h.b16 %v320
        %v429 = vunpack.c.l.b16 %v321
        %v430 = vunpack.c.h.b16 %v321
        %v431 = vunpack.c.l.b16 %v322
        %v432 = vunpack.c.h.b16 %v322
        %v433 = vunpack.c.l.b16 %v323
        %v434 = vunpack.c.h.b16 %v323
        %v435 = vunpack.c.l.b16 %v324
        %v436 = vunpack.c.h.b16 %v324
        %v437 = vpack.c.b16 %v375, %v373
        %v438 = vpack.c.b16 %v376, %v374
        %v439 = vpack.c.b16 %v379, %v377
        %v440 = vpack.c.b16 %v380, %v378
        %v441 = vpack.c.b16 %v383, %v381
        %v442 = vpack.c.b16 %v384, %v382
        %v443 = vpack.c.b16 %v387, %v385
        %v444 = vpack.c.b16 %v388, %v386
        %v445 = vpack.c.b16 %v391, %v389
        %v446 = vpack.c.b16 %v392, %v390
        %v447 = vpack.c.b16 %v395, %v393
        %v448 = vpack.c.b16 %v396, %v394
        %v449 = vpack.c.b16 %v399, %v397
        %v450 = vpack.c.b16 %v400, %v398
        %v451 = vpack.c.b16 %v403, %v401
        %v452 = vpack.c.b16 %v404, %v402
        %v453 = vpack.c.b16 %v407, %v405
        %v454 = vpack.c.b16 %v408, %v406
        %v455 = vpack.c.b16 %v411, %v409
        %v456 = vpack.c.b16 %v412, %v410
        %v457 = vpack.c.b16 %v415, %v413
        %v458 = vpack.c.b16 %v416, %v414
        %v459 = vpack.c.b16 %v419, %v417
        %v460 = vpack.c.b16 %v420, %v418
        %v461 = vpack.c.b16 %v423, %v421
        %v462 = vpack.c.b16 %v424, %v422
        %v463 = vpack.c.b16 %v427, %v425
        %v464 = vpack.c.b16 %v428, %v426
        %v465 = vpack.c.b16 %v431, %v429
        %v466 = vpack.c.b16 %v432, %v430
        %v467 = vpack.c.b16 %v435, %v433
        %v468 = vpack.c.b16 %v436, %v434
        %501 = vmatprep.subr.bf16.mxu0 %v452
        %502 = vmatpush1.bf16.msra.mxu0 %v451
        %503 = vmatprep.subr.bf16.mxu0 %v450
        %504 = vmatpush1.bf16.msra.mxu0 %v449
        %505 = vmatprep.subr.bf16.mxu0 %v448
        %506 = vmatpush1.bf16.msra.mxu0 %v447
        %507 = vmatprep.subr.bf16.mxu0 %v446
        %508 = vmatpush1.bf16.msra.mxu0 %v445
        %509 = vmatprep.subr.bf16.mxu0 %v444
        %510 = vmatpush1.bf16.msra.mxu0 %v443
        %511 = vmatprep.subr.bf16.mxu0 %v442
        %512 = vmatpush1.bf16.msra.mxu0 %v441
        %513 = vmatprep.subr.bf16.mxu0 %v440
        %514 = vmatpush1.bf16.msra.mxu0 %v439
        %515 = vmatprep.subr.bf16.mxu0 %v438
        %516 = vmatpush1.bf16.msra.mxu0 %v437
        %517 = vmatprep.subr.bf16.mxu0 %v468
        %518 = vmatpush2.bf16.msra.mxu0 %v467
        %519 = vmatprep.subr.bf16.mxu0 %v466
        %520 = vmatpush2.bf16.msra.mxu0 %v465
        %521 = vmatprep.subr.bf16.mxu0 %v464
        %522 = vmatpush2.bf16.msra.mxu0 %v463
        %523 = vmatprep.subr.bf16.mxu0 %v462
        %524 = vmatpush2.bf16.msra.mxu0 %v461
        %525 = vmatprep.subr.bf16.mxu0 %v460
        %526 = vmatpush2.bf16.msra.mxu0 %v459
        %527 = vmatprep.subr.bf16.mxu0 %v458
        %528 = vmatpush2.bf16.msra.mxu0 %v457
        %529 = vmatprep.subr.bf16.mxu0 %v456
        %530 = vmatpush2.bf16.msra.mxu0 %v455
        %531 = vmatprep.subr.bf16.mxu0 %v454
        %532 = vmatpush2.bf16.msra.mxu0 %v453
        %533 = vmatprep.mubr.bf16.mxu0 %v338
        %534 = vmatmul.mubr.bf16.gmra.mxu0 %v331
        %v535 = vpop.f32.mrf.mxu0
        %v536 = vadd.f32 0.0, %v535
        %v537 = vpop.f32.mrf.mxu0
        %v538 = vadd.f32 0.0, %v537
        %v539 = vpop.f32.mrf.mxu0
        %v540 = vpop.f32.mrf.mxu0
        %541 = vdwg.mxu0
        %v574 = vunpack.c.l.b16 %v254
        %v575 = vunpack.c.h.b16 %v254
        %v576 = vunpack.c.l.b16 %v255
        %v577 = vunpack.c.h.b16 %v255
        %v578 = vunpack.c.l.b16 %v256
        %v579 = vunpack.c.h.b16 %v256
        %v580 = vunpack.c.l.b16 %v257
        %v581 = vunpack.c.h.b16 %v257
        %v582 = vunpack.c.l.b16 %v258
        %v583 = vunpack.c.h.b16 %v258
        %v584 = vunpack.c.l.b16 %v259
        %v585 = vunpack.c.h.b16 %v259
        %v586 = vunpack.c.l.b16 %v260
        %v587 = vunpack.c.h.b16 %v260
        %v588 = vunpack.c.l.b16 %v261
        %v589 = vunpack.c.h.b16 %v261
        %v590 = vunpack.c.l.b16 %v262
        %v591 = vunpack.c.h.b16 %v262
        %v592 = vunpack.c.l.b16 %v263
        %v593 = vunpack.c.h.b16 %v263
        %v594 = vunpack.c.l.b16 %v264
        %v595 = vunpack.c.h.b16 %v264
        %v596 = vunpack.c.l.b16 %v265
        %v597 = vunpack.c.h.b16 %v265
        %v598 = vunpack.c.l.b16 %v266
        %v599 = vunpack.c.h.b16 %v266
        %v600 = vunpack.c.l.b16 %v267
        %v601 = vunpack.c.h.b16 %v267
        %v602 = vunpack.c.l.b16 %v268
        %v603 = vunpack.c.h.b16 %v268
        %v604 = vunpack.c.l.b16 %v269
        %v605 = vunpack.c.h.b16 %v269
        %v606 = vunpack.c.l.b16 %v270
        %v607 = vunpack.c.h.b16 %v270
        %v608 = vunpack.c.l.b16 %v271
        %v609 = vunpack.c.h.b16 %v271
        %v610 = vunpack.c.l.b16 %v272
        %v611 = vunpack.c.h.b16 %v272
        %v612 = vunpack.c.l.b16 %v273
        %v613 = vunpack.c.h.b16 %v273
        %v614 = vunpack.c.l.b16 %v274
        %v615 = vunpack.c.h.b16 %v274
        %v616 = vunpack.c.l.b16 %v275
        %v617 = vunpack.c.h.b16 %v275
        %v618 = vunpack.c.l.b16 %v276
        %v619 = vunpack.c.h.b16 %v276
        %v620 = vunpack.c.l.b16 %v277
        %v621 = vunpack.c.h.b16 %v277
        %v622 = vunpack.c.l.b16 %v278
        %v623 = vunpack.c.h.b16 %v278
        %v624 = vunpack.c.l.b16 %v279
        %v625 = vunpack.c.h.b16 %v279
        %v626 = vunpack.c.l.b16 %v280
        %v627 = vunpack.c.h.b16 %v280
        %v628 = vunpack.c.l.b16 %v281
        %v629 = vunpack.c.h.b16 %v281
        %v630 = vunpack.c.l.b16 %v282
        %v631 = vunpack.c.h.b16 %v282
        %v632 = vunpack.c.l.b16 %v283
        %v633 = vunpack.c.h.b16 %v283
        %v634 = vunpack.c.l.b16 %v284
        %v635 = vunpack.c.h.b16 %v284
        %v636 = vunpack.c.l.b16 %v285
        %v637 = vunpack.c.h.b16 %v285
        %v638 = vpack.c.b16 %v576, %v574
        %v639 = vpack.c.b16 %v577, %v575
        %v640 = vpack.c.b16 %v580, %v578
        %v641 = vpack.c.b16 %v581, %v579
        %v642 = vpack.c.b16 %v584, %v582
        %v643 = vpack.c.b16 %v585, %v583
        %v644 = vpack.c.b16 %v588, %v586
        %v645 = vpack.c.b16 %v589, %v587
        %v646 = vpack.c.b16 %v592, %v590
        %v647 = vpack.c.b16 %v593, %v591
        %v648 = vpack.c.b16 %v596, %v594
        %v649 = vpack.c.b16 %v597, %v595
        %v650 = vpack.c.b16 %v600, %v598
        %v651 = vpack.c.b16 %v601, %v599
        %v652 = vpack.c.b16 %v604, %v602
        %v653 = vpack.c.b16 %v605, %v603
        %v654 = vpack.c.b16 %v608, %v606
        %v655 = vpack.c.b16 %v609, %v607
        %v656 = vpack.c.b16 %v612, %v610
        %v657 = vpack.c.b16 %v613, %v611
        %v658 = vpack.c.b16 %v616, %v614
        %v659 = vpack.c.b16 %v617, %v615
        %v660 = vpack.c.b16 %v620, %v618
        %v661 = vpack.c.b16 %v621, %v619
        %v662 = vpack.c.b16 %v624, %v622
        %v663 = vpack.c.b16 %v625, %v623
        %v664 = vpack.c.b16 %v628, %v626
        %v665 = vpack.c.b16 %v629, %v627
        %v666 = vpack.c.b16 %v632, %v630
        %v667 = vpack.c.b16 %v633, %v631
        %v668 = vpack.c.b16 %v636, %v634
        %v669 = vpack.c.b16 %v637, %v635
        %702 = vmatprep.subr.bf16.mxu0 %v653
        %703 = vmatpush1.bf16.msra.mxu0 %v652
        %704 = vmatprep.subr.bf16.mxu0 %v651
        %705 = vmatpush1.bf16.msra.mxu0 %v650
        %706 = vmatprep.subr.bf16.mxu0 %v649
        %707 = vmatpush1.bf16.msra.mxu0 %v648
        %708 = vmatprep.subr.bf16.mxu0 %v647
        %709 = vmatpush1.bf16.msra.mxu0 %v646
        %710 = vmatprep.subr.bf16.mxu0 %v645
        %711 = vmatpush1.bf16.msra.mxu0 %v644
        %712 = vmatprep.subr.bf16.mxu0 %v643
        %713 = vmatpush1.bf16.msra.mxu0 %v642
        %714 = vmatprep.subr.bf16.mxu0 %v641
        %715 = vmatpush1.bf16.msra.mxu0 %v640
        %716 = vmatprep.subr.bf16.mxu0 %v639
        %717 = vmatpush1.bf16.msra.mxu0 %v638
        %718 = vmatprep.subr.bf16.mxu0 %v669
        %719 = vmatpush2.bf16.msra.mxu0 %v668
        %720 = vmatprep.subr.bf16.mxu0 %v667
        %721 = vmatpush2.bf16.msra.mxu0 %v666
        %722 = vmatprep.subr.bf16.mxu0 %v665
        %723 = vmatpush2.bf16.msra.mxu0 %v664
        %724 = vmatprep.subr.bf16.mxu0 %v663
        %725 = vmatpush2.bf16.msra.mxu0 %v662
        %726 = vmatprep.subr.bf16.mxu0 %v661
        %727 = vmatpush2.bf16.msra.mxu0 %v660
        %728 = vmatprep.subr.bf16.mxu0 %v659
        %729 = vmatpush2.bf16.msra.mxu0 %v658
        %730 = vmatprep.subr.bf16.mxu0 %v657
        %731 = vmatpush2.bf16.msra.mxu0 %v656
        %732 = vmatprep.subr.bf16.mxu0 %v655
        %733 = vmatpush2.bf16.msra.mxu0 %v654
        %734 = vmatprep.mubr.bf16.mxu0 %v253
        %735 = vmatmul.mubr.bf16.gmra.mxu0 %v252
        %v736 = vpop.f32.mrf.mxu0
        %v737 = vadd.f32 %v536, %v736
        %v738 = vpop.f32.mrf.mxu0
        %v739 = vadd.f32 %v538, %v738
        %v740 = vpop.f32.mrf.mxu0
        %v741 = vpop.f32.mrf.mxu0
        %742 = vdwg.mxu0
        %v743 = vld [vmem:[#allocation2] sm:$0xfc]
        %v744 = vld [vmem:[#allocation2 + $0x8] sm:$0xfc]
        %v745 = vld [vmem:[#allocation2 + $0x10] sm:$0x3]
        %v746 = vld [vmem:[#allocation2 + $0x18] sm:$0x3]
        %v747 = vpack.c.bf16 %v745, %v743
        %v748 = vpack.c.bf16 %v746, %v744
        %s749 = scalar_lea.vmem %s1, 512
        %v750 = vld [vmem:[%s749] sm:$0xff]
        %v751 = vld [vmem:[%s749 + $0x8] sm:$0xff]
        %v752 = vld [vmem:[%s749 + $0x10] sm:$0xff]
        %v753 = vld [vmem:[%s749 + $0x18] sm:$0xff]
        %v754 = vld [vmem:[%s749 + $0x20] sm:$0xff]
        %v755 = vld [vmem:[%s749 + $0x28] sm:$0xff]
        %v756 = vld [vmem:[%s749 + $0x30] sm:$0xff]
        %v757 = vld [vmem:[%s749 + $0x38] sm:$0xff]
        %v758 = vld [vmem:[%s749 + $0x40] sm:$0xff]
        %v759 = vld [vmem:[%s749 + $0x48] sm:$0xff]
        %v760 = vld [vmem:[%s749 + $0x50] sm:$0xff]
        %v761 = vld [vmem:[%s749 + $0x58] sm:$0xff]
        %v762 = vld [vmem:[%s749 + $0x60] sm:$0xff]
        %v763 = vld [vmem:[%s749 + $0x68] sm:$0xff]
        %v764 = vld [vmem:[%s749 + $0x70] sm:$0xff]
        %v765 = vld [vmem:[%s749 + $0x78] sm:$0xff]
        %v766 = vld [vmem:[%s749 + $0x80] sm:$0xff]
        %v767 = vld [vmem:[%s749 + $0x88] sm:$0xff]
        %v768 = vld [vmem:[%s749 + $0x90] sm:$0xff]
        %v769 = vld [vmem:[%s749 + $0x98] sm:$0xff]
        %v770 = vld [vmem:[%s749 + $0xa0] sm:$0xff]
        %v771 = vld [vmem:[%s749 + $0xa8] sm:$0xff]
        %v772 = vld [vmem:[%s749 + $0xb0] sm:$0xff]
        %v773 = vld [vmem:[%s749 + $0xb8] sm:$0xff]
        %v774 = vld [vmem:[%s749 + $0xc0] sm:$0xff]
        %v775 = vld [vmem:[%s749 + $0xc8] sm:$0xff]
        %v776 = vld [vmem:[%s749 + $0xd0] sm:$0xff]
        %v777 = vld [vmem:[%s749 + $0xd8] sm:$0xff]
        %v778 = vld [vmem:[%s749 + $0xe0] sm:$0xff]
        %v779 = vld [vmem:[%s749 + $0xe8] sm:$0xff]
        %v780 = vld [vmem:[%s749 + $0xf0] sm:$0xff]
        %v781 = vld [vmem:[%s749 + $0xf8] sm:$0xff]
        %v784 = vrot.slane %v747, 1
        %v785 = vrot.slane %v748, 1
        %v820 = vunpack.c.l.b16 %v750
        %v821 = vunpack.c.h.b16 %v750
        %v822 = vunpack.c.l.b16 %v751
        %v823 = vunpack.c.h.b16 %v751
        %v824 = vunpack.c.l.b16 %v752
        %v825 = vunpack.c.h.b16 %v752
        %v826 = vunpack.c.l.b16 %v753
        %v827 = vunpack.c.h.b16 %v753
        %v828 = vunpack.c.l.b16 %v754
        %v829 = vunpack.c.h.b16 %v754
        %v830 = vunpack.c.l.b16 %v755
        %v831 = vunpack.c.h.b16 %v755
        %v832 = vunpack.c.l.b16 %v756
        %v833 = vunpack.c.h.b16 %v756
        %v834 = vunpack.c.l.b16 %v757
        %v835 = vunpack.c.h.b16 %v757
        %v836 = vunpack.c.l.b16 %v758
        %v837 = vunpack.c.h.b16 %v758
        %v838 = vunpack.c.l.b16 %v759
        %v839 = vunpack.c.h.b16 %v759
        %v840 = vunpack.c.l.b16 %v760
        %v841 = vunpack.c.h.b16 %v760
        %v842 = vunpack.c.l.b16 %v761
        %v843 = vunpack.c.h.b16 %v761
        %v844 = vunpack.c.l.b16 %v762
        %v845 = vunpack.c.h.b16 %v762
        %v846 = vunpack.c.l.b16 %v763
        %v847 = vunpack.c.h.b16 %v763
        %v848 = vunpack.c.l.b16 %v764
        %v849 = vunpack.c.h.b16 %v764
        %v850 = vunpack.c.l.b16 %v765
        %v851 = vunpack.c.h.b16 %v765
        %v852 = vunpack.c.l.b16 %v766
        %v853 = vunpack.c.h.b16 %v766
        %v854 = vunpack.c.l.b16 %v767
        %v855 = vunpack.c.h.b16 %v767
        %v856 = vunpack.c.l.b16 %v768
        %v857 = vunpack.c.h.b16 %v768
        %v858 = vunpack.c.l.b16 %v769
        %v859 = vunpack.c.h.b16 %v769
        %v860 = vunpack.c.l.b16 %v770
        %v861 = vunpack.c.h.b16 %v770
        %v862 = vunpack.c.l.b16 %v771
        %v863 = vunpack.c.h.b16 %v771
        %v864 = vunpack.c.l.b16 %v772
        %v865 = vunpack.c.h.b16 %v772
        %v866 = vunpack.c.l.b16 %v773
        %v867 = vunpack.c.h.b16 %v773
        %v868 = vunpack.c.l.b16 %v774
        %v869 = vunpack.c.h.b16 %v774
        %v870 = vunpack.c.l.b16 %v775
        %v871 = vunpack.c.h.b16 %v775
        %v872 = vunpack.c.l.b16 %v776
        %v873 = vunpack.c.h.b16 %v776
        %v874 = vunpack.c.l.b16 %v777
        %v875 = vunpack.c.h.b16 %v777
        %v876 = vunpack.c.l.b16 %v778
        %v877 = vunpack.c.h.b16 %v778
        %v878 = vunpack.c.l.b16 %v779
        %v879 = vunpack.c.h.b16 %v779
        %v880 = vunpack.c.l.b16 %v780
        %v881 = vunpack.c.h.b16 %v780
        %v882 = vunpack.c.l.b16 %v781
        %v883 = vunpack.c.h.b16 %v781
        %v884 = vpack.c.b16 %v822, %v820
        %v885 = vpack.c.b16 %v823, %v821
        %v886 = vpack.c.b16 %v826, %v824
        %v887 = vpack.c.b16 %v827, %v825
        %v888 = vpack.c.b16 %v830, %v828
        %v889 = vpack.c.b16 %v831, %v829
        %v890 = vpack.c.b16 %v834, %v832
        %v891 = vpack.c.b16 %v835, %v833
        %v892 = vpack.c.b16 %v838, %v836
        %v893 = vpack.c.b16 %v839, %v837
        %v894 = vpack.c.b16 %v842, %v840
        %v895 = vpack.c.b16 %v843, %v841
        %v896 = vpack.c.b16 %v846, %v844
        %v897 = vpack.c.b16 %v847, %v845
        %v898 = vpack.c.b16 %v850, %v848
        %v899 = vpack.c.b16 %v851, %v849
        %v900 = vpack.c.b16 %v854, %v852
        %v901 = vpack.c.b16 %v855, %v853
        %v902 = vpack.c.b16 %v858, %v856
        %v903 = vpack.c.b16 %v859, %v857
        %v904 = vpack.c.b16 %v862, %v860
        %v905 = vpack.c.b16 %v863, %v861
        %v906 = vpack.c.b16 %v866, %v864
        %v907 = vpack.c.b16 %v867, %v865
        %v908 = vpack.c.b16 %v870, %v868
        %v909 = vpack.c.b16 %v871, %v869
        %v910 = vpack.c.b16 %v874, %v872
        %v911 = vpack.c.b16 %v875, %v873
        %v912 = vpack.c.b16 %v878, %v876
        %v913 = vpack.c.b16 %v879, %v877
        %v914 = vpack.c.b16 %v882, %v880
        %v915 = vpack.c.b16 %v883, %v881
        %948 = vmatprep.subr.bf16.mxu0 %v899
        %949 = vmatpush1.bf16.msra.mxu0 %v898
        %950 = vmatprep.subr.bf16.mxu0 %v897
        %951 = vmatpush1.bf16.msra.mxu0 %v896
        %952 = vmatprep.subr.bf16.mxu0 %v895
        %953 = vmatpush1.bf16.msra.mxu0 %v894
        %954 = vmatprep.subr.bf16.mxu0 %v893
        %955 = vmatpush1.bf16.msra.mxu0 %v892
        %956 = vmatprep.subr.bf16.mxu0 %v891
        %957 = vmatpush1.bf16.msra.mxu0 %v890
        %958 = vmatprep.subr.bf16.mxu0 %v889
        %959 = vmatpush1.bf16.msra.mxu0 %v888
        %960 = vmatprep.subr.bf16.mxu0 %v887
        %961 = vmatpush1.bf16.msra.mxu0 %v886
        %962 = vmatprep.subr.bf16.mxu0 %v885
        %963 = vmatpush1.bf16.msra.mxu0 %v884
        %964 = vmatprep.subr.bf16.mxu0 %v915
        %965 = vmatpush2.bf16.msra.mxu0 %v914
        %966 = vmatprep.subr.bf16.mxu0 %v913
        %967 = vmatpush2.bf16.msra.mxu0 %v912
        %968 = vmatprep.subr.bf16.mxu0 %v911
        %969 = vmatpush2.bf16.msra.mxu0 %v910
        %970 = vmatprep.subr.bf16.mxu0 %v909
        %971 = vmatpush2.bf16.msra.mxu0 %v908
        %972 = vmatprep.subr.bf16.mxu0 %v907
        %973 = vmatpush2.bf16.msra.mxu0 %v906
        %974 = vmatprep.subr.bf16.mxu0 %v905
        %975 = vmatpush2.bf16.msra.mxu0 %v904
        %976 = vmatprep.subr.bf16.mxu0 %v903
        %977 = vmatpush2.bf16.msra.mxu0 %v902
        %978 = vmatprep.subr.bf16.mxu0 %v901
        %979 = vmatpush2.bf16.msra.mxu0 %v900
        %980 = vmatprep.mubr.bf16.mxu0 %v785
        %981 = vmatmul.mubr.bf16.gmra.mxu0 %v784
        %v982 = vpop.f32.mrf.mxu0
        %v983 = vadd.f32 0.0, %v982
        %v984 = vpop.f32.mrf.mxu0
        %v985 = vadd.f32 0.0, %v984
        %v986 = vpop.f32.mrf.mxu0
        %v987 = vpop.f32.mrf.mxu0
        %988 = vdwg.mxu0
        %v989 = vadd.f32 %v737, %v983
        %v990 = vadd.f32 %v739, %v985
        %v991 = vld [vmem:[#allocation2] sm:$0xf8]
        %v992 = vld [vmem:[#allocation2 + $0x8] sm:$0xf8]
        %v993 = vld [vmem:[#allocation2 + $0x10] sm:$0x7]
        %v994 = vld [vmem:[#allocation2 + $0x18] sm:$0x7]
        %v995 = vpack.c.bf16 %v993, %v991
        %v996 = vpack.c.bf16 %v994, %v992
        %s997 = scalar_lea.vmem %s1, 768
        %v998 = vld [vmem:[%s997] sm:$0xff]
        %v999 = vld [vmem:[%s997 + $0x8] sm:$0xff]
        %v1000 = vld [vmem:[%s997 + $0x10] sm:$0xff]
        %v1001 = vld [vmem:[%s997 + $0x18] sm:$0xff]
        %v1002 = vld [vmem:[%s997 + $0x20] sm:$0xff]
        %v1003 = vld [vmem:[%s997 + $0x28] sm:$0xff]
        %v1004 = vld [vmem:[%s997 + $0x30] sm:$0xff]
        %v1005 = vld [vmem:[%s997 + $0x38] sm:$0xff]
        %v1006 = vld [vmem:[%s997 + $0x40] sm:$0xff]
        %v1007 = vld [vmem:[%s997 + $0x48] sm:$0xff]
        %v1008 = vld [vmem:[%s997 + $0x50] sm:$0xff]
        %v1009 = vld [vmem:[%s997 + $0x58] sm:$0xff]
        %v1010 = vld [vmem:[%s997 + $0x60] sm:$0xff]
        %v1011 = vld [vmem:[%s997 + $0x68] sm:$0xff]
        %v1012 = vld [vmem:[%s997 + $0x70] sm:$0xff]
        %v1013 = vld [vmem:[%s997 + $0x78] sm:$0xff]
        %v1014 = vld [vmem:[%s997 + $0x80] sm:$0xff]
        %v1015 = vld [vmem:[%s997 + $0x88] sm:$0xff]
        %v1016 = vld [vmem:[%s997 + $0x90] sm:$0xff]
        %v1017 = vld [vmem:[%s997 + $0x98] sm:$0xff]
        %v1018 = vld [vmem:[%s997 + $0xa0] sm:$0xff]
        %v1019 = vld [vmem:[%s997 + $0xa8] sm:$0xff]
        %v1020 = vld [vmem:[%s997 + $0xb0] sm:$0xff]
        %v1021 = vld [vmem:[%s997 + $0xb8] sm:$0xff]
        %v1022 = vld [vmem:[%s997 + $0xc0] sm:$0xff]
        %v1023 = vld [vmem:[%s997 + $0xc8] sm:$0xff]
        %v1024 = vld [vmem:[%s997 + $0xd0] sm:$0xff]
        %v1025 = vld [vmem:[%s997 + $0xd8] sm:$0xff]
        %v1026 = vld [vmem:[%s997 + $0xe0] sm:$0xff]
        %v1027 = vld [vmem:[%s997 + $0xe8] sm:$0xff]
        %v1028 = vld [vmem:[%s997 + $0xf0] sm:$0xff]
        %v1029 = vld [vmem:[%s997 + $0xf8] sm:$0xff]
        %v1031 = vshrl.u32 %v995, 16
        %v1033 = vrot.slane %v1031, 1
        %v1034 = vshll.u32 %v995, 16
        %v1036 = vrot.slane %v1034, 2
        %v1037 = vor.u32 %v1033, %v1036
        %v1039 = vshrl.u32 %v996, 16
        %v1041 = vrot.slane %v1039, 1
        %v1042 = vshll.u32 %v996, 16
        %v1044 = vrot.slane %v1042, 2
        %v1045 = vor.u32 %v1041, %v1044
        %v1080 = vunpack.c.l.b16 %v998
        %v1081 = vunpack.c.h.b16 %v998
        %v1082 = vunpack.c.l.b16 %v999
        %v1083 = vunpack.c.h.b16 %v999
        %v1084 = vunpack.c.l.b16 %v1000
        %v1085 = vunpack.c.h.b16 %v1000
        %v1086 = vunpack.c.l.b16 %v1001
        %v1087 = vunpack.c.h.b16 %v1001
        %v1088 = vunpack.c.l.b16 %v1002
        %v1089 = vunpack.c.h.b16 %v1002
        %v1090 = vunpack.c.l.b16 %v1003
        %v1091 = vunpack.c.h.b16 %v1003
        %v1092 = vunpack.c.l.b16 %v1004
        %v1093 = vunpack.c.h.b16 %v1004
        %v1094 = vunpack.c.l.b16 %v1005
        %v1095 = vunpack.c.h.b16 %v1005
        %v1096 = vunpack.c.l.b16 %v1006
        %v1097 = vunpack.c.h.b16 %v1006
        %v1098 = vunpack.c.l.b16 %v1007
        %v1099 = vunpack.c.h.b16 %v1007
        %v1100 = vunpack.c.l.b16 %v1008
        %v1101 = vunpack.c.h.b16 %v1008
        %v1102 = vunpack.c.l.b16 %v1009
        %v1103 = vunpack.c.h.b16 %v1009
        %v1104 = vunpack.c.l.b16 %v1010
        %v1105 = vunpack.c.h.b16 %v1010
        %v1106 = vunpack.c.l.b16 %v1011
        %v1107 = vunpack.c.h.b16 %v1011
        %v1108 = vunpack.c.l.b16 %v1012
        %v1109 = vunpack.c.h.b16 %v1012
        %v1110 = vunpack.c.l.b16 %v1013
        %v1111 = vunpack.c.h.b16 %v1013
        %v1112 = vunpack.c.l.b16 %v1014
        %v1113 = vunpack.c.h.b16 %v1014
        %v1114 = vunpack.c.l.b16 %v1015
        %v1115 = vunpack.c.h.b16 %v1015
        %v1116 = vunpack.c.l.b16 %v1016
        %v1117 = vunpack.c.h.b16 %v1016
        %v1118 = vunpack.c.l.b16 %v1017
        %v1119 = vunpack.c.h.b16 %v1017
        %v1120 = vunpack.c.l.b16 %v1018
        %v1121 = vunpack.c.h.b16 %v1018
        %v1122 = vunpack.c.l.b16 %v1019
        %v1123 = vunpack.c.h.b16 %v1019
        %v1124 = vunpack.c.l.b16 %v1020
        %v1125 = vunpack.c.h.b16 %v1020
        %v1126 = vunpack.c.l.b16 %v1021
        %v1127 = vunpack.c.h.b16 %v1021
        %v1128 = vunpack.c.l.b16 %v1022
        %v1129 = vunpack.c.h.b16 %v1022
        %v1130 = vunpack.c.l.b16 %v1023
        %v1131 = vunpack.c.h.b16 %v1023
        %v1132 = vunpack.c.l.b16 %v1024
        %v1133 = vunpack.c.h.b16 %v1024
        %v1134 = vunpack.c.l.b16 %v1025
        %v1135 = vunpack.c.h.b16 %v1025
        %v1136 = vunpack.c.l.b16 %v1026
        %v1137 = vunpack.c.h.b16 %v1026
        %v1138 = vunpack.c.l.b16 %v1027
        %v1139 = vunpack.c.h.b16 %v1027
        %v1140 = vunpack.c.l.b16 %v1028
        %v1141 = vunpack.c.h.b16 %v1028
        %v1142 = vunpack.c.l.b16 %v1029
        %v1143 = vunpack.c.h.b16 %v1029
        %v1144 = vpack.c.b16 %v1082, %v1080
        %v1145 = vpack.c.b16 %v1083, %v1081
        %v1146 = vpack.c.b16 %v1086, %v1084
        %v1147 = vpack.c.b16 %v1087, %v1085
        %v1148 = vpack.c.b16 %v1090, %v1088
        %v1149 = vpack.c.b16 %v1091, %v1089
        %v1150 = vpack.c.b16 %v1094, %v1092
        %v1151 = vpack.c.b16 %v1095, %v1093
        %v1152 = vpack.c.b16 %v1098, %v1096
        %v1153 = vpack.c.b16 %v1099, %v1097
        %v1154 = vpack.c.b16 %v1102, %v1100
        %v1155 = vpack.c.b16 %v1103, %v1101
        %v1156 = vpack.c.b16 %v1106, %v1104
        %v1157 = vpack.c.b16 %v1107, %v1105
        %v1158 = vpack.c.b16 %v1110, %v1108
        %v1159 = vpack.c.b16 %v1111, %v1109
        %v1160 = vpack.c.b16 %v1114, %v1112
        %v1161 = vpack.c.b16 %v1115, %v1113
        %v1162 = vpack.c.b16 %v1118, %v1116
        %v1163 = vpack.c.b16 %v1119, %v1117
        %v1164 = vpack.c.b16 %v1122, %v1120
        %v1165 = vpack.c.b16 %v1123, %v1121
        %v1166 = vpack.c.b16 %v1126, %v1124
        %v1167 = vpack.c.b16 %v1127, %v1125
        %v1168 = vpack.c.b16 %v1130, %v1128
        %v1169 = vpack.c.b16 %v1131, %v1129
        %v1170 = vpack.c.b16 %v1134, %v1132
        %v1171 = vpack.c.b16 %v1135, %v1133
        %v1172 = vpack.c.b16 %v1138, %v1136
        %v1173 = vpack.c.b16 %v1139, %v1137
        %v1174 = vpack.c.b16 %v1142, %v1140
        %v1175 = vpack.c.b16 %v1143, %v1141
        %1208 = vmatprep.subr.bf16.mxu0 %v1159
        %1209 = vmatpush1.bf16.msra.mxu0 %v1158
        %1210 = vmatprep.subr.bf16.mxu0 %v1157
        %1211 = vmatpush1.bf16.msra.mxu0 %v1156
        %1212 = vmatprep.subr.bf16.mxu0 %v1155
        %1213 = vmatpush1.bf16.msra.mxu0 %v1154
        %1214 = vmatprep.subr.bf16.mxu0 %v1153
        %1215 = vmatpush1.bf16.msra.mxu0 %v1152
        %1216 = vmatprep.subr.bf16.mxu0 %v1151
        %1217 = vmatpush1.bf16.msra.mxu0 %v1150
        %1218 = vmatprep.subr.bf16.mxu0 %v1149
        %1219 = vmatpush1.bf16.msra.mxu0 %v1148
        %1220 = vmatprep.subr.bf16.mxu0 %v1147
        %1221 = vmatpush1.bf16.msra.mxu0 %v1146
        %1222 = vmatprep.subr.bf16.mxu0 %v1145
        %1223 = vmatpush1.bf16.msra.mxu0 %v1144
        %1224 = vmatprep.subr.bf16.mxu0 %v1175
        %1225 = vmatpush2.bf16.msra.mxu0 %v1174
        %1226 = vmatprep.subr.bf16.mxu0 %v1173
        %1227 = vmatpush2.bf16.msra.mxu0 %v1172
        %1228 = vmatprep.subr.bf16.mxu0 %v1171
        %1229 = vmatpush2.bf16.msra.mxu0 %v1170
        %1230 = vmatprep.subr.bf16.mxu0 %v1169
        %1231 = vmatpush2.bf16.msra.mxu0 %v1168
        %1232 = vmatprep.subr.bf16.mxu0 %v1167
        %1233 = vmatpush2.bf16.msra.mxu0 %v1166
        %1234 = vmatprep.subr.bf16.mxu0 %v1165
        %1235 = vmatpush2.bf16.msra.mxu0 %v1164
        %1236 = vmatprep.subr.bf16.mxu0 %v1163
        %1237 = vmatpush2.bf16.msra.mxu0 %v1162
        %1238 = vmatprep.subr.bf16.mxu0 %v1161
        %1239 = vmatpush2.bf16.msra.mxu0 %v1160
        %1240 = vmatprep.mubr.bf16.mxu0 %v1045
        %1241 = vmatmul.mubr.bf16.gmra.mxu0 %v1037
        %v1242 = vpop.f32.mrf.mxu0
        %v1243 = vadd.f32 0.0, %v1242
        %v1244 = vpop.f32.mrf.mxu0
        %v1245 = vadd.f32 0.0, %v1244
        %v1246 = vpop.f32.mrf.mxu0
        %v1247 = vpop.f32.mrf.mxu0
        %1248 = vdwg.mxu0
        %v1249 = vadd.f32 %v989, %v1243
        %v1250 = vadd.f32 %v990, %v1245
        %v1251 = vld [vmem:[#allocation2] sm:$0xf0]
        %v1252 = vld [vmem:[#allocation2 + $0x8] sm:$0xf0]
        %v1253 = vld [vmem:[#allocation2 + $0x10] sm:$0xf]
        %v1254 = vld [vmem:[#allocation2 + $0x18] sm:$0xf]
        %v1255 = vpack.c.bf16 %v1253, %v1251
        %v1256 = vpack.c.bf16 %v1254, %v1252
        %s1257 = scalar_lea.vmem %s1, 1024
        %v1258 = vld [vmem:[%s1257] sm:$0xff]
        %v1259 = vld [vmem:[%s1257 + $0x8] sm:$0xff]
        %v1260 = vld [vmem:[%s1257 + $0x10] sm:$0xff]
        %v1261 = vld [vmem:[%s1257 + $0x18] sm:$0xff]
        %v1262 = vld [vmem:[%s1257 + $0x20] sm:$0xff]
        %v1263 = vld [vmem:[%s1257 + $0x28] sm:$0xff]
        %v1264 = vld [vmem:[%s1257 + $0x30] sm:$0xff]
        %v1265 = vld [vmem:[%s1257 + $0x38] sm:$0xff]
        %v1266 = vld [vmem:[%s1257 + $0x40] sm:$0xff]
        %v1267 = vld [vmem:[%s1257 + $0x48] sm:$0xff]
        %v1268 = vld [vmem:[%s1257 + $0x50] sm:$0xff]
        %v1269 = vld [vmem:[%s1257 + $0x58] sm:$0xff]
        %v1270 = vld [vmem:[%s1257 + $0x60] sm:$0xff]
        %v1271 = vld [vmem:[%s1257 + $0x68] sm:$0xff]
        %v1272 = vld [vmem:[%s1257 + $0x70] sm:$0xff]
        %v1273 = vld [vmem:[%s1257 + $0x78] sm:$0xff]
        %v1274 = vld [vmem:[%s1257 + $0x80] sm:$0xff]
        %v1275 = vld [vmem:[%s1257 + $0x88] sm:$0xff]
        %v1276 = vld [vmem:[%s1257 + $0x90] sm:$0xff]
        %v1277 = vld [vmem:[%s1257 + $0x98] sm:$0xff]
        %v1278 = vld [vmem:[%s1257 + $0xa0] sm:$0xff]
        %v1279 = vld [vmem:[%s1257 + $0xa8] sm:$0xff]
        %v1280 = vld [vmem:[%s1257 + $0xb0] sm:$0xff]
        %v1281 = vld [vmem:[%s1257 + $0xb8] sm:$0xff]
        %v1282 = vld [vmem:[%s1257 + $0xc0] sm:$0xff]
        %v1283 = vld [vmem:[%s1257 + $0xc8] sm:$0xff]
        %v1284 = vld [vmem:[%s1257 + $0xd0] sm:$0xff]
        %v1285 = vld [vmem:[%s1257 + $0xd8] sm:$0xff]
        %v1286 = vld [vmem:[%s1257 + $0xe0] sm:$0xff]
        %v1287 = vld [vmem:[%s1257 + $0xe8] sm:$0xff]
        %v1288 = vld [vmem:[%s1257 + $0xf0] sm:$0xff]
        %v1289 = vld [vmem:[%s1257 + $0xf8] sm:$0xff]
        %v1292 = vrot.slane %v1255, 2
        %v1293 = vrot.slane %v1256, 2
        %v1328 = vunpack.c.l.b16 %v1258
        %v1329 = vunpack.c.h.b16 %v1258
        %v1330 = vunpack.c.l.b16 %v1259
        %v1331 = vunpack.c.h.b16 %v1259
        %v1332 = vunpack.c.l.b16 %v1260
        %v1333 = vunpack.c.h.b16 %v1260
        %v1334 = vunpack.c.l.b16 %v1261
        %v1335 = vunpack.c.h.b16 %v1261
        %v1336 = vunpack.c.l.b16 %v1262
        %v1337 = vunpack.c.h.b16 %v1262
        %v1338 = vunpack.c.l.b16 %v1263
        %v1339 = vunpack.c.h.b16 %v1263
        %v1340 = vunpack.c.l.b16 %v1264
        %v1341 = vunpack.c.h.b16 %v1264
        %v1342 = vunpack.c.l.b16 %v1265
        %v1343 = vunpack.c.h.b16 %v1265
        %v1344 = vunpack.c.l.b16 %v1266
        %v1345 = vunpack.c.h.b16 %v1266
        %v1346 = vunpack.c.l.b16 %v1267
        %v1347 = vunpack.c.h.b16 %v1267
        %v1348 = vunpack.c.l.b16 %v1268
        %v1349 = vunpack.c.h.b16 %v1268
        %v1350 = vunpack.c.l.b16 %v1269
        %v1351 = vunpack.c.h.b16 %v1269
        %v1352 = vunpack.c.l.b16 %v1270
        %v1353 = vunpack.c.h.b16 %v1270
        %v1354 = vunpack.c.l.b16 %v1271
        %v1355 = vunpack.c.h.b16 %v1271
        %v1356 = vunpack.c.l.b16 %v1272
        %v1357 = vunpack.c.h.b16 %v1272
        %v1358 = vunpack.c.l.b16 %v1273
        %v1359 = vunpack.c.h.b16 %v1273
        %v1360 = vunpack.c.l.b16 %v1274
        %v1361 = vunpack.c.h.b16 %v1274
        %v1362 = vunpack.c.l.b16 %v1275
        %v1363 = vunpack.c.h.b16 %v1275
        %v1364 = vunpack.c.l.b16 %v1276
        %v1365 = vunpack.c.h.b16 %v1276
        %v1366 = vunpack.c.l.b16 %v1277
        %v1367 = vunpack.c.h.b16 %v1277
        %v1368 = vunpack.c.l.b16 %v1278
        %v1369 = vunpack.c.h.b16 %v1278
        %v1370 = vunpack.c.l.b16 %v1279
        %v1371 = vunpack.c.h.b16 %v1279
        %v1372 = vunpack.c.l.b16 %v1280
        %v1373 = vunpack.c.h.b16 %v1280
        %v1374 = vunpack.c.l.b16 %v1281
        %v1375 = vunpack.c.h.b16 %v1281
        %v1376 = vunpack.c.l.b16 %v1282
        %v1377 = vunpack.c.h.b16 %v1282
        %v1378 = vunpack.c.l.b16 %v1283
        %v1379 = vunpack.c.h.b16 %v1283
        %v1380 = vunpack.c.l.b16 %v1284
        %v1381 = vunpack.c.h.b16 %v1284
        %v1382 = vunpack.c.l.b16 %v1285
        %v1383 = vunpack.c.h.b16 %v1285
        %v1384 = vunpack.c.l.b16 %v1286
        %v1385 = vunpack.c.h.b16 %v1286
        %v1386 = vunpack.c.l.b16 %v1287
        %v1387 = vunpack.c.h.b16 %v1287
        %v1388 = vunpack.c.l.b16 %v1288
        %v1389 = vunpack.c.h.b16 %v1288
        %v1390 = vunpack.c.l.b16 %v1289
        %v1391 = vunpack.c.h.b16 %v1289
        %v1392 = vpack.c.b16 %v1330, %v1328
        %v1393 = vpack.c.b16 %v1331, %v1329
        %v1394 = vpack.c.b16 %v1334, %v1332
        %v1395 = vpack.c.b16 %v1335, %v1333
        %v1396 = vpack.c.b16 %v1338, %v1336
        %v1397 = vpack.c.b16 %v1339, %v1337
        %v1398 = vpack.c.b16 %v1342, %v1340
        %v1399 = vpack.c.b16 %v1343, %v1341
        %v1400 = vpack.c.b16 %v1346, %v1344
        %v1401 = vpack.c.b16 %v1347, %v1345
        %v1402 = vpack.c.b16 %v1350, %v1348
        %v1403 = vpack.c.b16 %v1351, %v1349
        %v1404 = vpack.c.b16 %v1354, %v1352
        %v1405 = vpack.c.b16 %v1355, %v1353
        %v1406 = vpack.c.b16 %v1358, %v1356
        %v1407 = vpack.c.b16 %v1359, %v1357
        %v1408 = vpack.c.b16 %v1362, %v1360
        %v1409 = vpack.c.b16 %v1363, %v1361
        %v1410 = vpack.c.b16 %v1366, %v1364
        %v1411 = vpack.c.b16 %v1367, %v1365
        %v1412 = vpack.c.b16 %v1370, %v1368
        %v1413 = vpack.c.b16 %v1371, %v1369
        %v1414 = vpack.c.b16 %v1374, %v1372
        %v1415 = vpack.c.b16 %v1375, %v1373
        %v1416 = vpack.c.b16 %v1378, %v1376
        %v1417 = vpack.c.b16 %v1379, %v1377
        %v1418 = vpack.c.b16 %v1382, %v1380
        %v1419 = vpack.c.b16 %v1383, %v1381
        %v1420 = vpack.c.b16 %v1386, %v1384
        %v1421 = vpack.c.b16 %v1387, %v1385
        %v1422 = vpack.c.b16 %v1390, %v1388
        %v1423 = vpack.c.b16 %v1391, %v1389
        %1456 = vmatprep.subr.bf16.mxu0 %v1407
        %1457 = vmatpush1.bf16.msra.mxu0 %v1406
        %1458 = vmatprep.subr.bf16.mxu0 %v1405
        %1459 = vmatpush1.bf16.msra.mxu0 %v1404
        %1460 = vmatprep.subr.bf16.mxu0 %v1403
        %1461 = vmatpush1.bf16.msra.mxu0 %v1402
        %1462 = vmatprep.subr.bf16.mxu0 %v1401
        %1463 = vmatpush1.bf16.msra.mxu0 %v1400
        %1464 = vmatprep.subr.bf16.mxu0 %v1399
        %1465 = vmatpush1.bf16.msra.mxu0 %v1398
        %1466 = vmatprep.subr.bf16.mxu0 %v1397
        %1467 = vmatpush1.bf16.msra.mxu0 %v1396
        %1468 = vmatprep.subr.bf16.mxu0 %v1395
        %1469 = vmatpush1.bf16.msra.mxu0 %v1394
        %1470 = vmatprep.subr.bf16.mxu0 %v1393
        %1471 = vmatpush1.bf16.msra.mxu0 %v1392
        %1472 = vmatprep.subr.bf16.mxu0 %v1423
        %1473 = vmatpush2.bf16.msra.mxu0 %v1422
        %1474 = vmatprep.subr.bf16.mxu0 %v1421
        %1475 = vmatpush2.bf16.msra.mxu0 %v1420
        %1476 = vmatprep.subr.bf16.mxu0 %v1419
        %1477 = vmatpush2.bf16.msra.mxu0 %v1418
        %1478 = vmatprep.subr.bf16.mxu0 %v1417
        %1479 = vmatpush2.bf16.msra.mxu0 %v1416
        %1480 = vmatprep.subr.bf16.mxu0 %v1415
        %1481 = vmatpush2.bf16.msra.mxu0 %v1414
        %1482 = vmatprep.subr.bf16.mxu0 %v1413
        %1483 = vmatpush2.bf16.msra.mxu0 %v1412
        %1484 = vmatprep.subr.bf16.mxu0 %v1411
        %1485 = vmatpush2.bf16.msra.mxu0 %v1410
        %1486 = vmatprep.subr.bf16.mxu0 %v1409
        %1487 = vmatpush2.bf16.msra.mxu0 %v1408
        %1488 = vmatprep.mubr.bf16.mxu0 %v1293
        %1489 = vmatmul.mubr.bf16.gmra.mxu0 %v1292
        %v1490 = vpop.f32.mrf.mxu0
        %v1491 = vadd.f32 0.0, %v1490
        %v1492 = vpop.f32.mrf.mxu0
        %v1493 = vadd.f32 0.0, %v1492
        %v1494 = vpop.f32.mrf.mxu0
        %v1495 = vpop.f32.mrf.mxu0
        %1496 = vdwg.mxu0
        %v1497 = vadd.f32 %v1249, %v1491
        %v1498 = vadd.f32 %v1250, %v1493
        %v1499 = vld [vmem:[#allocation2] sm:$0xe0]
        %v1500 = vld [vmem:[#allocation2 + $0x8] sm:$0xe0]
        %v1501 = vld [vmem:[#allocation2 + $0x10] sm:$0x1f]
        %v1502 = vld [vmem:[#allocation2 + $0x18] sm:$0x1f]
        %v1503 = vpack.c.bf16 %v1501, %v1499
        %v1504 = vpack.c.bf16 %v1502, %v1500
        %s1505 = scalar_lea.vmem %s1, 1280
        %v1506 = vld [vmem:[%s1505] sm:$0xff]
        %v1507 = vld [vmem:[%s1505 + $0x8] sm:$0xff]
        %v1508 = vld [vmem:[%s1505 + $0x10] sm:$0xff]
        %v1509 = vld [vmem:[%s1505 + $0x18] sm:$0xff]
        %v1510 = vld [vmem:[%s1505 + $0x20] sm:$0xff]
        %v1511 = vld [vmem:[%s1505 + $0x28] sm:$0xff]
        %v1512 = vld [vmem:[%s1505 + $0x30] sm:$0xff]
        %v1513 = vld [vmem:[%s1505 + $0x38] sm:$0xff]
        %v1514 = vld [vmem:[%s1505 + $0x40] sm:$0xff]
        %v1515 = vld [vmem:[%s1505 + $0x48] sm:$0xff]
        %v1516 = vld [vmem:[%s1505 + $0x50] sm:$0xff]
        %v1517 = vld [vmem:[%s1505 + $0x58] sm:$0xff]
        %v1518 = vld [vmem:[%s1505 + $0x60] sm:$0xff]
        %v1519 = vld [vmem:[%s1505 + $0x68] sm:$0xff]
        %v1520 = vld [vmem:[%s1505 + $0x70] sm:$0xff]
        %v1521 = vld [vmem:[%s1505 + $0x78] sm:$0xff]
        %v1522 = vld [vmem:[%s1505 + $0x80] sm:$0xff]
        %v1523 = vld [vmem:[%s1505 + $0x88] sm:$0xff]
        %v1524 = vld [vmem:[%s1505 + $0x90] sm:$0xff]
        %v1525 = vld [vmem:[%s1505 + $0x98] sm:$0xff]
        %v1526 = vld [vmem:[%s1505 + $0xa0] sm:$0xff]
        %v1527 = vld [vmem:[%s1505 + $0xa8] sm:$0xff]
        %v1528 = vld [vmem:[%s1505 + $0xb0] sm:$0xff]
        %v1529 = vld [vmem:[%s1505 + $0xb8] sm:$0xff]
        %v1530 = vld [vmem:[%s1505 + $0xc0] sm:$0xff]
        %v1531 = vld [vmem:[%s1505 + $0xc8] sm:$0xff]
        %v1532 = vld [vmem:[%s1505 + $0xd0] sm:$0xff]
        %v1533 = vld [vmem:[%s1505 + $0xd8] sm:$0xff]
        %v1534 = vld [vmem:[%s1505 + $0xe0] sm:$0xff]
        %v1535 = vld [vmem:[%s1505 + $0xe8] sm:$0xff]
        %v1536 = vld [vmem:[%s1505 + $0xf0] sm:$0xff]
        %v1537 = vld [vmem:[%s1505 + $0xf8] sm:$0xff]
        %v1539 = vshrl.u32 %v1503, 16
        %v1541 = vrot.slane %v1539, 2
        %v1542 = vshll.u32 %v1503, 16
        %v1544 = vrot.slane %v1542, 3
        %v1545 = vor.u32 %v1541, %v1544
        %v1547 = vshrl.u32 %v1504, 16
        %v1549 = vrot.slane %v1547, 2
        %v1550 = vshll.u32 %v1504, 16
        %v1552 = vrot.slane %v1550, 3
        %v1553 = vor.u32 %v1549, %v1552
        %v1588 = vunpack.c.l.b16 %v1506
        %v1589 = vunpack.c.h.b16 %v1506
        %v1590 = vunpack.c.l.b16 %v1507
        %v1591 = vunpack.c.h.b16 %v1507
        %v1592 = vunpack.c.l.b16 %v1508
        %v1593 = vunpack.c.h.b16 %v1508
        %v1594 = vunpack.c.l.b16 %v1509
        %v1595 = vunpack.c.h.b16 %v1509
        %v1596 = vunpack.c.l.b16 %v1510
        %v1597 = vunpack.c.h.b16 %v1510
        %v1598 = vunpack.c.l.b16 %v1511
        %v1599 = vunpack.c.h.b16 %v1511
        %v1600 = vunpack.c.l.b16 %v1512
        %v1601 = vunpack.c.h.b16 %v1512
        %v1602 = vunpack.c.l.b16 %v1513
        %v1603 = vunpack.c.h.b16 %v1513
        %v1604 = vunpack.c.l.b16 %v1514
        %v1605 = vunpack.c.h.b16 %v1514
        %v1606 = vunpack.c.l.b16 %v1515
        %v1607 = vunpack.c.h.b16 %v1515
        %v1608 = vunpack.c.l.b16 %v1516
        %v1609 = vunpack.c.h.b16 %v1516
        %v1610 = vunpack.c.l.b16 %v1517
        %v1611 = vunpack.c.h.b16 %v1517
        %v1612 = vunpack.c.l.b16 %v1518
        %v1613 = vunpack.c.h.b16 %v1518
        %v1614 = vunpack.c.l.b16 %v1519
        %v1615 = vunpack.c.h.b16 %v1519
        %v1616 = vunpack.c.l.b16 %v1520
        %v1617 = vunpack.c.h.b16 %v1520
        %v1618 = vunpack.c.l.b16 %v1521
        %v1619 = vunpack.c.h.b16 %v1521
        %v1620 = vunpack.c.l.b16 %v1522
        %v1621 = vunpack.c.h.b16 %v1522
        %v1622 = vunpack.c.l.b16 %v1523
        %v1623 = vunpack.c.h.b16 %v1523
        %v1624 = vunpack.c.l.b16 %v1524
        %v1625 = vunpack.c.h.b16 %v1524
        %v1626 = vunpack.c.l.b16 %v1525
        %v1627 = vunpack.c.h.b16 %v1525
        %v1628 = vunpack.c.l.b16 %v1526
        %v1629 = vunpack.c.h.b16 %v1526
        %v1630 = vunpack.c.l.b16 %v1527
        %v1631 = vunpack.c.h.b16 %v1527
        %v1632 = vunpack.c.l.b16 %v1528
        %v1633 = vunpack.c.h.b16 %v1528
        %v1634 = vunpack.c.l.b16 %v1529
        %v1635 = vunpack.c.h.b16 %v1529
        %v1636 = vunpack.c.l.b16 %v1530
        %v1637 = vunpack.c.h.b16 %v1530
        %v1638 = vunpack.c.l.b16 %v1531
        %v1639 = vunpack.c.h.b16 %v1531
        %v1640 = vunpack.c.l.b16 %v1532
        %v1641 = vunpack.c.h.b16 %v1532
        %v1642 = vunpack.c.l.b16 %v1533
        %v1643 = vunpack.c.h.b16 %v1533
        %v1644 = vunpack.c.l.b16 %v1534
        %v1645 = vunpack.c.h.b16 %v1534
        %v1646 = vunpack.c.l.b16 %v1535
        %v1647 = vunpack.c.h.b16 %v1535
        %v1648 = vunpack.c.l.b16 %v1536
        %v1649 = vunpack.c.h.b16 %v1536
        %v1650 = vunpack.c.l.b16 %v1537
        %v1651 = vunpack.c.h.b16 %v1537
        %v1652 = vpack.c.b16 %v1590, %v1588
        %v1653 = vpack.c.b16 %v1591, %v1589
        %v1654 = vpack.c.b16 %v1594, %v1592
        %v1655 = vpack.c.b16 %v1595, %v1593
        %v1656 = vpack.c.b16 %v1598, %v1596
        %v1657 = vpack.c.b16 %v1599, %v1597
        %v1658 = vpack.c.b16 %v1602, %v1600
        %v1659 = vpack.c.b16 %v1603, %v1601
        %v1660 = vpack.c.b16 %v1606, %v1604
        %v1661 = vpack.c.b16 %v1607, %v1605
        %v1662 = vpack.c.b16 %v1610, %v1608
        %v1663 = vpack.c.b16 %v1611, %v1609
        %v1664 = vpack.c.b16 %v1614, %v1612
        %v1665 = vpack.c.b16 %v1615, %v1613
        %v1666 = vpack.c.b16 %v1618, %v1616
        %v1667 = vpack.c.b16 %v1619, %v1617
        %v1668 = vpack.c.b16 %v1622, %v1620
        %v1669 = vpack.c.b16 %v1623, %v1621
        %v1670 = vpack.c.b16 %v1626, %v1624
        %v1671 = vpack.c.b16 %v1627, %v1625
        %v1672 = vpack.c.b16 %v1630, %v1628
        %v1673 = vpack.c.b16 %v1631, %v1629
        %v1674 = vpack.c.b16 %v1634, %v1632
        %v1675 = vpack.c.b16 %v1635, %v1633
        %v1676 = vpack.c.b16 %v1638, %v1636
        %v1677 = vpack.c.b16 %v1639, %v1637
        %v1678 = vpack.c.b16 %v1642, %v1640
        %v1679 = vpack.c.b16 %v1643, %v1641
        %v1680 = vpack.c.b16 %v1646, %v1644
        %v1681 = vpack.c.b16 %v1647, %v1645
        %v1682 = vpack.c.b16 %v1650, %v1648
        %v1683 = vpack.c.b16 %v1651, %v1649
        %1716 = vmatprep.subr.bf16.mxu0 %v1667
        %1717 = vmatpush1.bf16.msra.mxu0 %v1666
        %1718 = vmatprep.subr.bf16.mxu0 %v1665
        %1719 = vmatpush1.bf16.msra.mxu0 %v1664
        %1720 = vmatprep.subr.bf16.mxu0 %v1663
        %1721 = vmatpush1.bf16.msra.mxu0 %v1662
        %1722 = vmatprep.subr.bf16.mxu0 %v1661
        %1723 = vmatpush1.bf16.msra.mxu0 %v1660
        %1724 = vmatprep.subr.bf16.mxu0 %v1659
        %1725 = vmatpush1.bf16.msra.mxu0 %v1658
        %1726 = vmatprep.subr.bf16.mxu0 %v1657
        %1727 = vmatpush1.bf16.msra.mxu0 %v1656
        %1728 = vmatprep.subr.bf16.mxu0 %v1655
        %1729 = vmatpush1.bf16.msra.mxu0 %v1654
        %1730 = vmatprep.subr.bf16.mxu0 %v1653
        %1731 = vmatpush1.bf16.msra.mxu0 %v1652
        %1732 = vmatprep.subr.bf16.mxu0 %v1683
        %1733 = vmatpush2.bf16.msra.mxu0 %v1682
        %1734 = vmatprep.subr.bf16.mxu0 %v1681
        %1735 = vmatpush2.bf16.msra.mxu0 %v1680
        %1736 = vmatprep.subr.bf16.mxu0 %v1679
        %1737 = vmatpush2.bf16.msra.mxu0 %v1678
        %1738 = vmatprep.subr.bf16.mxu0 %v1677
        %1739 = vmatpush2.bf16.msra.mxu0 %v1676
        %1740 = vmatprep.subr.bf16.mxu0 %v1675
        %1741 = vmatpush2.bf16.msra.mxu0 %v1674
        %1742 = vmatprep.subr.bf16.mxu0 %v1673
        %1743 = vmatpush2.bf16.msra.mxu0 %v1672
        %1744 = vmatprep.subr.bf16.mxu0 %v1671
        %1745 = vmatpush2.bf16.msra.mxu0 %v1670
        %1746 = vmatprep.subr.bf16.mxu0 %v1669
        %1747 = vmatpush2.bf16.msra.mxu0 %v1668
        %1748 = vmatprep.mubr.bf16.mxu0 %v1553
        %1749 = vmatmul.mubr.bf16.gmra.mxu0 %v1545
        %v1750 = vpop.f32.mrf.mxu0
        %v1751 = vadd.f32 0.0, %v1750
        %v1752 = vpop.f32.mrf.mxu0
        %v1753 = vadd.f32 0.0, %v1752
        %v1754 = vpop.f32.mrf.mxu0
        %v1755 = vpop.f32.mrf.mxu0
        %1756 = vdwg.mxu0
        %v1757 = vadd.f32 %v1497, %v1751
        %v1758 = vadd.f32 %v1498, %v1753
        %v1759 = vld [vmem:[#allocation2] sm:$0xc0]
        %v1760 = vld [vmem:[#allocation2 + $0x8] sm:$0xc0]
        %v1761 = vld [vmem:[#allocation2 + $0x10] sm:$0x3f]
        %v1762 = vld [vmem:[#allocation2 + $0x18] sm:$0x3f]
        %v1763 = vpack.c.bf16 %v1761, %v1759
        %v1764 = vpack.c.bf16 %v1762, %v1760
        %s1765 = scalar_lea.vmem %s1, 1536
        %v1766 = vld [vmem:[%s1765] sm:$0xff]
        %v1767 = vld [vmem:[%s1765 + $0x8] sm:$0xff]
        %v1768 = vld [vmem:[%s1765 + $0x10] sm:$0xff]
        %v1769 = vld [vmem:[%s1765 + $0x18] sm:$0xff]
        %v1770 = vld [vmem:[%s1765 + $0x20] sm:$0xff]
        %v1771 = vld [vmem:[%s1765 + $0x28] sm:$0xff]
        %v1772 = vld [vmem:[%s1765 + $0x30] sm:$0xff]
        %v1773 = vld [vmem:[%s1765 + $0x38] sm:$0xff]
        %v1774 = vld [vmem:[%s1765 + $0x40] sm:$0xff]
        %v1775 = vld [vmem:[%s1765 + $0x48] sm:$0xff]
        %v1776 = vld [vmem:[%s1765 + $0x50] sm:$0xff]
        %v1777 = vld [vmem:[%s1765 + $0x58] sm:$0xff]
        %v1778 = vld [vmem:[%s1765 + $0x60] sm:$0xff]
        %v1779 = vld [vmem:[%s1765 + $0x68] sm:$0xff]
        %v1780 = vld [vmem:[%s1765 + $0x70] sm:$0xff]
        %v1781 = vld [vmem:[%s1765 + $0x78] sm:$0xff]
        %v1782 = vld [vmem:[%s1765 + $0x80] sm:$0xff]
        %v1783 = vld [vmem:[%s1765 + $0x88] sm:$0xff]
        %v1784 = vld [vmem:[%s1765 + $0x90] sm:$0xff]
        %v1785 = vld [vmem:[%s1765 + $0x98] sm:$0xff]
        %v1786 = vld [vmem:[%s1765 + $0xa0] sm:$0xff]
        %v1787 = vld [vmem:[%s1765 + $0xa8] sm:$0xff]
        %v1788 = vld [vmem:[%s1765 + $0xb0] sm:$0xff]
        %v1789 = vld [vmem:[%s1765 + $0xb8] sm:$0xff]
        %v1790 = vld [vmem:[%s1765 + $0xc0] sm:$0xff]
        %v1791 = vld [vmem:[%s1765 + $0xc8] sm:$0xff]
        %v1792 = vld [vmem:[%s1765 + $0xd0] sm:$0xff]
        %v1793 = vld [vmem:[%s1765 + $0xd8] sm:$0xff]
        %v1794 = vld [vmem:[%s1765 + $0xe0] sm:$0xff]
        %v1795 = vld [vmem:[%s1765 + $0xe8] sm:$0xff]
        %v1796 = vld [vmem:[%s1765 + $0xf0] sm:$0xff]
        %v1797 = vld [vmem:[%s1765 + $0xf8] sm:$0xff]
        %v1800 = vrot.slane %v1763, 3
        %v1801 = vrot.slane %v1764, 3
        %v1836 = vunpack.c.l.b16 %v1766
        %v1837 = vunpack.c.h.b16 %v1766
        %v1838 = vunpack.c.l.b16 %v1767
        %v1839 = vunpack.c.h.b16 %v1767
        %v1840 = vunpack.c.l.b16 %v1768
        %v1841 = vunpack.c.h.b16 %v1768
        %v1842 = vunpack.c.l.b16 %v1769
        %v1843 = vunpack.c.h.b16 %v1769
        %v1844 = vunpack.c.l.b16 %v1770
        %v1845 = vunpack.c.h.b16 %v1770
        %v1846 = vunpack.c.l.b16 %v1771
        %v1847 = vunpack.c.h.b16 %v1771
        %v1848 = vunpack.c.l.b16 %v1772
        %v1849 = vunpack.c.h.b16 %v1772
        %v1850 = vunpack.c.l.b16 %v1773
        %v1851 = vunpack.c.h.b16 %v1773
        %v1852 = vunpack.c.l.b16 %v1774
        %v1853 = vunpack.c.h.b16 %v1774
        %v1854 = vunpack.c.l.b16 %v1775
        %v1855 = vunpack.c.h.b16 %v1775
        %v1856 = vunpack.c.l.b16 %v1776
        %v1857 = vunpack.c.h.b16 %v1776
        %v1858 = vunpack.c.l.b16 %v1777
        %v1859 = vunpack.c.h.b16 %v1777
        %v1860 = vunpack.c.l.b16 %v1778
        %v1861 = vunpack.c.h.b16 %v1778
        %v1862 = vunpack.c.l.b16 %v1779
        %v1863 = vunpack.c.h.b16 %v1779
        %v1864 = vunpack.c.l.b16 %v1780
        %v1865 = vunpack.c.h.b16 %v1780
        %v1866 = vunpack.c.l.b16 %v1781
        %v1867 = vunpack.c.h.b16 %v1781
        %v1868 = vunpack.c.l.b16 %v1782
        %v1869 = vunpack.c.h.b16 %v1782
        %v1870 = vunpack.c.l.b16 %v1783
        %v1871 = vunpack.c.h.b16 %v1783
        %v1872 = vunpack.c.l.b16 %v1784
        %v1873 = vunpack.c.h.b16 %v1784
        %v1874 = vunpack.c.l.b16 %v1785
        %v1875 = vunpack.c.h.b16 %v1785
        %v1876 = vunpack.c.l.b16 %v1786
        %v1877 = vunpack.c.h.b16 %v1786
        %v1878 = vunpack.c.l.b16 %v1787
        %v1879 = vunpack.c.h.b16 %v1787
        %v1880 = vunpack.c.l.b16 %v1788
        %v1881 = vunpack.c.h.b16 %v1788
        %v1882 = vunpack.c.l.b16 %v1789
        %v1883 = vunpack.c.h.b16 %v1789
        %v1884 = vunpack.c.l.b16 %v1790
        %v1885 = vunpack.c.h.b16 %v1790
        %v1886 = vunpack.c.l.b16 %v1791
        %v1887 = vunpack.c.h.b16 %v1791
        %v1888 = vunpack.c.l.b16 %v1792
        %v1889 = vunpack.c.h.b16 %v1792
        %v1890 = vunpack.c.l.b16 %v1793
        %v1891 = vunpack.c.h.b16 %v1793
        %v1892 = vunpack.c.l.b16 %v1794
        %v1893 = vunpack.c.h.b16 %v1794
        %v1894 = vunpack.c.l.b16 %v1795
        %v1895 = vunpack.c.h.b16 %v1795
        %v1896 = vunpack.c.l.b16 %v1796
        %v1897 = vunpack.c.h.b16 %v1796
        %v1898 = vunpack.c.l.b16 %v1797
        %v1899 = vunpack.c.h.b16 %v1797
        %v1900 = vpack.c.b16 %v1838, %v1836
        %v1901 = vpack.c.b16 %v1839, %v1837
        %v1902 = vpack.c.b16 %v1842, %v1840
        %v1903 = vpack.c.b16 %v1843, %v1841
        %v1904 = vpack.c.b16 %v1846, %v1844
        %v1905 = vpack.c.b16 %v1847, %v1845
        %v1906 = vpack.c.b16 %v1850, %v1848
        %v1907 = vpack.c.b16 %v1851, %v1849
        %v1908 = vpack.c.b16 %v1854, %v1852
        %v1909 = vpack.c.b16 %v1855, %v1853
        %v1910 = vpack.c.b16 %v1858, %v1856
        %v1911 = vpack.c.b16 %v1859, %v1857
        %v1912 = vpack.c.b16 %v1862, %v1860
        %v1913 = vpack.c.b16 %v1863, %v1861
        %v1914 = vpack.c.b16 %v1866, %v1864
        %v1915 = vpack.c.b16 %v1867, %v1865
        %v1916 = vpack.c.b16 %v1870, %v1868
        %v1917 = vpack.c.b16 %v1871, %v1869
        %v1918 = vpack.c.b16 %v1874, %v1872
        %v1919 = vpack.c.b16 %v1875, %v1873
        %v1920 = vpack.c.b16 %v1878, %v1876
        %v1921 = vpack.c.b16 %v1879, %v1877
        %v1922 = vpack.c.b16 %v1882, %v1880
        %v1923 = vpack.c.b16 %v1883, %v1881
        %v1924 = vpack.c.b16 %v1886, %v1884
        %v1925 = vpack.c.b16 %v1887, %v1885
        %v1926 = vpack.c.b16 %v1890, %v1888
        %v1927 = vpack.c.b16 %v1891, %v1889
        %v1928 = vpack.c.b16 %v1894, %v1892
        %v1929 = vpack.c.b16 %v1895, %v1893
        %v1930 = vpack.c.b16 %v1898, %v1896
        %v1931 = vpack.c.b16 %v1899, %v1897
        %1964 = vmatprep.subr.bf16.mxu0 %v1915
        %1965 = vmatpush1.bf16.msra.mxu0 %v1914
        %1966 = vmatprep.subr.bf16.mxu0 %v1913
        %1967 = vmatpush1.bf16.msra.mxu0 %v1912
        %1968 = vmatprep.subr.bf16.mxu0 %v1911
        %1969 = vmatpush1.bf16.msra.mxu0 %v1910
        %1970 = vmatprep.subr.bf16.mxu0 %v1909
        %1971 = vmatpush1.bf16.msra.mxu0 %v1908
        %1972 = vmatprep.subr.bf16.mxu0 %v1907
        %1973 = vmatpush1.bf16.msra.mxu0 %v1906
        %1974 = vmatprep.subr.bf16.mxu0 %v1905
        %1975 = vmatpush1.bf16.msra.mxu0 %v1904
        %1976 = vmatprep.subr.bf16.mxu0 %v1903
        %1977 = vmatpush1.bf16.msra.mxu0 %v1902
        %1978 = vmatprep.subr.bf16.mxu0 %v1901
        %1979 = vmatpush1.bf16.msra.mxu0 %v1900
        %1980 = vmatprep.subr.bf16.mxu0 %v1931
        %1981 = vmatpush2.bf16.msra.mxu0 %v1930
        %1982 = vmatprep.subr.bf16.mxu0 %v1929
        %1983 = vmatpush2.bf16.msra.mxu0 %v1928
        %1984 = vmatprep.subr.bf16.mxu0 %v1927
        %1985 = vmatpush2.bf16.msra.mxu0 %v1926
        %1986 = vmatprep.subr.bf16.mxu0 %v1925
        %1987 = vmatpush2.bf16.msra.mxu0 %v1924
        %1988 = vmatprep.subr.bf16.mxu0 %v1923
        %1989 = vmatpush2.bf16.msra.mxu0 %v1922
        %1990 = vmatprep.subr.bf16.mxu0 %v1921
        %1991 = vmatpush2.bf16.msra.mxu0 %v1920
        %1992 = vmatprep.subr.bf16.mxu0 %v1919
        %1993 = vmatpush2.bf16.msra.mxu0 %v1918
        %1994 = vmatprep.subr.bf16.mxu0 %v1917
        %1995 = vmatpush2.bf16.msra.mxu0 %v1916
        %1996 = vmatprep.mubr.bf16.mxu0 %v1801
        %1997 = vmatmul.mubr.bf16.gmra.mxu0 %v1800
        %v1998 = vpop.f32.mrf.mxu0
        %v1999 = vadd.f32 0.0, %v1998
        %v2000 = vpop.f32.mrf.mxu0
        %v2001 = vadd.f32 0.0, %v2000
        %v2002 = vpop.f32.mrf.mxu0
        %v2003 = vpop.f32.mrf.mxu0
        %2004 = vdwg.mxu0
        %v2005 = vadd.f32 %v1757, %v1999
        %v2006 = vadd.f32 %v1758, %v2001
        %v2007 = vld [vmem:[%s245] sm:$0xff]
        %v2008 = vld [vmem:[%s245 + $0x8] sm:$0xff]
        %v2009 = vpack.c.bf16 %v2007, %v2007
        %v2010 = vpack.c.bf16 %v2008, %v2008
        %s2011 = scalar_lea.vmem %s1, 1792
        %v2012 = vld [vmem:[%s2011] sm:$0xff]
        %v2013 = vld [vmem:[%s2011 + $0x8] sm:$0xff]
        %v2014 = vld [vmem:[%s2011 + $0x10] sm:$0xff]
        %v2015 = vld [vmem:[%s2011 + $0x18] sm:$0xff]
        %v2016 = vld [vmem:[%s2011 + $0x20] sm:$0xff]
        %v2017 = vld [vmem:[%s2011 + $0x28] sm:$0xff]
        %v2018 = vld [vmem:[%s2011 + $0x30] sm:$0xff]
        %v2019 = vld [vmem:[%s2011 + $0x38] sm:$0xff]
        %v2020 = vld [vmem:[%s2011 + $0x40] sm:$0xff]
        %v2021 = vld [vmem:[%s2011 + $0x48] sm:$0xff]
        %v2022 = vld [vmem:[%s2011 + $0x50] sm:$0xff]
        %v2023 = vld [vmem:[%s2011 + $0x58] sm:$0xff]
        %v2024 = vld [vmem:[%s2011 + $0x60] sm:$0xff]
        %v2025 = vld [vmem:[%s2011 + $0x68] sm:$0xff]
        %v2026 = vld [vmem:[%s2011 + $0x70] sm:$0xff]
        %v2027 = vld [vmem:[%s2011 + $0x78] sm:$0xff]
        %v2028 = vld [vmem:[%s2011 + $0x80] sm:$0xff]
        %v2029 = vld [vmem:[%s2011 + $0x88] sm:$0xff]
        %v2030 = vld [vmem:[%s2011 + $0x90] sm:$0xff]
        %v2031 = vld [vmem:[%s2011 + $0x98] sm:$0xff]
        %v2032 = vld [vmem:[%s2011 + $0xa0] sm:$0xff]
        %v2033 = vld [vmem:[%s2011 + $0xa8] sm:$0xff]
        %v2034 = vld [vmem:[%s2011 + $0xb0] sm:$0xff]
        %v2035 = vld [vmem:[%s2011 + $0xb8] sm:$0xff]
        %v2036 = vld [vmem:[%s2011 + $0xc0] sm:$0xff]
        %v2037 = vld [vmem:[%s2011 + $0xc8] sm:$0xff]
        %v2038 = vld [vmem:[%s2011 + $0xd0] sm:$0xff]
        %v2039 = vld [vmem:[%s2011 + $0xd8] sm:$0xff]
        %v2040 = vld [vmem:[%s2011 + $0xe0] sm:$0xff]
        %v2041 = vld [vmem:[%s2011 + $0xe8] sm:$0xff]
        %v2042 = vld [vmem:[%s2011 + $0xf0] sm:$0xff]
        %v2043 = vld [vmem:[%s2011 + $0xf8] sm:$0xff]
        %v2076 = vunpack.c.l.b16 %v2012
        %v2077 = vunpack.c.h.b16 %v2012
        %v2078 = vunpack.c.l.b16 %v2013
        %v2079 = vunpack.c.h.b16 %v2013
        %v2080 = vunpack.c.l.b16 %v2014
        %v2081 = vunpack.c.h.b16 %v2014
        %v2082 = vunpack.c.l.b16 %v2015
        %v2083 = vunpack.c.h.b16 %v2015
        %v2084 = vunpack.c.l.b16 %v2016
        %v2085 = vunpack.c.h.b16 %v2016
        %v2086 = vunpack.c.l.b16 %v2017
        %v2087 = vunpack.c.h.b16 %v2017
        %v2088 = vunpack.c.l.b16 %v2018
        %v2089 = vunpack.c.h.b16 %v2018
        %v2090 = vunpack.c.l.b16 %v2019
        %v2091 = vunpack.c.h.b16 %v2019
        %v2092 = vunpack.c.l.b16 %v2020
        %v2093 = vunpack.c.h.b16 %v2020
        %v2094 = vunpack.c.l.b16 %v2021
        %v2095 = vunpack.c.h.b16 %v2021
        %v2096 = vunpack.c.l.b16 %v2022
        %v2097 = vunpack.c.h.b16 %v2022
        %v2098 = vunpack.c.l.b16 %v2023
        %v2099 = vunpack.c.h.b16 %v2023
        %v2100 = vunpack.c.l.b16 %v2024
        %v2101 = vunpack.c.h.b16 %v2024
        %v2102 = vunpack.c.l.b16 %v2025
        %v2103 = vunpack.c.h.b16 %v2025
        %v2104 = vunpack.c.l.b16 %v2026
        %v2105 = vunpack.c.h.b16 %v2026
        %v2106 = vunpack.c.l.b16 %v2027
        %v2107 = vunpack.c.h.b16 %v2027
        %v2108 = vunpack.c.l.b16 %v2028
        %v2109 = vunpack.c.h.b16 %v2028
        %v2110 = vunpack.c.l.b16 %v2029
        %v2111 = vunpack.c.h.b16 %v2029
        %v2112 = vunpack.c.l.b16 %v2030
        %v2113 = vunpack.c.h.b16 %v2030
        %v2114 = vunpack.c.l.b16 %v2031
        %v2115 = vunpack.c.h.b16 %v2031
        %v2116 = vunpack.c.l.b16 %v2032
        %v2117 = vunpack.c.h.b16 %v2032
        %v2118 = vunpack.c.l.b16 %v2033
        %v2119 = vunpack.c.h.b16 %v2033
        %v2120 = vunpack.c.l.b16 %v2034
        %v2121 = vunpack.c.h.b16 %v2034
        %v2122 = vunpack.c.l.b16 %v2035
        %v2123 = vunpack.c.h.b16 %v2035
        %v2124 = vunpack.c.l.b16 %v2036
        %v2125 = vunpack.c.h.b16 %v2036
        %v2126 = vunpack.c.l.b16 %v2037
        %v2127 = vunpack.c.h.b16 %v2037
        %v2128 = vunpack.c.l.b16 %v2038
        %v2129 = vunpack.c.h.b16 %v2038
        %v2130 = vunpack.c.l.b16 %v2039
        %v2131 = vunpack.c.h.b16 %v2039
        %v2132 = vunpack.c.l.b16 %v2040
        %v2133 = vunpack.c.h.b16 %v2040
        %v2134 = vunpack.c.l.b16 %v2041
        %v2135 = vunpack.c.h.b16 %v2041
        %v2136 = vunpack.c.l.b16 %v2042
        %v2137 = vunpack.c.h.b16 %v2042
        %v2138 = vunpack.c.l.b16 %v2043
        %v2139 = vunpack.c.h.b16 %v2043
        %v2140 = vpack.c.b16 %v2078, %v2076
        %v2141 = vpack.c.b16 %v2079, %v2077
        %v2142 = vpack.c.b16 %v2082, %v2080
        %v2143 = vpack.c.b16 %v2083, %v2081
        %v2144 = vpack.c.b16 %v2086, %v2084
        %v2145 = vpack.c.b16 %v2087, %v2085
        %v2146 = vpack.c.b16 %v2090, %v2088
        %v2147 = vpack.c.b16 %v2091, %v2089
        %v2148 = vpack.c.b16 %v2094, %v2092
        %v2149 = vpack.c.b16 %v2095, %v2093
        %v2150 = vpack.c.b16 %v2098, %v2096
        %v2151 = vpack.c.b16 %v2099, %v2097
        %v2152 = vpack.c.b16 %v2102, %v2100
        %v2153 = vpack.c.b16 %v2103, %v2101
        %v2154 = vpack.c.b16 %v2106, %v2104
        %v2155 = vpack.c.b16 %v2107, %v2105
        %v2156 = vpack.c.b16 %v2110, %v2108
        %v2157 = vpack.c.b16 %v2111, %v2109
        %v2158 = vpack.c.b16 %v2114, %v2112
        %v2159 = vpack.c.b16 %v2115, %v2113
        %v2160 = vpack.c.b16 %v2118, %v2116
        %v2161 = vpack.c.b16 %v2119, %v2117
        %v2162 = vpack.c.b16 %v2122, %v2120
        %v2163 = vpack.c.b16 %v2123, %v2121
        %v2164 = vpack.c.b16 %v2126, %v2124
        %v2165 = vpack.c.b16 %v2127, %v2125
        %v2166 = vpack.c.b16 %v2130, %v2128
        %v2167 = vpack.c.b16 %v2131, %v2129
        %v2168 = vpack.c.b16 %v2134, %v2132
        %v2169 = vpack.c.b16 %v2135, %v2133
        %v2170 = vpack.c.b16 %v2138, %v2136
        %v2171 = vpack.c.b16 %v2139, %v2137
        %2204 = vmatprep.subr.bf16.mxu0 %v2155
        %2205 = vmatpush1.bf16.msra.mxu0 %v2154
        %2206 = vmatprep.subr.bf16.mxu0 %v2153
        %2207 = vmatpush1.bf16.msra.mxu0 %v2152
        %2208 = vmatprep.subr.bf16.mxu0 %v2151
        %2209 = vmatpush1.bf16.msra.mxu0 %v2150
        %2210 = vmatprep.subr.bf16.mxu0 %v2149
        %2211 = vmatpush1.bf16.msra.mxu0 %v2148
        %2212 = vmatprep.subr.bf16.mxu0 %v2147
        %2213 = vmatpush1.bf16.msra.mxu0 %v2146
        %2214 = vmatprep.subr.bf16.mxu0 %v2145
        %2215 = vmatpush1.bf16.msra.mxu0 %v2144
        %2216 = vmatprep.subr.bf16.mxu0 %v2143
        %2217 = vmatpush1.bf16.msra.mxu0 %v2142
        %2218 = vmatprep.subr.bf16.mxu0 %v2141
        %2219 = vmatpush1.bf16.msra.mxu0 %v2140
        %2220 = vmatprep.subr.bf16.mxu0 %v2171
        %2221 = vmatpush2.bf16.msra.mxu0 %v2170
        %2222 = vmatprep.subr.bf16.mxu0 %v2169
        %2223 = vmatpush2.bf16.msra.mxu0 %v2168
        %2224 = vmatprep.subr.bf16.mxu0 %v2167
        %2225 = vmatpush2.bf16.msra.mxu0 %v2166
        %2226 = vmatprep.subr.bf16.mxu0 %v2165
        %2227 = vmatpush2.bf16.msra.mxu0 %v2164
        %2228 = vmatprep.subr.bf16.mxu0 %v2163
        %2229 = vmatpush2.bf16.msra.mxu0 %v2162
        %2230 = vmatprep.subr.bf16.mxu0 %v2161
        %2231 = vmatpush2.bf16.msra.mxu0 %v2160
        %2232 = vmatprep.subr.bf16.mxu0 %v2159
        %2233 = vmatpush2.bf16.msra.mxu0 %v2158
        %2234 = vmatprep.subr.bf16.mxu0 %v2157
        %2235 = vmatpush2.bf16.msra.mxu0 %v2156
        %2236 = vmatprep.mubr.bf16.mxu0 %v2010
        %2237 = vmatmul.mubr.bf16.gmra.mxu0 %v2009
        %v2238 = vpop.f32.mrf.mxu0
        %v2239 = vadd.f32 0.0, %v2238
        %v2240 = vpop.f32.mrf.mxu0
        %v2241 = vadd.f32 0.0, %v2240
        %v2242 = vpop.f32.mrf.mxu0
        %v2243 = vpop.f32.mrf.mxu0
        %2244 = vdwg.mxu0
        %v2245 = vadd.f32 %v2005, %v2239
        %v2246 = vadd.f32 %v2006, %v2241
        %v2247 = vld [vmem:[%s245] sm:$0xfe]
        %v2248 = vld [vmem:[%s245 + $0x8] sm:$0xfe]
        %v2249 = vld [vmem:[%s245 + $0x10] sm:$0x1]
        %v2250 = vld [vmem:[%s245 + $0x18] sm:$0x1]
        %v2251 = vpack.c.bf16 %v2249, %v2247
        %v2252 = vpack.c.bf16 %v2250, %v2248
        %s2253 = scalar_lea.vmem %s1, 2048
        %v2254 = vld [vmem:[%s2253] sm:$0xff]
        %v2255 = vld [vmem:[%s2253 + $0x8] sm:$0xff]
        %v2256 = vld [vmem:[%s2253 + $0x10] sm:$0xff]
        %v2257 = vld [vmem:[%s2253 + $0x18] sm:$0xff]
        %v2258 = vld [vmem:[%s2253 + $0x20] sm:$0xff]
        %v2259 = vld [vmem:[%s2253 + $0x28] sm:$0xff]
        %v2260 = vld [vmem:[%s2253 + $0x30] sm:$0xff]
        %v2261 = vld [vmem:[%s2253 + $0x38] sm:$0xff]
        %v2262 = vld [vmem:[%s2253 + $0x40] sm:$0xff]
        %v2263 = vld [vmem:[%s2253 + $0x48] sm:$0xff]
        %v2264 = vld [vmem:[%s2253 + $0x50] sm:$0xff]
        %v2265 = vld [vmem:[%s2253 + $0x58] sm:$0xff]
        %v2266 = vld [vmem:[%s2253 + $0x60] sm:$0xff]
        %v2267 = vld [vmem:[%s2253 + $0x68] sm:$0xff]
        %v2268 = vld [vmem:[%s2253 + $0x70] sm:$0xff]
        %v2269 = vld [vmem:[%s2253 + $0x78] sm:$0xff]
        %v2270 = vld [vmem:[%s2253 + $0x80] sm:$0xff]
        %v2271 = vld [vmem:[%s2253 + $0x88] sm:$0xff]
        %v2272 = vld [vmem:[%s2253 + $0x90] sm:$0xff]
        %v2273 = vld [vmem:[%s2253 + $0x98] sm:$0xff]
        %v2274 = vld [vmem:[%s2253 + $0xa0] sm:$0xff]
        %v2275 = vld [vmem:[%s2253 + $0xa8] sm:$0xff]
        %v2276 = vld [vmem:[%s2253 + $0xb0] sm:$0xff]
        %v2277 = vld [vmem:[%s2253 + $0xb8] sm:$0xff]
        %v2278 = vld [vmem:[%s2253 + $0xc0] sm:$0xff]
        %v2279 = vld [vmem:[%s2253 + $0xc8] sm:$0xff]
        %v2280 = vld [vmem:[%s2253 + $0xd0] sm:$0xff]
        %v2281 = vld [vmem:[%s2253 + $0xd8] sm:$0xff]
        %v2282 = vld [vmem:[%s2253 + $0xe0] sm:$0xff]
        %v2283 = vld [vmem:[%s2253 + $0xe8] sm:$0xff]
        %v2284 = vld [vmem:[%s2253 + $0xf0] sm:$0xff]
        %v2285 = vld [vmem:[%s2253 + $0xf8] sm:$0xff]
        %v2287 = vshrl.u32 %v2251, 16
        %v2289 = vshll.u32 %v2251, 16
        %v2291 = vrot.slane %v2289, 1
        %v2292 = vor.u32 %v2287, %v2291
        %v2294 = vshrl.u32 %v2252, 16
        %v2296 = vshll.u32 %v2252, 16
        %v2298 = vrot.slane %v2296, 1
        %v2299 = vor.u32 %v2294, %v2298
        %v2334 = vunpack.c.l.b16 %v2254
        %v2335 = vunpack.c.h.b16 %v2254
        %v2336 = vunpack.c.l.b16 %v2255
        %v2337 = vunpack.c.h.b16 %v2255
        %v2338 = vunpack.c.l.b16 %v2256
        %v2339 = vunpack.c.h.b16 %v2256
        %v2340 = vunpack.c.l.b16 %v2257
        %v2341 = vunpack.c.h.b16 %v2257
        %v2342 = vunpack.c.l.b16 %v2258
        %v2343 = vunpack.c.h.b16 %v2258
        %v2344 = vunpack.c.l.b16 %v2259
        %v2345 = vunpack.c.h.b16 %v2259
        %v2346 = vunpack.c.l.b16 %v2260
        %v2347 = vunpack.c.h.b16 %v2260
        %v2348 = vunpack.c.l.b16 %v2261
        %v2349 = vunpack.c.h.b16 %v2261
        %v2350 = vunpack.c.l.b16 %v2262
        %v2351 = vunpack.c.h.b16 %v2262
        %v2352 = vunpack.c.l.b16 %v2263
        %v2353 = vunpack.c.h.b16 %v2263
        %v2354 = vunpack.c.l.b16 %v2264
        %v2355 = vunpack.c.h.b16 %v2264
        %v2356 = vunpack.c.l.b16 %v2265
        %v2357 = vunpack.c.h.b16 %v2265
        %v2358 = vunpack.c.l.b16 %v2266
        %v2359 = vunpack.c.h.b16 %v2266
        %v2360 = vunpack.c.l.b16 %v2267
        %v2361 = vunpack.c.h.b16 %v2267
        %v2362 = vunpack.c.l.b16 %v2268
        %v2363 = vunpack.c.h.b16 %v2268
        %v2364 = vunpack.c.l.b16 %v2269
        %v2365 = vunpack.c.h.b16 %v2269
        %v2366 = vunpack.c.l.b16 %v2270
        %v2367 = vunpack.c.h.b16 %v2270
        %v2368 = vunpack.c.l.b16 %v2271
        %v2369 = vunpack.c.h.b16 %v2271
        %v2370 = vunpack.c.l.b16 %v2272
        %v2371 = vunpack.c.h.b16 %v2272
        %v2372 = vunpack.c.l.b16 %v2273
        %v2373 = vunpack.c.h.b16 %v2273
        %v2374 = vunpack.c.l.b16 %v2274
        %v2375 = vunpack.c.h.b16 %v2274
        %v2376 = vunpack.c.l.b16 %v2275
        %v2377 = vunpack.c.h.b16 %v2275
        %v2378 = vunpack.c.l.b16 %v2276
        %v2379 = vunpack.c.h.b16 %v2276
        %v2380 = vunpack.c.l.b16 %v2277
        %v2381 = vunpack.c.h.b16 %v2277
        %v2382 = vunpack.c.l.b16 %v2278
        %v2383 = vunpack.c.h.b16 %v2278
        %v2384 = vunpack.c.l.b16 %v2279
        %v2385 = vunpack.c.h.b16 %v2279
        %v2386 = vunpack.c.l.b16 %v2280
        %v2387 = vunpack.c.h.b16 %v2280
        %v2388 = vunpack.c.l.b16 %v2281
        %v2389 = vunpack.c.h.b16 %v2281
        %v2390 = vunpack.c.l.b16 %v2282
        %v2391 = vunpack.c.h.b16 %v2282
        %v2392 = vunpack.c.l.b16 %v2283
        %v2393 = vunpack.c.h.b16 %v2283
        %v2394 = vunpack.c.l.b16 %v2284
        %v2395 = vunpack.c.h.b16 %v2284
        %v2396 = vunpack.c.l.b16 %v2285
        %v2397 = vunpack.c.h.b16 %v2285
        %v2398 = vpack.c.b16 %v2336, %v2334
        %v2399 = vpack.c.b16 %v2337, %v2335
        %v2400 = vpack.c.b16 %v2340, %v2338
        %v2401 = vpack.c.b16 %v2341, %v2339
        %v2402 = vpack.c.b16 %v2344, %v2342
        %v2403 = vpack.c.b16 %v2345, %v2343
        %v2404 = vpack.c.b16 %v2348, %v2346
        %v2405 = vpack.c.b16 %v2349, %v2347
        %v2406 = vpack.c.b16 %v2352, %v2350
        %v2407 = vpack.c.b16 %v2353, %v2351
        %v2408 = vpack.c.b16 %v2356, %v2354
        %v2409 = vpack.c.b16 %v2357, %v2355
        %v2410 = vpack.c.b16 %v2360, %v2358
        %v2411 = vpack.c.b16 %v2361, %v2359
        %v2412 = vpack.c.b16 %v2364, %v2362
        %v2413 = vpack.c.b16 %v2365, %v2363
        %v2414 = vpack.c.b16 %v2368, %v2366
        %v2415 = vpack.c.b16 %v2369, %v2367
        %v2416 = vpack.c.b16 %v2372, %v2370
        %v2417 = vpack.c.b16 %v2373, %v2371
        %v2418 = vpack.c.b16 %v2376, %v2374
        %v2419 = vpack.c.b16 %v2377, %v2375
        %v2420 = vpack.c.b16 %v2380, %v2378
        %v2421 = vpack.c.b16 %v2381, %v2379
        %v2422 = vpack.c.b16 %v2384, %v2382
        %v2423 = vpack.c.b16 %v2385, %v2383
        %v2424 = vpack.c.b16 %v2388, %v2386
        %v2425 = vpack.c.b16 %v2389, %v2387
        %v2426 = vpack.c.b16 %v2392, %v2390
        %v2427 = vpack.c.b16 %v2393, %v2391
        %v2428 = vpack.c.b16 %v2396, %v2394
        %v2429 = vpack.c.b16 %v2397, %v2395
        %2462 = vmatprep.subr.bf16.mxu0 %v2413
        %2463 = vmatpush1.bf16.msra.mxu0 %v2412
        %2464 = vmatprep.subr.bf16.mxu0 %v2411
        %2465 = vmatpush1.bf16.msra.mxu0 %v2410
        %2466 = vmatprep.subr.bf16.mxu0 %v2409
        %2467 = vmatpush1.bf16.msra.mxu0 %v2408
        %2468 = vmatprep.subr.bf16.mxu0 %v2407
        %2469 = vmatpush1.bf16.msra.mxu0 %v2406
        %2470 = vmatprep.subr.bf16.mxu0 %v2405
        %2471 = vmatpush1.bf16.msra.mxu0 %v2404
        %2472 = vmatprep.subr.bf16.mxu0 %v2403
        %2473 = vmatpush1.bf16.msra.mxu0 %v2402
        %2474 = vmatprep.subr.bf16.mxu0 %v2401
        %2475 = vmatpush1.bf16.msra.mxu0 %v2400
        %2476 = vmatprep.subr.bf16.mxu0 %v2399
        %2477 = vmatpush1.bf16.msra.mxu0 %v2398
        %2478 = vmatprep.subr.bf16.mxu0 %v2429
        %2479 = vmatpush2.bf16.msra.mxu0 %v2428
        %2480 = vmatprep.subr.bf16.mxu0 %v2427
        %2481 = vmatpush2.bf16.msra.mxu0 %v2426
        %2482 = vmatprep.subr.bf16.mxu0 %v2425
        %2483 = vmatpush2.bf16.msra.mxu0 %v2424
        %2484 = vmatprep.subr.bf16.mxu0 %v2423
        %2485 = vmatpush2.bf16.msra.mxu0 %v2422
        %2486 = vmatprep.subr.bf16.mxu0 %v2421
        %2487 = vmatpush2.bf16.msra.mxu0 %v2420
        %2488 = vmatprep.subr.bf16.mxu0 %v2419
        %2489 = vmatpush2.bf16.msra.mxu0 %v2418
        %2490 = vmatprep.subr.bf16.mxu0 %v2417
        %2491 = vmatpush2.bf16.msra.mxu0 %v2416
        %2492 = vmatprep.subr.bf16.mxu0 %v2415
        %2493 = vmatpush2.bf16.msra.mxu0 %v2414
        %2494 = vmatprep.mubr.bf16.mxu0 %v2299
        %2495 = vmatmul.mubr.bf16.gmra.mxu0 %v2292
        %v2496 = vpop.f32.mrf.mxu0
        %v2497 = vadd.f32 0.0, %v2496
        %v2498 = vpop.f32.mrf.mxu0
        %v2499 = vadd.f32 0.0, %v2498
        %v2500 = vpop.f32.mrf.mxu0
        %v2501 = vpop.f32.mrf.mxu0
        %2502 = vdwg.mxu0
        %v2503 = vadd.f32 %v2245, %v2497
        %v2504 = vadd.f32 %v2246, %v2499
        %v2505 = vld [vmem:[%s245] sm:$0xfc]
        %v2506 = vld [vmem:[%s245 + $0x8] sm:$0xfc]
        %v2507 = vld [vmem:[%s245 + $0x10] sm:$0x3]
        %v2508 = vld [vmem:[%s245 + $0x18] sm:$0x3]
        %v2509 = vpack.c.bf16 %v2507, %v2505
        %v2510 = vpack.c.bf16 %v2508, %v2506
        %s2511 = scalar_lea.vmem %s1, 2304
        %v2512 = vld [vmem:[%s2511] sm:$0xff]
        %v2513 = vld [vmem:[%s2511 + $0x8] sm:$0xff]
        %v2514 = vld [vmem:[%s2511 + $0x10] sm:$0xff]
        %v2515 = vld [vmem:[%s2511 + $0x18] sm:$0xff]
        %v2516 = vld [vmem:[%s2511 + $0x20] sm:$0xff]
        %v2517 = vld [vmem:[%s2511 + $0x28] sm:$0xff]
        %v2518 = vld [vmem:[%s2511 + $0x30] sm:$0xff]
        %v2519 = vld [vmem:[%s2511 + $0x38] sm:$0xff]
        %v2520 = vld [vmem:[%s2511 + $0x40] sm:$0xff]
        %v2521 = vld [vmem:[%s2511 + $0x48] sm:$0xff]
        %v2522 = vld [vmem:[%s2511 + $0x50] sm:$0xff]
        %v2523 = vld [vmem:[%s2511 + $0x58] sm:$0xff]
        %v2524 = vld [vmem:[%s2511 + $0x60] sm:$0xff]
        %v2525 = vld [vmem:[%s2511 + $0x68] sm:$0xff]
        %v2526 = vld [vmem:[%s2511 + $0x70] sm:$0xff]
        %v2527 = vld [vmem:[%s2511 + $0x78] sm:$0xff]
        %v2528 = vld [vmem:[%s2511 + $0x80] sm:$0xff]
        %v2529 = vld [vmem:[%s2511 + $0x88] sm:$0xff]
        %v2530 = vld [vmem:[%s2511 + $0x90] sm:$0xff]
        %v2531 = vld [vmem:[%s2511 + $0x98] sm:$0xff]
        %v2532 = vld [vmem:[%s2511 + $0xa0] sm:$0xff]
        %v2533 = vld [vmem:[%s2511 + $0xa8] sm:$0xff]
        %v2534 = vld [vmem:[%s2511 + $0xb0] sm:$0xff]
        %v2535 = vld [vmem:[%s2511 + $0xb8] sm:$0xff]
        %v2536 = vld [vmem:[%s2511 + $0xc0] sm:$0xff]
        %v2537 = vld [vmem:[%s2511 + $0xc8] sm:$0xff]
        %v2538 = vld [vmem:[%s2511 + $0xd0] sm:$0xff]
        %v2539 = vld [vmem:[%s2511 + $0xd8] sm:$0xff]
        %v2540 = vld [vmem:[%s2511 + $0xe0] sm:$0xff]
        %v2541 = vld [vmem:[%s2511 + $0xe8] sm:$0xff]
        %v2542 = vld [vmem:[%s2511 + $0xf0] sm:$0xff]
        %v2543 = vld [vmem:[%s2511 + $0xf8] sm:$0xff]
        %v2546 = vrot.slane %v2509, 1
        %v2547 = vrot.slane %v2510, 1
        %v2582 = vunpack.c.l.b16 %v2512
        %v2583 = vunpack.c.h.b16 %v2512
        %v2584 = vunpack.c.l.b16 %v2513
        %v2585 = vunpack.c.h.b16 %v2513
        %v2586 = vunpack.c.l.b16 %v2514
        %v2587 = vunpack.c.h.b16 %v2514
        %v2588 = vunpack.c.l.b16 %v2515
        %v2589 = vunpack.c.h.b16 %v2515
        %v2590 = vunpack.c.l.b16 %v2516
        %v2591 = vunpack.c.h.b16 %v2516
        %v2592 = vunpack.c.l.b16 %v2517
        %v2593 = vunpack.c.h.b16 %v2517
        %v2594 = vunpack.c.l.b16 %v2518
        %v2595 = vunpack.c.h.b16 %v2518
        %v2596 = vunpack.c.l.b16 %v2519
        %v2597 = vunpack.c.h.b16 %v2519
        %v2598 = vunpack.c.l.b16 %v2520
        %v2599 = vunpack.c.h.b16 %v2520
        %v2600 = vunpack.c.l.b16 %v2521
        %v2601 = vunpack.c.h.b16 %v2521
        %v2602 = vunpack.c.l.b16 %v2522
        %v2603 = vunpack.c.h.b16 %v2522
        %v2604 = vunpack.c.l.b16 %v2523
        %v2605 = vunpack.c.h.b16 %v2523
        %v2606 = vunpack.c.l.b16 %v2524
        %v2607 = vunpack.c.h.b16 %v2524
        %v2608 = vunpack.c.l.b16 %v2525
        %v2609 = vunpack.c.h.b16 %v2525
        %v2610 = vunpack.c.l.b16 %v2526
        %v2611 = vunpack.c.h.b16 %v2526
        %v2612 = vunpack.c.l.b16 %v2527
        %v2613 = vunpack.c.h.b16 %v2527
        %v2614 = vunpack.c.l.b16 %v2528
        %v2615 = vunpack.c.h.b16 %v2528
        %v2616 = vunpack.c.l.b16 %v2529
        %v2617 = vunpack.c.h.b16 %v2529
        %v2618 = vunpack.c.l.b16 %v2530
        %v2619 = vunpack.c.h.b16 %v2530
        %v2620 = vunpack.c.l.b16 %v2531
        %v2621 = vunpack.c.h.b16 %v2531
        %v2622 = vunpack.c.l.b16 %v2532
        %v2623 = vunpack.c.h.b16 %v2532
        %v2624 = vunpack.c.l.b16 %v2533
        %v2625 = vunpack.c.h.b16 %v2533
        %v2626 = vunpack.c.l.b16 %v2534
        %v2627 = vunpack.c.h.b16 %v2534
        %v2628 = vunpack.c.l.b16 %v2535
        %v2629 = vunpack.c.h.b16 %v2535
        %v2630 = vunpack.c.l.b16 %v2536
        %v2631 = vunpack.c.h.b16 %v2536
        %v2632 = vunpack.c.l.b16 %v2537
        %v2633 = vunpack.c.h.b16 %v2537
        %v2634 = vunpack.c.l.b16 %v2538
        %v2635 = vunpack.c.h.b16 %v2538
        %v2636 = vunpack.c.l.b16 %v2539
        %v2637 = vunpack.c.h.b16 %v2539
        %v2638 = vunpack.c.l.b16 %v2540
        %v2639 = vunpack.c.h.b16 %v2540
        %v2640 = vunpack.c.l.b16 %v2541
        %v2641 = vunpack.c.h.b16 %v2541
        %v2642 = vunpack.c.l.b16 %v2542
        %v2643 = vunpack.c.h.b16 %v2542
        %v2644 = vunpack.c.l.b16 %v2543
        %v2645 = vunpack.c.h.b16 %v2543
        %v2646 = vpack.c.b16 %v2584, %v2582
        %v2647 = vpack.c.b16 %v2585, %v2583
        %v2648 = vpack.c.b16 %v2588, %v2586
        %v2649 = vpack.c.b16 %v2589, %v2587
        %v2650 = vpack.c.b16 %v2592, %v2590
        %v2651 = vpack.c.b16 %v2593, %v2591
        %v2652 = vpack.c.b16 %v2596, %v2594
        %v2653 = vpack.c.b16 %v2597, %v2595
        %v2654 = vpack.c.b16 %v2600, %v2598
        %v2655 = vpack.c.b16 %v2601, %v2599
        %v2656 = vpack.c.b16 %v2604, %v2602
        %v2657 = vpack.c.b16 %v2605, %v2603
        %v2658 = vpack.c.b16 %v2608, %v2606
        %v2659 = vpack.c.b16 %v2609, %v2607
        %v2660 = vpack.c.b16 %v2612, %v2610
        %v2661 = vpack.c.b16 %v2613, %v2611
        %v2662 = vpack.c.b16 %v2616, %v2614
        %v2663 = vpack.c.b16 %v2617, %v2615
        %v2664 = vpack.c.b16 %v2620, %v2618
        %v2665 = vpack.c.b16 %v2621, %v2619
        %v2666 = vpack.c.b16 %v2624, %v2622
        %v2667 = vpack.c.b16 %v2625, %v2623
        %v2668 = vpack.c.b16 %v2628, %v2626
        %v2669 = vpack.c.b16 %v2629, %v2627
        %v2670 = vpack.c.b16 %v2632, %v2630
        %v2671 = vpack.c.b16 %v2633, %v2631
        %v2672 = vpack.c.b16 %v2636, %v2634
        %v2673 = vpack.c.b16 %v2637, %v2635
        %v2674 = vpack.c.b16 %v2640, %v2638
        %v2675 = vpack.c.b16 %v2641, %v2639
        %v2676 = vpack.c.b16 %v2644, %v2642
        %v2677 = vpack.c.b16 %v2645, %v2643
        %2710 = vmatprep.subr.bf16.mxu0 %v2661
        %2711 = vmatpush1.bf16.msra.mxu0 %v2660
        %2712 = vmatprep.subr.bf16.mxu0 %v2659
        %2713 = vmatpush1.bf16.msra.mxu0 %v2658
        %2714 = vmatprep.subr.bf16.mxu0 %v2657
        %2715 = vmatpush1.bf16.msra.mxu0 %v2656
        %2716 = vmatprep.subr.bf16.mxu0 %v2655
        %2717 = vmatpush1.bf16.msra.mxu0 %v2654
        %2718 = vmatprep.subr.bf16.mxu0 %v2653
        %2719 = vmatpush1.bf16.msra.mxu0 %v2652
        %2720 = vmatprep.subr.bf16.mxu0 %v2651
        %2721 = vmatpush1.bf16.msra.mxu0 %v2650
        %2722 = vmatprep.subr.bf16.mxu0 %v2649
        %2723 = vmatpush1.bf16.msra.mxu0 %v2648
        %2724 = vmatprep.subr.bf16.mxu0 %v2647
        %2725 = vmatpush1.bf16.msra.mxu0 %v2646
        %2726 = vmatprep.subr.bf16.mxu0 %v2677
        %2727 = vmatpush2.bf16.msra.mxu0 %v2676
        %2728 = vmatprep.subr.bf16.mxu0 %v2675
        %2729 = vmatpush2.bf16.msra.mxu0 %v2674
        %2730 = vmatprep.subr.bf16.mxu0 %v2673
        %2731 = vmatpush2.bf16.msra.mxu0 %v2672
        %2732 = vmatprep.subr.bf16.mxu0 %v2671
        %2733 = vmatpush2.bf16.msra.mxu0 %v2670
        %2734 = vmatprep.subr.bf16.mxu0 %v2669
        %2735 = vmatpush2.bf16.msra.mxu0 %v2668
        %2736 = vmatprep.subr.bf16.mxu0 %v2667
        %2737 = vmatpush2.bf16.msra.mxu0 %v2666
        %2738 = vmatprep.subr.bf16.mxu0 %v2665
        %2739 = vmatpush2.bf16.msra.mxu0 %v2664
        %2740 = vmatprep.subr.bf16.mxu0 %v2663
        %2741 = vmatpush2.bf16.msra.mxu0 %v2662
        %2742 = vmatprep.mubr.bf16.mxu0 %v2547
        %2743 = vmatmul.mubr.bf16.gmra.mxu0 %v2546
        %v2744 = vpop.f32.mrf.mxu0
        %v2745 = vadd.f32 0.0, %v2744
        %v2746 = vpop.f32.mrf.mxu0
        %v2747 = vadd.f32 0.0, %v2746
        %v2748 = vpop.f32.mrf.mxu0
        %v2749 = vpop.f32.mrf.mxu0
        %2750 = vdwg.mxu0
        %v2751 = vadd.f32 %v2503, %v2745
        %v2752 = vadd.f32 %v2504, %v2747
        %v2753 = vld [vmem:[%s245] sm:$0xf8]
        %v2754 = vld [vmem:[%s245 + $0x8] sm:$0xf8]
        %v2755 = vld [vmem:[%s245 + $0x10] sm:$0x7]
        %v2756 = vld [vmem:[%s245 + $0x18] sm:$0x7]
        %v2757 = vpack.c.bf16 %v2755, %v2753
        %v2758 = vpack.c.bf16 %v2756, %v2754
        %s2759 = scalar_lea.vmem %s1, 2560
        %v2760 = vld [vmem:[%s2759] sm:$0xff]
        %v2761 = vld [vmem:[%s2759 + $0x8] sm:$0xff]
        %v2762 = vld [vmem:[%s2759 + $0x10] sm:$0xff]
        %v2763 = vld [vmem:[%s2759 + $0x18] sm:$0xff]
        %v2764 = vld [vmem:[%s2759 + $0x20] sm:$0xff]
        %v2765 = vld [vmem:[%s2759 + $0x28] sm:$0xff]
        %v2766 = vld [vmem:[%s2759 + $0x30] sm:$0xff]
        %v2767 = vld [vmem:[%s2759 + $0x38] sm:$0xff]
        %v2768 = vld [vmem:[%s2759 + $0x40] sm:$0xff]
        %v2769 = vld [vmem:[%s2759 + $0x48] sm:$0xff]
        %v2770 = vld [vmem:[%s2759 + $0x50] sm:$0xff]
        %v2771 = vld [vmem:[%s2759 + $0x58] sm:$0xff]
        %v2772 = vld [vmem:[%s2759 + $0x60] sm:$0xff]
        %v2773 = vld [vmem:[%s2759 + $0x68] sm:$0xff]
        %v2774 = vld [vmem:[%s2759 + $0x70] sm:$0xff]
        %v2775 = vld [vmem:[%s2759 + $0x78] sm:$0xff]
        %v2776 = vld [vmem:[%s2759 + $0x80] sm:$0xff]
        %v2777 = vld [vmem:[%s2759 + $0x88] sm:$0xff]
        %v2778 = vld [vmem:[%s2759 + $0x90] sm:$0xff]
        %v2779 = vld [vmem:[%s2759 + $0x98] sm:$0xff]
        %v2780 = vld [vmem:[%s2759 + $0xa0] sm:$0xff]
        %v2781 = vld [vmem:[%s2759 + $0xa8] sm:$0xff]
        %v2782 = vld [vmem:[%s2759 + $0xb0] sm:$0xff]
        %v2783 = vld [vmem:[%s2759 + $0xb8] sm:$0xff]
        %v2784 = vld [vmem:[%s2759 + $0xc0] sm:$0xff]
        %v2785 = vld [vmem:[%s2759 + $0xc8] sm:$0xff]
        %v2786 = vld [vmem:[%s2759 + $0xd0] sm:$0xff]
        %v2787 = vld [vmem:[%s2759 + $0xd8] sm:$0xff]
        %v2788 = vld [vmem:[%s2759 + $0xe0] sm:$0xff]
        %v2789 = vld [vmem:[%s2759 + $0xe8] sm:$0xff]
        %v2790 = vld [vmem:[%s2759 + $0xf0] sm:$0xff]
        %v2791 = vld [vmem:[%s2759 + $0xf8] sm:$0xff]
        %v2793 = vshrl.u32 %v2757, 16
        %v2795 = vrot.slane %v2793, 1
        %v2796 = vshll.u32 %v2757, 16
        %v2798 = vrot.slane %v2796, 2
        %v2799 = vor.u32 %v2795, %v2798
        %v2801 = vshrl.u32 %v2758, 16
        %v2803 = vrot.slane %v2801, 1
        %v2804 = vshll.u32 %v2758, 16
        %v2806 = vrot.slane %v2804, 2
        %v2807 = vor.u32 %v2803, %v2806
        %v2842 = vunpack.c.l.b16 %v2760
        %v2843 = vunpack.c.h.b16 %v2760
        %v2844 = vunpack.c.l.b16 %v2761
        %v2845 = vunpack.c.h.b16 %v2761
        %v2846 = vunpack.c.l.b16 %v2762
        %v2847 = vunpack.c.h.b16 %v2762
        %v2848 = vunpack.c.l.b16 %v2763
        %v2849 = vunpack.c.h.b16 %v2763
        %v2850 = vunpack.c.l.b16 %v2764
        %v2851 = vunpack.c.h.b16 %v2764
        %v2852 = vunpack.c.l.b16 %v2765
        %v2853 = vunpack.c.h.b16 %v2765
        %v2854 = vunpack.c.l.b16 %v2766
        %v2855 = vunpack.c.h.b16 %v2766
        %v2856 = vunpack.c.l.b16 %v2767
        %v2857 = vunpack.c.h.b16 %v2767
        %v2858 = vunpack.c.l.b16 %v2768
        %v2859 = vunpack.c.h.b16 %v2768
        %v2860 = vunpack.c.l.b16 %v2769
        %v2861 = vunpack.c.h.b16 %v2769
        %v2862 = vunpack.c.l.b16 %v2770
        %v2863 = vunpack.c.h.b16 %v2770
        %v2864 = vunpack.c.l.b16 %v2771
        %v2865 = vunpack.c.h.b16 %v2771
        %v2866 = vunpack.c.l.b16 %v2772
        %v2867 = vunpack.c.h.b16 %v2772
        %v2868 = vunpack.c.l.b16 %v2773
        %v2869 = vunpack.c.h.b16 %v2773
        %v2870 = vunpack.c.l.b16 %v2774
        %v2871 = vunpack.c.h.b16 %v2774
        %v2872 = vunpack.c.l.b16 %v2775
        %v2873 = vunpack.c.h.b16 %v2775
        %v2874 = vunpack.c.l.b16 %v2776
        %v2875 = vunpack.c.h.b16 %v2776
        %v2876 = vunpack.c.l.b16 %v2777
        %v2877 = vunpack.c.h.b16 %v2777
        %v2878 = vunpack.c.l.b16 %v2778
        %v2879 = vunpack.c.h.b16 %v2778
        %v2880 = vunpack.c.l.b16 %v2779
        %v2881 = vunpack.c.h.b16 %v2779
        %v2882 = vunpack.c.l.b16 %v2780
        %v2883 = vunpack.c.h.b16 %v2780
        %v2884 = vunpack.c.l.b16 %v2781
        %v2885 = vunpack.c.h.b16 %v2781
        %v2886 = vunpack.c.l.b16 %v2782
        %v2887 = vunpack.c.h.b16 %v2782
        %v2888 = vunpack.c.l.b16 %v2783
        %v2889 = vunpack.c.h.b16 %v2783
        %v2890 = vunpack.c.l.b16 %v2784
        %v2891 = vunpack.c.h.b16 %v2784
        %v2892 = vunpack.c.l.b16 %v2785
        %v2893 = vunpack.c.h.b16 %v2785
        %v2894 = vunpack.c.l.b16 %v2786
        %v2895 = vunpack.c.h.b16 %v2786
        %v2896 = vunpack.c.l.b16 %v2787
        %v2897 = vunpack.c.h.b16 %v2787
        %v2898 = vunpack.c.l.b16 %v2788
        %v2899 = vunpack.c.h.b16 %v2788
        %v2900 = vunpack.c.l.b16 %v2789
        %v2901 = vunpack.c.h.b16 %v2789
        %v2902 = vunpack.c.l.b16 %v2790
        %v2903 = vunpack.c.h.b16 %v2790
        %v2904 = vunpack.c.l.b16 %v2791
        %v2905 = vunpack.c.h.b16 %v2791
        %v2906 = vpack.c.b16 %v2844, %v2842
        %v2907 = vpack.c.b16 %v2845, %v2843
        %v2908 = vpack.c.b16 %v2848, %v2846
        %v2909 = vpack.c.b16 %v2849, %v2847
        %v2910 = vpack.c.b16 %v2852, %v2850
        %v2911 = vpack.c.b16 %v2853, %v2851
        %v2912 = vpack.c.b16 %v2856, %v2854
        %v2913 = vpack.c.b16 %v2857, %v2855
        %v2914 = vpack.c.b16 %v2860, %v2858
        %v2915 = vpack.c.b16 %v2861, %v2859
        %v2916 = vpack.c.b16 %v2864, %v2862
        %v2917 = vpack.c.b16 %v2865, %v2863
        %v2918 = vpack.c.b16 %v2868, %v2866
        %v2919 = vpack.c.b16 %v2869, %v2867
        %v2920 = vpack.c.b16 %v2872, %v2870
        %v2921 = vpack.c.b16 %v2873, %v2871
        %v2922 = vpack.c.b16 %v2876, %v2874
        %v2923 = vpack.c.b16 %v2877, %v2875
        %v2924 = vpack.c.b16 %v2880, %v2878
        %v2925 = vpack.c.b16 %v2881, %v2879
        %v2926 = vpack.c.b16 %v2884, %v2882
        %v2927 = vpack.c.b16 %v2885, %v2883
        %v2928 = vpack.c.b16 %v2888, %v2886
        %v2929 = vpack.c.b16 %v2889, %v2887
        %v2930 = vpack.c.b16 %v2892, %v2890
        %v2931 = vpack.c.b16 %v2893, %v2891
        %v2932 = vpack.c.b16 %v2896, %v2894
        %v2933 = vpack.c.b16 %v2897, %v2895
        %v2934 = vpack.c.b16 %v2900, %v2898
        %v2935 = vpack.c.b16 %v2901, %v2899
        %v2936 = vpack.c.b16 %v2904, %v2902
        %v2937 = vpack.c.b16 %v2905, %v2903
        %2970 = vmatprep.subr.bf16.mxu0 %v2921
        %2971 = vmatpush1.bf16.msra.mxu0 %v2920
        %2972 = vmatprep.subr.bf16.mxu0 %v2919
        %2973 = vmatpush1.bf16.msra.mxu0 %v2918
        %2974 = vmatprep.subr.bf16.mxu0 %v2917
        %2975 = vmatpush1.bf16.msra.mxu0 %v2916
        %2976 = vmatprep.subr.bf16.mxu0 %v2915
        %2977 = vmatpush1.bf16.msra.mxu0 %v2914
        %2978 = vmatprep.subr.bf16.mxu0 %v2913
        %2979 = vmatpush1.bf16.msra.mxu0 %v2912
        %2980 = vmatprep.subr.bf16.mxu0 %v2911
        %2981 = vmatpush1.bf16.msra.mxu0 %v2910
        %2982 = vmatprep.subr.bf16.mxu0 %v2909
        %2983 = vmatpush1.bf16.msra.mxu0 %v2908
        %2984 = vmatprep.subr.bf16.mxu0 %v2907
        %2985 = vmatpush1.bf16.msra.mxu0 %v2906
        %2986 = vmatprep.subr.bf16.mxu0 %v2937
        %2987 = vmatpush2.bf16.msra.mxu0 %v2936
        %2988 = vmatprep.subr.bf16.mxu0 %v2935
        %2989 = vmatpush2.bf16.msra.mxu0 %v2934
        %2990 = vmatprep.subr.bf16.mxu0 %v2933
        %2991 = vmatpush2.bf16.msra.mxu0 %v2932
        %2992 = vmatprep.subr.bf16.mxu0 %v2931
        %2993 = vmatpush2.bf16.msra.mxu0 %v2930
        %2994 = vmatprep.subr.bf16.mxu0 %v2929
        %2995 = vmatpush2.bf16.msra.mxu0 %v2928
        %2996 = vmatprep.subr.bf16.mxu0 %v2927
        %2997 = vmatpush2.bf16.msra.mxu0 %v2926
        %2998 = vmatprep.subr.bf16.mxu0 %v2925
        %2999 = vmatpush2.bf16.msra.mxu0 %v2924
        %3000 = vmatprep.subr.bf16.mxu0 %v2923
        %3001 = vmatpush2.bf16.msra.mxu0 %v2922
        %3002 = vmatprep.mubr.bf16.mxu0 %v2807
        %3003 = vmatmul.mubr.bf16.gmra.mxu0 %v2799
        %v3004 = vpop.f32.mrf.mxu0
        %v3005 = vadd.f32 0.0, %v3004
        %v3006 = vpop.f32.mrf.mxu0
        %v3007 = vadd.f32 0.0, %v3006
        %v3008 = vpop.f32.mrf.mxu0
        %v3009 = vpop.f32.mrf.mxu0
        %3010 = vdwg.mxu0
        %v3011 = vadd.f32 %v2751, %v3005
        %v3012 = vadd.f32 %v2752, %v3007
        %v3013 = vld [vmem:[%s245] sm:$0xf0]
        %v3014 = vld [vmem:[%s245 + $0x8] sm:$0xf0]
        %v3015 = vld [vmem:[%s245 + $0x10] sm:$0xf]
        %v3016 = vld [vmem:[%s245 + $0x18] sm:$0xf]
        %v3017 = vpack.c.bf16 %v3015, %v3013
        %v3018 = vpack.c.bf16 %v3016, %v3014
        %s3019 = scalar_lea.vmem %s1, 2816
        %v3020 = vld [vmem:[%s3019] sm:$0xff]
        %v3021 = vld [vmem:[%s3019 + $0x8] sm:$0xff]
        %v3022 = vld [vmem:[%s3019 + $0x10] sm:$0xff]
        %v3023 = vld [vmem:[%s3019 + $0x18] sm:$0xff]
        %v3024 = vld [vmem:[%s3019 + $0x20] sm:$0xff]
        %v3025 = vld [vmem:[%s3019 + $0x28] sm:$0xff]
        %v3026 = vld [vmem:[%s3019 + $0x30] sm:$0xff]
        %v3027 = vld [vmem:[%s3019 + $0x38] sm:$0xff]
        %v3028 = vld [vmem:[%s3019 + $0x40] sm:$0xff]
        %v3029 = vld [vmem:[%s3019 + $0x48] sm:$0xff]
        %v3030 = vld [vmem:[%s3019 + $0x50] sm:$0xff]
        %v3031 = vld [vmem:[%s3019 + $0x58] sm:$0xff]
        %v3032 = vld [vmem:[%s3019 + $0x60] sm:$0xff]
        %v3033 = vld [vmem:[%s3019 + $0x68] sm:$0xff]
        %v3034 = vld [vmem:[%s3019 + $0x70] sm:$0xff]
        %v3035 = vld [vmem:[%s3019 + $0x78] sm:$0xff]
        %v3036 = vld [vmem:[%s3019 + $0x80] sm:$0xff]
        %v3037 = vld [vmem:[%s3019 + $0x88] sm:$0xff]
        %v3038 = vld [vmem:[%s3019 + $0x90] sm:$0xff]
        %v3039 = vld [vmem:[%s3019 + $0x98] sm:$0xff]
        %v3040 = vld [vmem:[%s3019 + $0xa0] sm:$0xff]
        %v3041 = vld [vmem:[%s3019 + $0xa8] sm:$0xff]
        %v3042 = vld [vmem:[%s3019 + $0xb0] sm:$0xff]
        %v3043 = vld [vmem:[%s3019 + $0xb8] sm:$0xff]
        %v3044 = vld [vmem:[%s3019 + $0xc0] sm:$0xff]
        %v3045 = vld [vmem:[%s3019 + $0xc8] sm:$0xff]
        %v3046 = vld [vmem:[%s3019 + $0xd0] sm:$0xff]
        %v3047 = vld [vmem:[%s3019 + $0xd8] sm:$0xff]
        %v3048 = vld [vmem:[%s3019 + $0xe0] sm:$0xff]
        %v3049 = vld [vmem:[%s3019 + $0xe8] sm:$0xff]
        %v3050 = vld [vmem:[%s3019 + $0xf0] sm:$0xff]
        %v3051 = vld [vmem:[%s3019 + $0xf8] sm:$0xff]
        %v3054 = vrot.slane %v3017, 2
        %v3055 = vrot.slane %v3018, 2
        %v3090 = vunpack.c.l.b16 %v3020
        %v3091 = vunpack.c.h.b16 %v3020
        %v3092 = vunpack.c.l.b16 %v3021
        %v3093 = vunpack.c.h.b16 %v3021
        %v3094 = vunpack.c.l.b16 %v3022
        %v3095 = vunpack.c.h.b16 %v3022
        %v3096 = vunpack.c.l.b16 %v3023
        %v3097 = vunpack.c.h.b16 %v3023
        %v3098 = vunpack.c.l.b16 %v3024
        %v3099 = vunpack.c.h.b16 %v3024
        %v3100 = vunpack.c.l.b16 %v3025
        %v3101 = vunpack.c.h.b16 %v3025
        %v3102 = vunpack.c.l.b16 %v3026
        %v3103 = vunpack.c.h.b16 %v3026
        %v3104 = vunpack.c.l.b16 %v3027
        %v3105 = vunpack.c.h.b16 %v3027
        %v3106 = vunpack.c.l.b16 %v3028
        %v3107 = vunpack.c.h.b16 %v3028
        %v3108 = vunpack.c.l.b16 %v3029
        %v3109 = vunpack.c.h.b16 %v3029
        %v3110 = vunpack.c.l.b16 %v3030
        %v3111 = vunpack.c.h.b16 %v3030
        %v3112 = vunpack.c.l.b16 %v3031
        %v3113 = vunpack.c.h.b16 %v3031
        %v3114 = vunpack.c.l.b16 %v3032
        %v3115 = vunpack.c.h.b16 %v3032
        %v3116 = vunpack.c.l.b16 %v3033
        %v3117 = vunpack.c.h.b16 %v3033
        %v3118 = vunpack.c.l.b16 %v3034
        %v3119 = vunpack.c.h.b16 %v3034
        %v3120 = vunpack.c.l.b16 %v3035
        %v3121 = vunpack.c.h.b16 %v3035
        %v3122 = vunpack.c.l.b16 %v3036
        %v3123 = vunpack.c.h.b16 %v3036
        %v3124 = vunpack.c.l.b16 %v3037
        %v3125 = vunpack.c.h.b16 %v3037
        %v3126 = vunpack.c.l.b16 %v3038
        %v3127 = vunpack.c.h.b16 %v3038
        %v3128 = vunpack.c.l.b16 %v3039
        %v3129 = vunpack.c.h.b16 %v3039
        %v3130 = vunpack.c.l.b16 %v3040
        %v3131 = vunpack.c.h.b16 %v3040
        %v3132 = vunpack.c.l.b16 %v3041
        %v3133 = vunpack.c.h.b16 %v3041
        %v3134 = vunpack.c.l.b16 %v3042
        %v3135 = vunpack.c.h.b16 %v3042
        %v3136 = vunpack.c.l.b16 %v3043
        %v3137 = vunpack.c.h.b16 %v3043
        %v3138 = vunpack.c.l.b16 %v3044
        %v3139 = vunpack.c.h.b16 %v3044
        %v3140 = vunpack.c.l.b16 %v3045
        %v3141 = vunpack.c.h.b16 %v3045
        %v3142 = vunpack.c.l.b16 %v3046
        %v3143 = vunpack.c.h.b16 %v3046
        %v3144 = vunpack.c.l.b16 %v3047
        %v3145 = vunpack.c.h.b16 %v3047
        %v3146 = vunpack.c.l.b16 %v3048
        %v3147 = vunpack.c.h.b16 %v3048
        %v3148 = vunpack.c.l.b16 %v3049
        %v3149 = vunpack.c.h.b16 %v3049
        %v3150 = vunpack.c.l.b16 %v3050
        %v3151 = vunpack.c.h.b16 %v3050
        %v3152 = vunpack.c.l.b16 %v3051
        %v3153 = vunpack.c.h.b16 %v3051
        %v3154 = vpack.c.b16 %v3092, %v3090
        %v3155 = vpack.c.b16 %v3093, %v3091
        %v3156 = vpack.c.b16 %v3096, %v3094
        %v3157 = vpack.c.b16 %v3097, %v3095
        %v3158 = vpack.c.b16 %v3100, %v3098
        %v3159 = vpack.c.b16 %v3101, %v3099
        %v3160 = vpack.c.b16 %v3104, %v3102
        %v3161 = vpack.c.b16 %v3105, %v3103
        %v3162 = vpack.c.b16 %v3108, %v3106
        %v3163 = vpack.c.b16 %v3109, %v3107
        %v3164 = vpack.c.b16 %v3112, %v3110
        %v3165 = vpack.c.b16 %v3113, %v3111
        %v3166 = vpack.c.b16 %v3116, %v3114
        %v3167 = vpack.c.b16 %v3117, %v3115
        %v3168 = vpack.c.b16 %v3120, %v3118
        %v3169 = vpack.c.b16 %v3121, %v3119
        %v3170 = vpack.c.b16 %v3124, %v3122
        %v3171 = vpack.c.b16 %v3125, %v3123
        %v3172 = vpack.c.b16 %v3128, %v3126
        %v3173 = vpack.c.b16 %v3129, %v3127
        %v3174 = vpack.c.b16 %v3132, %v3130
        %v3175 = vpack.c.b16 %v3133, %v3131
        %v3176 = vpack.c.b16 %v3136, %v3134
        %v3177 = vpack.c.b16 %v3137, %v3135
        %v3178 = vpack.c.b16 %v3140, %v3138
        %v3179 = vpack.c.b16 %v3141, %v3139
        %v3180 = vpack.c.b16 %v3144, %v3142
        %v3181 = vpack.c.b16 %v3145, %v3143
        %v3182 = vpack.c.b16 %v3148, %v3146
        %v3183 = vpack.c.b16 %v3149, %v3147
        %v3184 = vpack.c.b16 %v3152, %v3150
        %v3185 = vpack.c.b16 %v3153, %v3151
        %3218 = vmatprep.subr.bf16.mxu0 %v3169
        %3219 = vmatpush1.bf16.msra.mxu0 %v3168
        %3220 = vmatprep.subr.bf16.mxu0 %v3167
        %3221 = vmatpush1.bf16.msra.mxu0 %v3166
        %3222 = vmatprep.subr.bf16.mxu0 %v3165
        %3223 = vmatpush1.bf16.msra.mxu0 %v3164
        %3224 = vmatprep.subr.bf16.mxu0 %v3163
        %3225 = vmatpush1.bf16.msra.mxu0 %v3162
        %3226 = vmatprep.subr.bf16.mxu0 %v3161
        %3227 = vmatpush1.bf16.msra.mxu0 %v3160
        %3228 = vmatprep.subr.bf16.mxu0 %v3159
        %3229 = vmatpush1.bf16.msra.mxu0 %v3158
        %3230 = vmatprep.subr.bf16.mxu0 %v3157
        %3231 = vmatpush1.bf16.msra.mxu0 %v3156
        %3232 = vmatprep.subr.bf16.mxu0 %v3155
        %3233 = vmatpush1.bf16.msra.mxu0 %v3154
        %3234 = vmatprep.subr.bf16.mxu0 %v3185
        %3235 = vmatpush2.bf16.msra.mxu0 %v3184
        %3236 = vmatprep.subr.bf16.mxu0 %v3183
        %3237 = vmatpush2.bf16.msra.mxu0 %v3182
        %3238 = vmatprep.subr.bf16.mxu0 %v3181
        %3239 = vmatpush2.bf16.msra.mxu0 %v3180
        %3240 = vmatprep.subr.bf16.mxu0 %v3179
        %3241 = vmatpush2.bf16.msra.mxu0 %v3178
        %3242 = vmatprep.subr.bf16.mxu0 %v3177
        %3243 = vmatpush2.bf16.msra.mxu0 %v3176
        %3244 = vmatprep.subr.bf16.mxu0 %v3175
        %3245 = vmatpush2.bf16.msra.mxu0 %v3174
        %3246 = vmatprep.subr.bf16.mxu0 %v3173
        %3247 = vmatpush2.bf16.msra.mxu0 %v3172
        %3248 = vmatprep.subr.bf16.mxu0 %v3171
        %3249 = vmatpush2.bf16.msra.mxu0 %v3170
        %3250 = vmatprep.mubr.bf16.mxu0 %v3055
        %3251 = vmatmul.mubr.bf16.gmra.mxu0 %v3054
        %v3252 = vpop.f32.mrf.mxu0
        %v3253 = vadd.f32 0.0, %v3252
        %v3254 = vpop.f32.mrf.mxu0
        %v3255 = vadd.f32 0.0, %v3254
        %v3256 = vpop.f32.mrf.mxu0
        %v3257 = vpop.f32.mrf.mxu0
        %3258 = vdwg.mxu0
        %v3259 = vadd.f32 %v3011, %v3253
        %v3260 = vadd.f32 %v3012, %v3255
        %v3261 = vld [vmem:[%s245] sm:$0xe0]
        %v3262 = vld [vmem:[%s245 + $0x8] sm:$0xe0]
        %v3263 = vld [vmem:[%s245 + $0x10] sm:$0x1f]
        %v3264 = vld [vmem:[%s245 + $0x18] sm:$0x1f]
        %v3265 = vpack.c.bf16 %v3263, %v3261
        %v3266 = vpack.c.bf16 %v3264, %v3262
        %s3267 = scalar_lea.vmem %s1, 3072
        %v3268 = vld [vmem:[%s3267] sm:$0xff]
        %v3269 = vld [vmem:[%s3267 + $0x8] sm:$0xff]
        %v3270 = vld [vmem:[%s3267 + $0x10] sm:$0xff]
        %v3271 = vld [vmem:[%s3267 + $0x18] sm:$0xff]
        %v3272 = vld [vmem:[%s3267 + $0x20] sm:$0xff]
        %v3273 = vld [vmem:[%s3267 + $0x28] sm:$0xff]
        %v3274 = vld [vmem:[%s3267 + $0x30] sm:$0xff]
        %v3275 = vld [vmem:[%s3267 + $0x38] sm:$0xff]
        %v3276 = vld [vmem:[%s3267 + $0x40] sm:$0xff]
        %v3277 = vld [vmem:[%s3267 + $0x48] sm:$0xff]
        %v3278 = vld [vmem:[%s3267 + $0x50] sm:$0xff]
        %v3279 = vld [vmem:[%s3267 + $0x58] sm:$0xff]
        %v3280 = vld [vmem:[%s3267 + $0x60] sm:$0xff]
        %v3281 = vld [vmem:[%s3267 + $0x68] sm:$0xff]
        %v3282 = vld [vmem:[%s3267 + $0x70] sm:$0xff]
        %v3283 = vld [vmem:[%s3267 + $0x78] sm:$0xff]
        %v3284 = vld [vmem:[%s3267 + $0x80] sm:$0xff]
        %v3285 = vld [vmem:[%s3267 + $0x88] sm:$0xff]
        %v3286 = vld [vmem:[%s3267 + $0x90] sm:$0xff]
        %v3287 = vld [vmem:[%s3267 + $0x98] sm:$0xff]
        %v3288 = vld [vmem:[%s3267 + $0xa0] sm:$0xff]
        %v3289 = vld [vmem:[%s3267 + $0xa8] sm:$0xff]
        %v3290 = vld [vmem:[%s3267 + $0xb0] sm:$0xff]
        %v3291 = vld [vmem:[%s3267 + $0xb8] sm:$0xff]
        %v3292 = vld [vmem:[%s3267 + $0xc0] sm:$0xff]
        %v3293 = vld [vmem:[%s3267 + $0xc8] sm:$0xff]
        %v3294 = vld [vmem:[%s3267 + $0xd0] sm:$0xff]
        %v3295 = vld [vmem:[%s3267 + $0xd8] sm:$0xff]
        %v3296 = vld [vmem:[%s3267 + $0xe0] sm:$0xff]
        %v3297 = vld [vmem:[%s3267 + $0xe8] sm:$0xff]
        %v3298 = vld [vmem:[%s3267 + $0xf0] sm:$0xff]
        %v3299 = vld [vmem:[%s3267 + $0xf8] sm:$0xff]
        %v3301 = vshrl.u32 %v3265, 16
        %v3303 = vrot.slane %v3301, 2
        %v3304 = vshll.u32 %v3265, 16
        %v3306 = vrot.slane %v3304, 3
        %v3307 = vor.u32 %v3303, %v3306
        %v3309 = vshrl.u32 %v3266, 16
        %v3311 = vrot.slane %v3309, 2
        %v3312 = vshll.u32 %v3266, 16
        %v3314 = vrot.slane %v3312, 3
        %v3315 = vor.u32 %v3311, %v3314
        %v3350 = vunpack.c.l.b16 %v3268
        %v3351 = vunpack.c.h.b16 %v3268
        %v3352 = vunpack.c.l.b16 %v3269
        %v3353 = vunpack.c.h.b16 %v3269
        %v3354 = vunpack.c.l.b16 %v3270
        %v3355 = vunpack.c.h.b16 %v3270
        %v3356 = vunpack.c.l.b16 %v3271
        %v3357 = vunpack.c.h.b16 %v3271
        %v3358 = vunpack.c.l.b16 %v3272
        %v3359 = vunpack.c.h.b16 %v3272
        %v3360 = vunpack.c.l.b16 %v3273
        %v3361 = vunpack.c.h.b16 %v3273
        %v3362 = vunpack.c.l.b16 %v3274
        %v3363 = vunpack.c.h.b16 %v3274
        %v3364 = vunpack.c.l.b16 %v3275
        %v3365 = vunpack.c.h.b16 %v3275
        %v3366 = vunpack.c.l.b16 %v3276
        %v3367 = vunpack.c.h.b16 %v3276
        %v3368 = vunpack.c.l.b16 %v3277
        %v3369 = vunpack.c.h.b16 %v3277
        %v3370 = vunpack.c.l.b16 %v3278
        %v3371 = vunpack.c.h.b16 %v3278
        %v3372 = vunpack.c.l.b16 %v3279
        %v3373 = vunpack.c.h.b16 %v3279
        %v3374 = vunpack.c.l.b16 %v3280
        %v3375 = vunpack.c.h.b16 %v3280
        %v3376 = vunpack.c.l.b16 %v3281
        %v3377 = vunpack.c.h.b16 %v3281
        %v3378 = vunpack.c.l.b16 %v3282
        %v3379 = vunpack.c.h.b16 %v3282
        %v3380 = vunpack.c.l.b16 %v3283
        %v3381 = vunpack.c.h.b16 %v3283
        %v3382 = vunpack.c.l.b16 %v3284
        %v3383 = vunpack.c.h.b16 %v3284
        %v3384 = vunpack.c.l.b16 %v3285
        %v3385 = vunpack.c.h.b16 %v3285
        %v3386 = vunpack.c.l.b16 %v3286
        %v3387 = vunpack.c.h.b16 %v3286
        %v3388 = vunpack.c.l.b16 %v3287
        %v3389 = vunpack.c.h.b16 %v3287
        %v3390 = vunpack.c.l.b16 %v3288
        %v3391 = vunpack.c.h.b16 %v3288
        %v3392 = vunpack.c.l.b16 %v3289
        %v3393 = vunpack.c.h.b16 %v3289
        %v3394 = vunpack.c.l.b16 %v3290
        %v3395 = vunpack.c.h.b16 %v3290
        %v3396 = vunpack.c.l.b16 %v3291
        %v3397 = vunpack.c.h.b16 %v3291
        %v3398 = vunpack.c.l.b16 %v3292
        %v3399 = vunpack.c.h.b16 %v3292
        %v3400 = vunpack.c.l.b16 %v3293
        %v3401 = vunpack.c.h.b16 %v3293
        %v3402 = vunpack.c.l.b16 %v3294
        %v3403 = vunpack.c.h.b16 %v3294
        %v3404 = vunpack.c.l.b16 %v3295
        %v3405 = vunpack.c.h.b16 %v3295
        %v3406 = vunpack.c.l.b16 %v3296
        %v3407 = vunpack.c.h.b16 %v3296
        %v3408 = vunpack.c.l.b16 %v3297
        %v3409 = vunpack.c.h.b16 %v3297
        %v3410 = vunpack.c.l.b16 %v3298
        %v3411 = vunpack.c.h.b16 %v3298
        %v3412 = vunpack.c.l.b16 %v3299
        %v3413 = vunpack.c.h.b16 %v3299
        %v3414 = vpack.c.b16 %v3352, %v3350
        %v3415 = vpack.c.b16 %v3353, %v3351
        %v3416 = vpack.c.b16 %v3356, %v3354
        %v3417 = vpack.c.b16 %v3357, %v3355
        %v3418 = vpack.c.b16 %v3360, %v3358
        %v3419 = vpack.c.b16 %v3361, %v3359
        %v3420 = vpack.c.b16 %v3364, %v3362
        %v3421 = vpack.c.b16 %v3365, %v3363
        %v3422 = vpack.c.b16 %v3368, %v3366
        %v3423 = vpack.c.b16 %v3369, %v3367
        %v3424 = vpack.c.b16 %v3372, %v3370
        %v3425 = vpack.c.b16 %v3373, %v3371
        %v3426 = vpack.c.b16 %v3376, %v3374
        %v3427 = vpack.c.b16 %v3377, %v3375
        %v3428 = vpack.c.b16 %v3380, %v3378
        %v3429 = vpack.c.b16 %v3381, %v3379
        %v3430 = vpack.c.b16 %v3384, %v3382
        %v3431 = vpack.c.b16 %v3385, %v3383
        %v3432 = vpack.c.b16 %v3388, %v3386
        %v3433 = vpack.c.b16 %v3389, %v3387
        %v3434 = vpack.c.b16 %v3392, %v3390
        %v3435 = vpack.c.b16 %v3393, %v3391
        %v3436 = vpack.c.b16 %v3396, %v3394
        %v3437 = vpack.c.b16 %v3397, %v3395
        %v3438 = vpack.c.b16 %v3400, %v3398
        %v3439 = vpack.c.b16 %v3401, %v3399
        %v3440 = vpack.c.b16 %v3404, %v3402
        %v3441 = vpack.c.b16 %v3405, %v3403
        %v3442 = vpack.c.b16 %v3408, %v3406
        %v3443 = vpack.c.b16 %v3409, %v3407
        %v3444 = vpack.c.b16 %v3412, %v3410
        %v3445 = vpack.c.b16 %v3413, %v3411
        %3478 = vmatprep.subr.bf16.mxu0 %v3429
        %3479 = vmatpush1.bf16.msra.mxu0 %v3428
        %3480 = vmatprep.subr.bf16.mxu0 %v3427
        %3481 = vmatpush1.bf16.msra.mxu0 %v3426
        %3482 = vmatprep.subr.bf16.mxu0 %v3425
        %3483 = vmatpush1.bf16.msra.mxu0 %v3424
        %3484 = vmatprep.subr.bf16.mxu0 %v3423
        %3485 = vmatpush1.bf16.msra.mxu0 %v3422
        %3486 = vmatprep.subr.bf16.mxu0 %v3421
        %3487 = vmatpush1.bf16.msra.mxu0 %v3420
        %3488 = vmatprep.subr.bf16.mxu0 %v3419
        %3489 = vmatpush1.bf16.msra.mxu0 %v3418
        %3490 = vmatprep.subr.bf16.mxu0 %v3417
        %3491 = vmatpush1.bf16.msra.mxu0 %v3416
        %3492 = vmatprep.subr.bf16.mxu0 %v3415
        %3493 = vmatpush1.bf16.msra.mxu0 %v3414
        %3494 = vmatprep.subr.bf16.mxu0 %v3445
        %3495 = vmatpush2.bf16.msra.mxu0 %v3444
        %3496 = vmatprep.subr.bf16.mxu0 %v3443
        %3497 = vmatpush2.bf16.msra.mxu0 %v3442
        %3498 = vmatprep.subr.bf16.mxu0 %v3441
        %3499 = vmatpush2.bf16.msra.mxu0 %v3440
        %3500 = vmatprep.subr.bf16.mxu0 %v3439
        %3501 = vmatpush2.bf16.msra.mxu0 %v3438
        %3502 = vmatprep.subr.bf16.mxu0 %v3437
        %3503 = vmatpush2.bf16.msra.mxu0 %v3436
        %3504 = vmatprep.subr.bf16.mxu0 %v3435
        %3505 = vmatpush2.bf16.msra.mxu0 %v3434
        %3506 = vmatprep.subr.bf16.mxu0 %v3433
        %3507 = vmatpush2.bf16.msra.mxu0 %v3432
        %3508 = vmatprep.subr.bf16.mxu0 %v3431
        %3509 = vmatpush2.bf16.msra.mxu0 %v3430
        %3510 = vmatprep.mubr.bf16.mxu0 %v3315
        %3511 = vmatmul.mubr.bf16.gmra.mxu0 %v3307
        %v3512 = vpop.f32.mrf.mxu0
        %v3513 = vadd.f32 0.0, %v3512
        %v3514 = vpop.f32.mrf.mxu0
        %v3515 = vadd.f32 0.0, %v3514
        %v3516 = vpop.f32.mrf.mxu0
        %v3517 = vpop.f32.mrf.mxu0
        %3518 = vdwg.mxu0
        %v3519 = vadd.f32 %v3259, %v3513
        %v3520 = vadd.f32 %v3260, %v3515
        %v3521 = vld [vmem:[%s245] sm:$0xc0]
        %v3522 = vld [vmem:[%s245 + $0x8] sm:$0xc0]
        %v3523 = vld [vmem:[%s245 + $0x10] sm:$0x3f]
        %v3524 = vld [vmem:[%s245 + $0x18] sm:$0x3f]
        %v3525 = vpack.c.bf16 %v3523, %v3521
        %v3526 = vpack.c.bf16 %v3524, %v3522
        %s3527 = scalar_lea.vmem %s1, 3328
        %v3528 = vld [vmem:[%s3527] sm:$0xff]
        %v3529 = vld [vmem:[%s3527 + $0x8] sm:$0xff]
        %v3530 = vld [vmem:[%s3527 + $0x10] sm:$0xff]
        %v3531 = vld [vmem:[%s3527 + $0x18] sm:$0xff]
        %v3532 = vld [vmem:[%s3527 + $0x20] sm:$0xff]
        %v3533 = vld [vmem:[%s3527 + $0x28] sm:$0xff]
        %v3534 = vld [vmem:[%s3527 + $0x30] sm:$0xff]
        %v3535 = vld [vmem:[%s3527 + $0x38] sm:$0xff]
        %v3536 = vld [vmem:[%s3527 + $0x40] sm:$0xff]
        %v3537 = vld [vmem:[%s3527 + $0x48] sm:$0xff]
        %v3538 = vld [vmem:[%s3527 + $0x50] sm:$0xff]
        %v3539 = vld [vmem:[%s3527 + $0x58] sm:$0xff]
        %v3540 = vld [vmem:[%s3527 + $0x60] sm:$0xff]
        %v3541 = vld [vmem:[%s3527 + $0x68] sm:$0xff]
        %v3542 = vld [vmem:[%s3527 + $0x70] sm:$0xff]
        %v3543 = vld [vmem:[%s3527 + $0x78] sm:$0xff]
        %v3544 = vld [vmem:[%s3527 + $0x80] sm:$0xff]
        %v3545 = vld [vmem:[%s3527 + $0x88] sm:$0xff]
        %v3546 = vld [vmem:[%s3527 + $0x90] sm:$0xff]
        %v3547 = vld [vmem:[%s3527 + $0x98] sm:$0xff]
        %v3548 = vld [vmem:[%s3527 + $0xa0] sm:$0xff]
        %v3549 = vld [vmem:[%s3527 + $0xa8] sm:$0xff]
        %v3550 = vld [vmem:[%s3527 + $0xb0] sm:$0xff]
        %v3551 = vld [vmem:[%s3527 + $0xb8] sm:$0xff]
        %v3552 = vld [vmem:[%s3527 + $0xc0] sm:$0xff]
        %v3553 = vld [vmem:[%s3527 + $0xc8] sm:$0xff]
        %v3554 = vld [vmem:[%s3527 + $0xd0] sm:$0xff]
        %v3555 = vld [vmem:[%s3527 + $0xd8] sm:$0xff]
        %v3556 = vld [vmem:[%s3527 + $0xe0] sm:$0xff]
        %v3557 = vld [vmem:[%s3527 + $0xe8] sm:$0xff]
        %v3558 = vld [vmem:[%s3527 + $0xf0] sm:$0xff]
        %v3559 = vld [vmem:[%s3527 + $0xf8] sm:$0xff]
        %v3562 = vrot.slane %v3525, 3
        %v3563 = vrot.slane %v3526, 3
        %v3598 = vunpack.c.l.b16 %v3528
        %v3599 = vunpack.c.h.b16 %v3528
        %v3600 = vunpack.c.l.b16 %v3529
        %v3601 = vunpack.c.h.b16 %v3529
        %v3602 = vunpack.c.l.b16 %v3530
        %v3603 = vunpack.c.h.b16 %v3530
        %v3604 = vunpack.c.l.b16 %v3531
        %v3605 = vunpack.c.h.b16 %v3531
        %v3606 = vunpack.c.l.b16 %v3532
        %v3607 = vunpack.c.h.b16 %v3532
        %v3608 = vunpack.c.l.b16 %v3533
        %v3609 = vunpack.c.h.b16 %v3533
        %v3610 = vunpack.c.l.b16 %v3534
        %v3611 = vunpack.c.h.b16 %v3534
        %v3612 = vunpack.c.l.b16 %v3535
        %v3613 = vunpack.c.h.b16 %v3535
        %v3614 = vunpack.c.l.b16 %v3536
        %v3615 = vunpack.c.h.b16 %v3536
        %v3616 = vunpack.c.l.b16 %v3537
        %v3617 = vunpack.c.h.b16 %v3537
        %v3618 = vunpack.c.l.b16 %v3538
        %v3619 = vunpack.c.h.b16 %v3538
        %v3620 = vunpack.c.l.b16 %v3539
        %v3621 = vunpack.c.h.b16 %v3539
        %v3622 = vunpack.c.l.b16 %v3540
        %v3623 = vunpack.c.h.b16 %v3540
        %v3624 = vunpack.c.l.b16 %v3541
        %v3625 = vunpack.c.h.b16 %v3541
        %v3626 = vunpack.c.l.b16 %v3542
        %v3627 = vunpack.c.h.b16 %v3542
        %v3628 = vunpack.c.l.b16 %v3543
        %v3629 = vunpack.c.h.b16 %v3543
        %v3630 = vunpack.c.l.b16 %v3544
        %v3631 = vunpack.c.h.b16 %v3544
        %v3632 = vunpack.c.l.b16 %v3545
        %v3633 = vunpack.c.h.b16 %v3545
        %v3634 = vunpack.c.l.b16 %v3546
        %v3635 = vunpack.c.h.b16 %v3546
        %v3636 = vunpack.c.l.b16 %v3547
        %v3637 = vunpack.c.h.b16 %v3547
        %v3638 = vunpack.c.l.b16 %v3548
        %v3639 = vunpack.c.h.b16 %v3548
        %v3640 = vunpack.c.l.b16 %v3549
        %v3641 = vunpack.c.h.b16 %v3549
        %v3642 = vunpack.c.l.b16 %v3550
        %v3643 = vunpack.c.h.b16 %v3550
        %v3644 = vunpack.c.l.b16 %v3551
        %v3645 = vunpack.c.h.b16 %v3551
        %v3646 = vunpack.c.l.b16 %v3552
        %v3647 = vunpack.c.h.b16 %v3552
        %v3648 = vunpack.c.l.b16 %v3553
        %v3649 = vunpack.c.h.b16 %v3553
        %v3650 = vunpack.c.l.b16 %v3554
        %v3651 = vunpack.c.h.b16 %v3554
        %v3652 = vunpack.c.l.b16 %v3555
        %v3653 = vunpack.c.h.b16 %v3555
        %v3654 = vunpack.c.l.b16 %v3556
        %v3655 = vunpack.c.h.b16 %v3556
        %v3656 = vunpack.c.l.b16 %v3557
        %v3657 = vunpack.c.h.b16 %v3557
        %v3658 = vunpack.c.l.b16 %v3558
        %v3659 = vunpack.c.h.b16 %v3558
        %v3660 = vunpack.c.l.b16 %v3559
        %v3661 = vunpack.c.h.b16 %v3559
        %v3662 = vpack.c.b16 %v3600, %v3598
        %v3663 = vpack.c.b16 %v3601, %v3599
        %v3664 = vpack.c.b16 %v3604, %v3602
        %v3665 = vpack.c.b16 %v3605, %v3603
        %v3666 = vpack.c.b16 %v3608, %v3606
        %v3667 = vpack.c.b16 %v3609, %v3607
        %v3668 = vpack.c.b16 %v3612, %v3610
        %v3669 = vpack.c.b16 %v3613, %v3611
        %v3670 = vpack.c.b16 %v3616, %v3614
        %v3671 = vpack.c.b16 %v3617, %v3615
        %v3672 = vpack.c.b16 %v3620, %v3618
        %v3673 = vpack.c.b16 %v3621, %v3619
        %v3674 = vpack.c.b16 %v3624, %v3622
        %v3675 = vpack.c.b16 %v3625, %v3623
        %v3676 = vpack.c.b16 %v3628, %v3626
        %v3677 = vpack.c.b16 %v3629, %v3627
        %v3678 = vpack.c.b16 %v3632, %v3630
        %v3679 = vpack.c.b16 %v3633, %v3631
        %v3680 = vpack.c.b16 %v3636, %v3634
        %v3681 = vpack.c.b16 %v3637, %v3635
        %v3682 = vpack.c.b16 %v3640, %v3638
        %v3683 = vpack.c.b16 %v3641, %v3639
        %v3684 = vpack.c.b16 %v3644, %v3642
        %v3685 = vpack.c.b16 %v3645, %v3643
        %v3686 = vpack.c.b16 %v3648, %v3646
        %v3687 = vpack.c.b16 %v3649, %v3647
        %v3688 = vpack.c.b16 %v3652, %v3650
        %v3689 = vpack.c.b16 %v3653, %v3651
        %v3690 = vpack.c.b16 %v3656, %v3654
        %v3691 = vpack.c.b16 %v3657, %v3655
        %v3692 = vpack.c.b16 %v3660, %v3658
        %v3693 = vpack.c.b16 %v3661, %v3659
        %3726 = vmatprep.subr.bf16.mxu0 %v3677
        %3727 = vmatpush1.bf16.msra.mxu0 %v3676
        %3728 = vmatprep.subr.bf16.mxu0 %v3675
        %3729 = vmatpush1.bf16.msra.mxu0 %v3674
        %3730 = vmatprep.subr.bf16.mxu0 %v3673
        %3731 = vmatpush1.bf16.msra.mxu0 %v3672
        %3732 = vmatprep.subr.bf16.mxu0 %v3671
        %3733 = vmatpush1.bf16.msra.mxu0 %v3670
        %3734 = vmatprep.subr.bf16.mxu0 %v3669
        %3735 = vmatpush1.bf16.msra.mxu0 %v3668
        %3736 = vmatprep.subr.bf16.mxu0 %v3667
        %3737 = vmatpush1.bf16.msra.mxu0 %v3666
        %3738 = vmatprep.subr.bf16.mxu0 %v3665
        %3739 = vmatpush1.bf16.msra.mxu0 %v3664
        %3740 = vmatprep.subr.bf16.mxu0 %v3663
        %3741 = vmatpush1.bf16.msra.mxu0 %v3662
        %3742 = vmatprep.subr.bf16.mxu0 %v3693
        %3743 = vmatpush2.bf16.msra.mxu0 %v3692
        %3744 = vmatprep.subr.bf16.mxu0 %v3691
        %3745 = vmatpush2.bf16.msra.mxu0 %v3690
        %3746 = vmatprep.subr.bf16.mxu0 %v3689
        %3747 = vmatpush2.bf16.msra.mxu0 %v3688
        %3748 = vmatprep.subr.bf16.mxu0 %v3687
        %3749 = vmatpush2.bf16.msra.mxu0 %v3686
        %3750 = vmatprep.subr.bf16.mxu0 %v3685
        %3751 = vmatpush2.bf16.msra.mxu0 %v3684
        %3752 = vmatprep.subr.bf16.mxu0 %v3683
        %3753 = vmatpush2.bf16.msra.mxu0 %v3682
        %3754 = vmatprep.subr.bf16.mxu0 %v3681
        %3755 = vmatpush2.bf16.msra.mxu0 %v3680
        %3756 = vmatprep.subr.bf16.mxu0 %v3679
        %3757 = vmatpush2.bf16.msra.mxu0 %v3678
        %3758 = vmatprep.mubr.bf16.mxu0 %v3563
        %3759 = vmatmul.mubr.bf16.gmra.mxu0 %v3562
        %v3760 = vpop.f32.mrf.mxu0
        %v3761 = vadd.f32 0.0, %v3760
        %v3762 = vpop.f32.mrf.mxu0
        %v3763 = vadd.f32 0.0, %v3762
        %v3764 = vpop.f32.mrf.mxu0
        %v3765 = vpop.f32.mrf.mxu0
        %3766 = vdwg.mxu0
        %v3767 = vadd.f32 %v3519, %v3761
        %v3768 = vadd.f32 %v3520, %v3763
        %v3769 = vxor.u32 %v3767, 2147483648
        %v3770 = vxor.u32 %v3768, 2147483648
        %v3771 = vmul.f32 %v3769, 1.442695
        %v3772 = vpow.pop %v3771
        %v3773 = vmul.f32 %v3770, 1.442695
        %v3774 = vpow.pop %v3773
        %v3775 = vadd.f32 %v3772, 1.0
        %v3776 = vadd.f32 %v3774, 1.0
        %v3777 = vrcp.pop %v3775
        %v3778 = vmul.f32 1.0, %v3777
        %v3779 = vrcp.pop %v3776
        %v3780 = vmul.f32 1.0, %v3779
        %3781 = vst [vmem:[%s167] sm:$0xff] %v3778
        %3782 = vst [vmem:[%s167 + $0x8] sm:$0xff] %v3780
      $region40: #{spatial_attention_3d.1} parent=27 // pred_fallthru
        _
      %p3783 = scmp.lt.s32.totalorder %s17, 1
      %s3784 = scalar_select %p3783, %s17, 1
      %s3785 = smul.addr %s3784, 2
      %s3786 = smul.addr %s3785, 8
      %s3787 = scalar_lea.vmem %s2, %s3786
      // Predicated region
      $region41: #{spatial_attention_3d.1} parent=27 // pred_check
        %p3788 = pneg %p92
      $region42: #{spatial_attention_3d.1} parent=27 // pred_check_branch
        %3790 = sbr.rel (%p3788) target = $region44
      $region43: #{spatial_attention_3d.1} parent=27 // pred_region
        _
      $region44: #{spatial_attention_3d.1} parent=27 // pred_fallthru
        _
    $region28: #{spatial_attention_3d.1} parent=5 // pred_fallthru
      _
    %p3791 = scmp.le.s32.totalorder 2, %s8
    // Predicated region
    $region45: #{spatial_attention_3d.1} parent=5 // pred_check
      %p3792 = pneg %p3791
    $region46: #{spatial_attention_3d.1} parent=5 // pred_check_branch
      %3794 = sbr.rel (%p3792) target = $region48
    $region47: #{spatial_attention_3d.1} parent=5 // pred_region
      %s3795 = ssub.s32 %s8, 2
      // Predicated region
      $region49: #{spatial_attention_3d.1} parent=47 // pred_check
        %p3796 = pneg %p98
      $region50: #{spatial_attention_3d.1} parent=47 // pred_check_branch
        %3798 = sbr.rel (%p3796) target = $region52
      $region51: #{spatial_attention_3d.1} parent=47 // pred_region
        %p3799 = scmp.lt.s32.totalorder %s19, 1
        %s3800 = scalar_select %p3799, %s19, 1
        %s3801 = smul.addr %s3800, 2
        %s3802 = smul.addr %s3801, 8
        %s3803 = scalar_lea.vmem %s2, %s3802
      $region52: #{spatial_attention_3d.1} parent=47 // pred_fallthru
        _
    $region48: #{spatial_attention_3d.1} parent=5 // pred_fallthru
      _
  $region6: #{spatial_attention_3d.1} parent=0 // loop_footer
    %s12 = sadd.s32 1, %s8
  $region7: #{spatial_attention_3d.1} parent=0 // loop_footer_branch
    %7 = sbr.rel target = $region3
  $region8: #{spatial_attention_3d.1} parent=0 // loop_exit
    _

</llo_original>
